<compile_context>
chip_gen: v7x
topology: tpu7x:2x2x1
jax: 0.10.0
libtpu: 0.0.40
codegen_flags: <defaults>
</compile_context>

<pallas_src>
import math

import jax
import jax.numpy as jnp
from jax.experimental import pallas as pl
from jax.experimental.pallas import tpu as pltpu


# ----------------------------- Pallas kernel ------------------------------


def _decoder_kernel(x1_ref, x2_ref,
                    w1a, b1a, w1b, b1b, w1c, b1c,
                    w2a, b2a, w2b, b2b, w2c, b2c,
                    wma1, wma2, bma, wmb, bmb, wmc, bmc,
                    o_ref):
    K = x1_ref.shape[1]
    tn = x1_ref.shape[-1]

    def branch_max(x_ref, wa, ba, wb, bb, wc, bc):
        # x_ref: (1, K, Cin, tn) bf16 -- channels on sublanes, points on lanes.
        wa_v, wb_v, wc_v = wa[...], wb[...], wc[...]
        # Hoist the lane-broadcasts of the biases out of the K loop.
        ba_b = jnp.broadcast_to(ba[...], (ba.shape[0], tn))
        bb_b = jnp.broadcast_to(bb[...], (bb.shape[0], tn))
        bc_b = jnp.broadcast_to(bc[...], (bc.shape[0], tn))
        m = None
        # Static unroll over neighbors with a running max: keeps the live set
        # to one (Cin, tn) slice + one (Cf, tn) accumulator, no -inf init.
        for k in range(K):
            xk = x_ref[0, k]                                   # (Cin, tn) bf16
            h = jnp.dot(wa_v, xk, preferred_element_type=jnp.float32) + ba_b
            h = jnp.maximum(h, 0.0).astype(jnp.bfloat16)
            h = jnp.dot(wb_v, h, preferred_element_type=jnp.float32) + bb_b
            h = jnp.maximum(h, 0.0).astype(jnp.bfloat16)
            f = jnp.dot(wc_v, h, preferred_element_type=jnp.float32) + bc_b
            m = f if m is None else jnp.maximum(m, f)
        return m                                               # (Cf, tn) f32

    # torch.max(mlp{1,2}(edge_feats), dim=2) for each branch.
    m1 = branch_max(x1_ref, w1a, b1a, w1b, b1b, w1c, b1c).astype(jnp.bfloat16)
    m2 = branch_max(x2_ref, w2a, b2a, w2b, b2b, w2c, b2c).astype(jnp.bfloat16)

    # Merge Conv1d MLP; first layer split over the two concatenated halves so
    # torch.cat((m1, m2), dim=1) never needs to be materialized.
    o = (jnp.dot(wma1[...], m1, preferred_element_type=jnp.float32)
         + jnp.dot(wma2[...], m2, preferred_element_type=jnp.float32)
         + bma[...])
    o = jnp.maximum(o, 0.0).astype(jnp.bfloat16)
    o = jnp.dot(wmb[...], o, preferred_element_type=jnp.float32) + bmb[...]
    o = jnp.maximum(o, 0.0).astype(jnp.bfloat16)
    o = jnp.dot(wmc[...], o, preferred_element_type=jnp.float32) + bmc[...]
    o_ref[0] = o.astype(o_ref.dtype)                           # (Cm, tn) store


# ------------------------------- wrapper -----------------------------------


def _choose_tn(N, B, *, max_tn=512, min_steps=16):
    """Largest multiple-of-128 divisor of N <= max_tn that still yields enough
    grid steps (>=16 so both v7x TensorCores get several pipelined steps);
    falls back to the smallest candidate, or full-N if no 128-divisor exists."""
    cands = [t for t in range(128, min(N, max_tn) + 1, 128) if N % t == 0]
    if not cands:
        return N
    for t in reversed(cands):
        if B * (N // t) >= min_steps:
            return t
    return cands[0]


def _const_spec(arr):
    zeros = (0,) * arr.ndim
    return pl.BlockSpec(arr.shape, lambda b, j: zeros)


def ri_decoder_core(x1, x2, params, *, max_tn=512):
    """x1, x2: (B, K, C, N) edge features for the regular / dilated branch."""
    B, K, C, N = x1.shape
    tn = _choose_tn(N, B, max_tn=max_tn)
    assert N % tn == 0, (N, tn)
    Cm = params["wmc"].shape[0]
    C3 = params["w1c"].shape[0]

    def w(name):   # DMA'd matmul operands in bf16 (half the HBM bytes)
        return params[name].astype(jnp.bfloat16)

    def fb(name):  # biases stay f32 (added to f32 accumulators)
        return params[name].astype(jnp.float32)

    wma_bf16 = w("wma")
    args = [w("w1a"), fb("b1a"), w("w1b"), fb("b1b"), w("w1c"), fb("b1c"),
            w("w2a"), fb("b2a"), w("w2b"), fb("b2b"), w("w2c"), fb("b2c"),
            wma_bf16[:, :C3], wma_bf16[:, C3:], fb("bma"),
            w("wmb"), fb("bmb"), w("wmc"), fb("bmc")]

    x1b = x1.astype(jnp.bfloat16)
    x2b = x2.astype(jnp.bfloat16)

    x_spec = pl.BlockSpec((1, K, C, tn), lambda b, j: (b, 0, 0, j))
    in_specs = [x_spec, x_spec] + [_const_spec(a) for a in args]

    return pl.pallas_call(
        _decoder_kernel,
        out_shape=jax.ShapeDtypeStruct((B, Cm, N), jnp.float32),
        grid_spec=pltpu.PrefetchScalarGridSpec(
            num_scalar_prefetch=0,
            grid=(B, N // tn),
            in_specs=in_specs,
            out_specs=pl.BlockSpec((1, Cm, tn), lambda b, j: (b, 0, j)),
        ),
        compiler_params=pltpu.CompilerParams(
            dimension_semantics=("parallel", "parallel")),
    )(x1b, x2b, *args)


# ------------------------------ JAX glue -----------------------------------


def knn_indices_both(points, k, dilation):
    """points: (B, C, N) -> (regular_idx (B,N,k), dilated_idx (B,N,k)).
    A single top_k over k*dilation serves both branches."""
    inner = jnp.einsum('bcn,bcm->bnm', points, points)
    sq = jnp.sum(points * points, axis=1)
    neg_sq_dist = 2.0 * inner - sq[:, :, None] - sq[:, None, :]
    _, idx = jax.lax.top_k(neg_sq_dist, k * dilation)          # (B, N, k*d)
    return idx[..., :k], idx[..., ::dilation]


def get_edge_features_bkcn(x, idx):
    """x: (B, C, N), idx: (B, N, K) -> (B, K, C, N) with
    out[b, k, c, n] = x[b, c, idx[b, n, k]]  (points stay on the minor axis,
    so the result is already in the kernel's lane-dense layout)."""
    idx_t = jnp.transpose(idx, (0, 2, 1))                      # (B, K, N) small

    def per_batch(xb, ib):                                     # (C,N), (K,N)
        return jax.vmap(lambda row: jnp.take(xb, row, axis=1))(ib)   # (K,C,N)

    return jax.vmap(per_batch)(x, idx_t)


def ri_decoder_forward(points, params, knn_k, dilation, features=None):
    if features is None:
        # TODO(synk): the features=None branch needs acenn_rir_feature /
        # point_projection_feature, which are not defined in the reference file.
        raise NotImplementedError("RI feature construction helpers not provided")
    idx, idx_d = knn_indices_both(points, knn_k, dilation)
    x1 = get_edge_features_bkcn(features, idx)                 # (B, K, C, N)
    x2 = get_edge_features_bkcn(features, idx_d)               # (B, K, C, N)
    return ri_decoder_core(x1, x2, params)                     # (B, Cm, N)


# --------------------------- parameter setup -------------------------------


def init_params(key, cin, mlp, mlp_merge):
    dims = [(cin, mlp[0]), (mlp[0], mlp[1]), (mlp[1], mlp[2]),
            (cin, mlp[0]), (mlp[0], mlp[1]), (mlp[1], mlp[2]),
            (2 * mlp[2], mlp_merge[0]), (mlp_merge[0], mlp_merge[1]),
            (mlp_merge[1], mlp_merge[2])]
    names = [("w1a", "b1a"), ("w1b", "b1b"), ("w1c", "b1c"),
             ("w2a", "b2a"), ("w2b", "b2b"), ("w2c", "b2c"),
             ("wma", "bma"), ("wmb", "bmb"), ("wmc", "bmc")]
    keys = jax.random.split(key, len(dims))
    params = {}
    for (wn, bn), (ci, co), kk in zip(names, dims, keys):
        kw, kb = jax.random.split(kk)
        bound = 1.0 / math.sqrt(ci)
        # Conv weight stored (Cout, Cin), bias (Cout, 1) -- PyTorch Conv layout.
        params[wn] = jax.random.uniform(kw, (co, ci), jnp.float32, -bound, bound)
        params[bn] = jax.random.uniform(kb, (co, 1), jnp.float32, -bound, bound)
    return params


# ------------------------- reference (plain JAX) ---------------------------


def _ref_forward(x1, x2, p):
    """Mirrors the kernel numerics exactly (bf16 matmul operands, f32
    accumulation / bias / ReLU / max) so the comparison can be tight."""
    def lin4(h, w, b):
        return (jnp.einsum('oc,bkcn->bkon', w.astype(jnp.bfloat16),
                           h.astype(jnp.bfloat16),
                           preferred_element_type=jnp.float32)
                + b[None, None])

    def branch(x, wa, ba, wb, bb, wc, bc):
        h = jnp.maximum(lin4(x, wa, ba), 0.0)
        h = jnp.maximum(lin4(h, wb, bb), 0.0)
        f = lin4(h, wc, bc)
        return jnp.max(f, axis=1)                              # (B, Cf, N)

    m1 = branch(x1, p["w1a"], p["b1a"], p["w1b"], p["b1b"], p["w1c"], p["b1c"])
    m2 = branch(x2, p["w2a"], p["b2a"], p["w2b"], p["b2b"], p["w2c"], p["b2c"])
    m = jnp.concatenate([m1, m2], axis=1)                      # (B, 2Cf, N)

    def lin3(h, w, b):
        return (jnp.einsum('oc,bcn->bon', w.astype(jnp.bfloat16),
                           h.astype(jnp.bfloat16),
                           preferred_element_type=jnp.float32) + b[None])

    o = jnp.maximum(lin3(m, p["wma"], p["bma"]), 0.0)
    o = jnp.maximum(lin3(o, p["wmb"], p["bmb"]), 0.0)
    return lin3(o, p["wmc"], p["bmc"])                         # (B, Cm, N)


if __name__ == "__main__":
    # Small-shape instantiation of RI_decoder(knn=8, dilation=2,
    # mlp=[16,32,32], mlp_merge=[64,128,128], input_channel=3).
    B, C, N = 2, 3, 256
    KNN, DIL = 8, 2
    MLP = (16, 32, 32)
    MLP_MERGE = (64, 128, 128)

    key = jax.random.PRNGKey(0)
    k_pts, k_feat, k_par = jax.random.split(key, 3)
    points = jax.random.normal(k_pts, (B, C, N), jnp.float32)
    features = jax.random.normal(k_feat, (B, C, N), jnp.float32)
    params = init_params(k_par, C, MLP, MLP_MERGE)

    fwd = jax.jit(ri_decoder_forward, static_argnums=(2, 3))
    out = fwd(points, params, KNN, DIL, features)
    out = jax.block_until_ready(out)
    assert out.shape == (B, MLP_MERGE[2], N), out.shape

    # Correctness check against a plain-JAX reference that mirrors the
    # kernel's bf16-operand / f32-accumulate numerics (differences come only
    # from summation order, so the tolerance can be tight).
    idx, idx_d = knn_indices_both(points, KNN, DIL)
    x1 = get_edge_features_bkcn(features, idx)
    x2 = get_edge_features_bkcn(features, idx_d)
    ref = jax.block_until_ready(_ref_forward(x1, x2, params))
    max_err = float(jnp.max(jnp.abs(out - ref)))
    assert jnp.allclose(out, ref, atol=1e-3, rtol=1e-3), max_err

    print("KERNEL_OK")
</pallas_src>

<mosaic_0001>
module attributes {stable_mosaic.version = 11 : i64} {
  func.func @_decoder_kernel(%arg0: i32, %arg1: i32, %arg2: memref<1x8x3x128xbf16, #tpu.memory_space<vmem>>, %arg3: memref<1x8x3x128xbf16, #tpu.memory_space<vmem>>, %arg4: memref<16x3xbf16, #tpu.memory_space<vmem>>, %arg5: memref<16x1xf32, #tpu.memory_space<vmem>>, %arg6: memref<32x16xbf16, #tpu.memory_space<vmem>>, %arg7: memref<32x1xf32, #tpu.memory_space<vmem>>, %arg8: memref<32x32xbf16, #tpu.memory_space<vmem>>, %arg9: memref<32x1xf32, #tpu.memory_space<vmem>>, %arg10: memref<16x3xbf16, #tpu.memory_space<vmem>>, %arg11: memref<16x1xf32, #tpu.memory_space<vmem>>, %arg12: memref<32x16xbf16, #tpu.memory_space<vmem>>, %arg13: memref<32x1xf32, #tpu.memory_space<vmem>>, %arg14: memref<32x32xbf16, #tpu.memory_space<vmem>>, %arg15: memref<32x1xf32, #tpu.memory_space<vmem>>, %arg16: memref<64x32xbf16, #tpu.memory_space<vmem>>, %arg17: memref<64x32xbf16, #tpu.memory_space<vmem>>, %arg18: memref<64x1xf32, #tpu.memory_space<vmem>>, %arg19: memref<128x64xbf16, #tpu.memory_space<vmem>>, %arg20: memref<128x1xf32, #tpu.memory_space<vmem>>, %arg21: memref<128x128xbf16, #tpu.memory_space<vmem>>, %arg22: memref<128x1xf32, #tpu.memory_space<vmem>>, %arg23: memref<1x128x128xf32, #tpu.memory_space<vmem>>) attributes {dimension_semantics = [#tpu.dimension_semantics<parallel>, #tpu.dimension_semantics<parallel>], iteration_bounds = array<i64: 2, 2>, scalar_prefetch = 0 : i64, scratch_operands = 0 : i64, tpu.core_type = #tpu.core_type<tc>, window_params = [{transform_indices = @transform_0, window_bounds = array<i64: 1, 8, 3, 128>}, {transform_indices = @transform_1, window_bounds = array<i64: 1, 8, 3, 128>}, {pipeline_mode = #tpu.pipeline_mode<synchronous>, transform_indices = @transform_2, window_bounds = array<i64: 16, 3>}, {pipeline_mode = #tpu.pipeline_mode<synchronous>, transform_indices = @transform_3, window_bounds = array<i64: 16, 1>}, {pipeline_mode = #tpu.pipeline_mode<synchronous>, transform_indices = @transform_4, window_bounds = array<i64: 32, 16>}, {pipeline_mode = #tpu.pipeline_mode<synchronous>, transform_indices = @transform_5, window_bounds = array<i64: 32, 1>}, {pipeline_mode = #tpu.pipeline_mode<synchronous>, transform_indices = @transform_6, window_bounds = array<i64: 32, 32>}, {pipeline_mode = #tpu.pipeline_mode<synchronous>, transform_indices = @transform_7, window_bounds = array<i64: 32, 1>}, {pipeline_mode = #tpu.pipeline_mode<synchronous>, transform_indices = @transform_8, window_bounds = array<i64: 16, 3>}, {pipeline_mode = #tpu.pipeline_mode<synchronous>, transform_indices = @transform_9, window_bounds = array<i64: 16, 1>}, {pipeline_mode = #tpu.pipeline_mode<synchronous>, transform_indices = @transform_10, window_bounds = array<i64: 32, 16>}, {pipeline_mode = #tpu.pipeline_mode<synchronous>, transform_indices = @transform_11, window_bounds = array<i64: 32, 1>}, {pipeline_mode = #tpu.pipeline_mode<synchronous>, transform_indices = @transform_12, window_bounds = array<i64: 32, 32>}, {pipeline_mode = #tpu.pipeline_mode<synchronous>, transform_indices = @transform_13, window_bounds = array<i64: 32, 1>}, {pipeline_mode = #tpu.pipeline_mode<synchronous>, transform_indices = @transform_14, window_bounds = array<i64: 64, 32>}, {pipeline_mode = #tpu.pipeline_mode<synchronous>, transform_indices = @transform_15, window_bounds = array<i64: 64, 32>}, {pipeline_mode = #tpu.pipeline_mode<synchronous>, transform_indices = @transform_16, window_bounds = array<i64: 64, 1>}, {pipeline_mode = #tpu.pipeline_mode<synchronous>, transform_indices = @transform_17, window_bounds = array<i64: 128, 64>}, {pipeline_mode = #tpu.pipeline_mode<synchronous>, transform_indices = @transform_18, window_bounds = array<i64: 128, 1>}, {pipeline_mode = #tpu.pipeline_mode<synchronous>, transform_indices = @transform_19, window_bounds = array<i64: 128, 128>}, {pipeline_mode = #tpu.pipeline_mode<synchronous>, transform_indices = @transform_20, window_bounds = array<i64: 128, 1>}, {transform_indices = @transform_21, window_bounds = array<i64: 1, 128, 128>}]} {
    %c0 = arith.constant 0 : index
    %c0_0 = arith.constant 0 : index
    %0 = vector.load %arg4[%c0, %c0_0] : memref<16x3xbf16, #tpu.memory_space<vmem>>, vector<16x3xbf16>
    %c0_1 = arith.constant 0 : index
    %c0_2 = arith.constant 0 : index
    %1 = vector.load %arg6[%c0_1, %c0_2] : memref<32x16xbf16, #tpu.memory_space<vmem>>, vector<32x16xbf16>
    %c0_3 = arith.constant 0 : index
    %c0_4 = arith.constant 0 : index
    %2 = vector.load %arg8[%c0_3, %c0_4] : memref<32x32xbf16, #tpu.memory_space<vmem>>, vector<32x32xbf16>
    %c0_5 = arith.constant 0 : index
    %c0_6 = arith.constant 0 : index
    %3 = vector.load %arg5[%c0_5, %c0_6] : memref<16x1xf32, #tpu.memory_space<vmem>>, vector<16x1xf32>
    %4 = vector.shape_cast %3 : vector<16x1xf32> to vector<16x1xf32>
    %5 = vector.broadcast %4 : vector<16x1xf32> to vector<16x128xf32>
    %c0_7 = arith.constant 0 : index
    %c0_8 = arith.constant 0 : index
    %6 = vector.load %arg7[%c0_7, %c0_8] : memref<32x1xf32, #tpu.memory_space<vmem>>, vector<32x1xf32>
    %7 = vector.shape_cast %6 : vector<32x1xf32> to vector<32x1xf32>
    %8 = vector.broadcast %7 : vector<32x1xf32> to vector<32x128xf32>
    %c0_9 = arith.constant 0 : index
    %c0_10 = arith.constant 0 : index
    %9 = vector.load %arg9[%c0_9, %c0_10] : memref<32x1xf32, #tpu.memory_space<vmem>>, vector<32x1xf32>
    %10 = vector.shape_cast %9 : vector<32x1xf32> to vector<32x1xf32>
    %11 = vector.broadcast %10 : vector<32x1xf32> to vector<32x128xf32>
    %c0_11 = arith.constant 0 : index
    %c0_12 = arith.constant 0 : index
    %c0_13 = arith.constant 0 : index
    %c0_14 = arith.constant 0 : index
    %12 = vector.load %arg2[%c0_11, %c0_12, %c0_13, %c0_14] : memref<1x8x3x128xbf16, #tpu.memory_space<vmem>>, vector<1x1x3x128xbf16>
    %13 = vector.shape_cast %12 : vector<1x1x3x128xbf16> to vector<3x128xbf16>
    %cst = arith.constant dense<0.000000e+00> : vector<16x128xf32>
    %14 = tpu.matmul %0, %13, %cst {dimension_numbers = #tpu.dot_dimension_numbers<[1], [0], [0], [1], [0, 0, 1, 1], [], []>} : vector<16x3xbf16>, vector<3x128xbf16>, vector<16x128xf32> -> vector<16x128xf32>
    %15 = arith.addf %14, %5 : vector<16x128xf32>
    %cst_15 = arith.constant 0.000000e+00 : f32
    %16 = vector.broadcast %cst_15 : f32 to vector<16x128xf32>
    %17 = arith.maximumf %15, %16 : vector<16x128xf32>
    %18 = arith.truncf %17 : vector<16x128xf32> to vector<16x128xbf16>
    %cst_16 = arith.constant dense<0.000000e+00> : vector<32x128xf32>
    %19 = tpu.matmul %1, %18, %cst_16 {dimension_numbers = #tpu.dot_dimension_numbers<[1], [0], [0], [1], [0, 0, 1, 1], [], []>} : vector<32x16xbf16>, vector<16x128xbf16>, vector<32x128xf32> -> vector<32x128xf32>
    %20 = arith.addf %19, %8 : vector<32x128xf32>
    %cst_17 = arith.constant 0.000000e+00 : f32
    %21 = vector.broadcast %cst_17 : f32 to vector<32x128xf32>
    %22 = arith.maximumf %20, %21 : vector<32x128xf32>
    %23 = arith.truncf %22 : vector<32x128xf32> to vector<32x128xbf16>
    %cst_18 = arith.constant dense<0.000000e+00> : vector<32x128xf32>
    %24 = tpu.matmul %2, %23, %cst_18 {dimension_numbers = #tpu.dot_dimension_numbers<[1], [0], [0], [1], [0, 0, 1, 1], [], []>} : vector<32x32xbf16>, vector<32x128xbf16>, vector<32x128xf32> -> vector<32x128xf32>
    %25 = arith.addf %24, %11 : vector<32x128xf32>
    %c0_19 = arith.constant 0 : index
    %c1 = arith.constant 1 : index
    %c0_20 = arith.constant 0 : index
    %c0_21 = arith.constant 0 : index
    %26 = vector.load %arg2[%c0_19, %c1, %c0_20, %c0_21] : memref<1x8x3x128xbf16, #tpu.memory_space<vmem>>, vector<1x1x3x128xbf16>
    %27 = vector.shape_cast %26 : vector<1x1x3x128xbf16> to vector<3x128xbf16>
    %cst_22 = arith.constant dense<0.000000e+00> : vector<16x128xf32>
    %28 = tpu.matmul %0, %27, %cst_22 {dimension_numbers = #tpu.dot_dimension_numbers<[1], [0], [0], [1], [0, 0, 1, 1], [], []>} : vector<16x3xbf16>, vector<3x128xbf16>, vector<16x128xf32> -> vector<16x128xf32>
    %29 = arith.addf %28, %5 : vector<16x128xf32>
    %cst_23 = arith.constant 0.000000e+00 : f32
    %30 = vector.broadcast %cst_23 : f32 to vector<16x128xf32>
    %31 = arith.maximumf %29, %30 : vector<16x128xf32>
    %32 = arith.truncf %31 : vector<16x128xf32> to vector<16x128xbf16>
    %cst_24 = arith.constant dense<0.000000e+00> : vector<32x128xf32>
    %33 = tpu.matmul %1, %32, %cst_24 {dimension_numbers = #tpu.dot_dimension_numbers<[1], [0], [0], [1], [0, 0, 1, 1], [], []>} : vector<32x16xbf16>, vector<16x128xbf16>, vector<32x128xf32> -> vector<32x128xf32>
    %34 = arith.addf %33, %8 : vector<32x128xf32>
    %cst_25 = arith.constant 0.000000e+00 : f32
    %35 = vector.broadcast %cst_25 : f32 to vector<32x128xf32>
    %36 = arith.maximumf %34, %35 : vector<32x128xf32>
    %37 = arith.truncf %36 : vector<32x128xf32> to vector<32x128xbf16>
    %cst_26 = arith.constant dense<0.000000e+00> : vector<32x128xf32>
    %38 = tpu.matmul %2, %37, %cst_26 {dimension_numbers = #tpu.dot_dimension_numbers<[1], [0], [0], [1], [0, 0, 1, 1], [], []>} : vector<32x32xbf16>, vector<32x128xbf16>, vector<32x128xf32> -> vector<32x128xf32>
    %39 = arith.addf %38, %11 : vector<32x128xf32>
    %40 = arith.maximumf %25, %39 : vector<32x128xf32>
    %c0_27 = arith.constant 0 : index
    %c2 = arith.constant 2 : index
    %c0_28 = arith.constant 0 : index
    %c0_29 = arith.constant 0 : index
    %41 = vector.load %arg2[%c0_27, %c2, %c0_28, %c0_29] : memref<1x8x3x128xbf16, #tpu.memory_space<vmem>>, vector<1x1x3x128xbf16>
    %42 = vector.shape_cast %41 : vector<1x1x3x128xbf16> to vector<3x128xbf16>
    %cst_30 = arith.constant dense<0.000000e+00> : vector<16x128xf32>
    %43 = tpu.matmul %0, %42, %cst_30 {dimension_numbers = #tpu.dot_dimension_numbers<[1], [0], [0], [1], [0, 0, 1, 1], [], []>} : vector<16x3xbf16>, vector<3x128xbf16>, vector<16x128xf32> -> vector<16x128xf32>
    %44 = arith.addf %43, %5 : vector<16x128xf32>
    %cst_31 = arith.constant 0.000000e+00 : f32
    %45 = vector.broadcast %cst_31 : f32 to vector<16x128xf32>
    %46 = arith.maximumf %44, %45 : vector<16x128xf32>
    %47 = arith.truncf %46 : vector<16x128xf32> to vector<16x128xbf16>
    %cst_32 = arith.constant dense<0.000000e+00> : vector<32x128xf32>
    %48 = tpu.matmul %1, %47, %cst_32 {dimension_numbers = #tpu.dot_dimension_numbers<[1], [0], [0], [1], [0, 0, 1, 1], [], []>} : vector<32x16xbf16>, vector<16x128xbf16>, vector<32x128xf32> -> vector<32x128xf32>
    %49 = arith.addf %48, %8 : vector<32x128xf32>
    %cst_33 = arith.constant 0.000000e+00 : f32
    %50 = vector.broadcast %cst_33 : f32 to vector<32x128xf32>
    %51 = arith.maximumf %49, %50 : vector<32x128xf32>
    %52 = arith.truncf %51 : vector<32x128xf32> to vector<32x128xbf16>
    %cst_34 = arith.constant dense<0.000000e+00> : vector<32x128xf32>
    %53 = tpu.matmul %2, %52, %cst_34 {dimension_numbers = #tpu.dot_dimension_numbers<[1], [0], [0], [1], [0, 0, 1, 1], [], []>} : vector<32x32xbf16>, vector<32x128xbf16>, vector<32x128xf32> -> vector<32x128xf32>
    %54 = arith.addf %53, %11 : vector<32x128xf32>
    %55 = arith.maximumf %40, %54 : vector<32x128xf32>
    %c0_35 = arith.constant 0 : index
    %c3 = arith.constant 3 : index
    %c0_36 = arith.constant 0 : index
    %c0_37 = arith.constant 0 : index
    %56 = vector.load %arg2[%c0_35, %c3, %c0_36, %c0_37] : memref<1x8x3x128xbf16, #tpu.memory_space<vmem>>, vector<1x1x3x128xbf16>
    %57 = vector.shape_cast %56 : vector<1x1x3x128xbf16> to vector<3x128xbf16>
    %cst_38 = arith.constant dense<0.000000e+00> : vector<16x128xf32>
    %58 = tpu.matmul %0, %57, %cst_38 {dimension_numbers = #tpu.dot_dimension_numbers<[1], [0], [0], [1], [0, 0, 1, 1], [], []>} : vector<16x3xbf16>, vector<3x128xbf16>, vector<16x128xf32> -> vector<16x128xf32>
    %59 = arith.addf %58, %5 : vector<16x128xf32>
    %cst_39 = arith.constant 0.000000e+00 : f32
    %60 = vector.broadcast %cst_39 : f32 to vector<16x128xf32>
    %61 = arith.maximumf %59, %60 : vector<16x128xf32>
    %62 = arith.truncf %61 : vector<16x128xf32> to vector<16x128xbf16>
    %cst_40 = arith.constant dense<0.000000e+00> : vector<32x128xf32>
    %63 = tpu.matmul %1, %62, %cst_40 {dimension_numbers = #tpu.dot_dimension_numbers<[1], [0], [0], [1], [0, 0, 1, 1], [], []>} : vector<32x16xbf16>, vector<16x128xbf16>, vector<32x128xf32> -> vector<32x128xf32>
    %64 = arith.addf %63, %8 : vector<32x128xf32>
    %cst_41 = arith.constant 0.000000e+00 : f32
    %65 = vector.broadcast %cst_41 : f32 to vector<32x128xf32>
    %66 = arith.maximumf %64, %65 : vector<32x128xf32>
    %67 = arith.truncf %66 : vector<32x128xf32> to vector<32x128xbf16>
    %cst_42 = arith.constant dense<0.000000e+00> : vector<32x128xf32>
    %68 = tpu.matmul %2, %67, %cst_42 {dimension_numbers = #tpu.dot_dimension_numbers<[1], [0], [0], [1], [0, 0, 1, 1], [], []>} : vector<32x32xbf16>, vector<32x128xbf16>, vector<32x128xf32> -> vector<32x128xf32>
    %69 = arith.addf %68, %11 : vector<32x128xf32>
    %70 = arith.maximumf %55, %69 : vector<32x128xf32>
    %c0_43 = arith.constant 0 : index
    %c4 = arith.constant 4 : index
    %c0_44 = arith.constant 0 : index
    %c0_45 = arith.constant 0 : index
    %71 = vector.load %arg2[%c0_43, %c4, %c0_44, %c0_45] : memref<1x8x3x128xbf16, #tpu.memory_space<vmem>>, vector<1x1x3x128xbf16>
    %72 = vector.shape_cast %71 : vector<1x1x3x128xbf16> to vector<3x128xbf16>
    %cst_46 = arith.constant dense<0.000000e+00> : vector<16x128xf32>
    %73 = tpu.matmul %0, %72, %cst_46 {dimension_numbers = #tpu.dot_dimension_numbers<[1], [0], [0], [1], [0, 0, 1, 1], [], []>} : vector<16x3xbf16>, vector<3x128xbf16>, vector<16x128xf32> -> vector<16x128xf32>
    %74 = arith.addf %73, %5 : vector<16x128xf32>
    %cst_47 = arith.constant 0.000000e+00 : f32
    %75 = vector.broadcast %cst_47 : f32 to vector<16x128xf32>
    %76 = arith.maximumf %74, %75 : vector<16x128xf32>
    %77 = arith.truncf %76 : vector<16x128xf32> to vector<16x128xbf16>
    %cst_48 = arith.constant dense<0.000000e+00> : vector<32x128xf32>
    %78 = tpu.matmul %1, %77, %cst_48 {dimension_numbers = #tpu.dot_dimension_numbers<[1], [0], [0], [1], [0, 0, 1, 1], [], []>} : vector<32x16xbf16>, vector<16x128xbf16>, vector<32x128xf32> -> vector<32x128xf32>
    %79 = arith.addf %78, %8 : vector<32x128xf32>
    %cst_49 = arith.constant 0.000000e+00 : f32
    %80 = vector.broadcast %cst_49 : f32 to vector<32x128xf32>
    %81 = arith.maximumf %79, %80 : vector<32x128xf32>
    %82 = arith.truncf %81 : vector<32x128xf32> to vector<32x128xbf16>
    %cst_50 = arith.constant dense<0.000000e+00> : vector<32x128xf32>
    %83 = tpu.matmul %2, %82, %cst_50 {dimension_numbers = #tpu.dot_dimension_numbers<[1], [0], [0], [1], [0, 0, 1, 1], [], []>} : vector<32x32xbf16>, vector<32x128xbf16>, vector<32x128xf32> -> vector<32x128xf32>
    %84 = arith.addf %83, %11 : vector<32x128xf32>
    %85 = arith.maximumf %70, %84 : vector<32x128xf32>
    %c0_51 = arith.constant 0 : index
    %c5 = arith.constant 5 : index
    %c0_52 = arith.constant 0 : index
    %c0_53 = arith.constant 0 : index
    %86 = vector.load %arg2[%c0_51, %c5, %c0_52, %c0_53] : memref<1x8x3x128xbf16, #tpu.memory_space<vmem>>, vector<1x1x3x128xbf16>
    %87 = vector.shape_cast %86 : vector<1x1x3x128xbf16> to vector<3x128xbf16>
    %cst_54 = arith.constant dense<0.000000e+00> : vector<16x128xf32>
    %88 = tpu.matmul %0, %87, %cst_54 {dimension_numbers = #tpu.dot_dimension_numbers<[1], [0], [0], [1], [0, 0, 1, 1], [], []>} : vector<16x3xbf16>, vector<3x128xbf16>, vector<16x128xf32> -> vector<16x128xf32>
    %89 = arith.addf %88, %5 : vector<16x128xf32>
    %cst_55 = arith.constant 0.000000e+00 : f32
    %90 = vector.broadcast %cst_55 : f32 to vector<16x128xf32>
    %91 = arith.maximumf %89, %90 : vector<16x128xf32>
    %92 = arith.truncf %91 : vector<16x128xf32> to vector<16x128xbf16>
    %cst_56 = arith.constant dense<0.000000e+00> : vector<32x128xf32>
    %93 = tpu.matmul %1, %92, %cst_56 {dimension_numbers = #tpu.dot_dimension_numbers<[1], [0], [0], [1], [0, 0, 1, 1], [], []>} : vector<32x16xbf16>, vector<16x128xbf16>, vector<32x128xf32> -> vector<32x128xf32>
    %94 = arith.addf %93, %8 : vector<32x128xf32>
    %cst_57 = arith.constant 0.000000e+00 : f32
    %95 = vector.broadcast %cst_57 : f32 to vector<32x128xf32>
    %96 = arith.maximumf %94, %95 : vector<32x128xf32>
    %97 = arith.truncf %96 : vector<32x128xf32> to vector<32x128xbf16>
    %cst_58 = arith.constant dense<0.000000e+00> : vector<32x128xf32>
    %98 = tpu.matmul %2, %97, %cst_58 {dimension_numbers = #tpu.dot_dimension_numbers<[1], [0], [0], [1], [0, 0, 1, 1], [], []>} : vector<32x32xbf16>, vector<32x128xbf16>, vector<32x128xf32> -> vector<32x128xf32>
    %99 = arith.addf %98, %11 : vector<32x128xf32>
    %100 = arith.maximumf %85, %99 : vector<32x128xf32>
    %c0_59 = arith.constant 0 : index
    %c6 = arith.constant 6 : index
    %c0_60 = arith.constant 0 : index
    %c0_61 = arith.constant 0 : index
    %101 = vector.load %arg2[%c0_59, %c6, %c0_60, %c0_61] : memref<1x8x3x128xbf16, #tpu.memory_space<vmem>>, vector<1x1x3x128xbf16>
    %102 = vector.shape_cast %101 : vector<1x1x3x128xbf16> to vector<3x128xbf16>
    %cst_62 = arith.constant dense<0.000000e+00> : vector<16x128xf32>
    %103 = tpu.matmul %0, %102, %cst_62 {dimension_numbers = #tpu.dot_dimension_numbers<[1], [0], [0], [1], [0, 0, 1, 1], [], []>} : vector<16x3xbf16>, vector<3x128xbf16>, vector<16x128xf32> -> vector<16x128xf32>
    %104 = arith.addf %103, %5 : vector<16x128xf32>
    %cst_63 = arith.constant 0.000000e+00 : f32
    %105 = vector.broadcast %cst_63 : f32 to vector<16x128xf32>
    %106 = arith.maximumf %104, %105 : vector<16x128xf32>
    %107 = arith.truncf %106 : vector<16x128xf32> to vector<16x128xbf16>
    %cst_64 = arith.constant dense<0.000000e+00> : vector<32x128xf32>
    %108 = tpu.matmul %1, %107, %cst_64 {dimension_numbers = #tpu.dot_dimension_numbers<[1], [0], [0], [1], [0, 0, 1, 1], [], []>} : vector<32x16xbf16>, vector<16x128xbf16>, vector<32x128xf32> -> vector<32x128xf32>
    %109 = arith.addf %108, %8 : vector<32x128xf32>
    %cst_65 = arith.constant 0.000000e+00 : f32
    %110 = vector.broadcast %cst_65 : f32 to vector<32x128xf32>
    %111 = arith.maximumf %109, %110 : vector<32x128xf32>
    %112 = arith.truncf %111 : vector<32x128xf32> to vector<32x128xbf16>
    %cst_66 = arith.constant dense<0.000000e+00> : vector<32x128xf32>
    %113 = tpu.matmul %2, %112, %cst_66 {dimension_numbers = #tpu.dot_dimension_numbers<[1], [0], [0], [1], [0, 0, 1, 1], [], []>} : vector<32x32xbf16>, vector<32x128xbf16>, vector<32x128xf32> -> vector<32x128xf32>
    %114 = arith.addf %113, %11 : vector<32x128xf32>
    %115 = arith.maximumf %100, %114 : vector<32x128xf32>
    %c0_67 = arith.constant 0 : index
    %c7 = arith.constant 7 : index
    %c0_68 = arith.constant 0 : index
    %c0_69 = arith.constant 0 : index
    %116 = vector.load %arg2[%c0_67, %c7, %c0_68, %c0_69] : memref<1x8x3x128xbf16, #tpu.memory_space<vmem>>, vector<1x1x3x128xbf16>
    %117 = vector.shape_cast %116 : vector<1x1x3x128xbf16> to vector<3x128xbf16>
    %cst_70 = arith.constant dense<0.000000e+00> : vector<16x128xf32>
    %118 = tpu.matmul %0, %117, %cst_70 {dimension_numbers = #tpu.dot_dimension_numbers<[1], [0], [0], [1], [0, 0, 1, 1], [], []>} : vector<16x3xbf16>, vector<3x128xbf16>, vector<16x128xf32> -> vector<16x128xf32>
    %119 = arith.addf %118, %5 : vector<16x128xf32>
    %cst_71 = arith.constant 0.000000e+00 : f32
    %120 = vector.broadcast %cst_71 : f32 to vector<16x128xf32>
    %121 = arith.maximumf %119, %120 : vector<16x128xf32>
    %122 = arith.truncf %121 : vector<16x128xf32> to vector<16x128xbf16>
    %cst_72 = arith.constant dense<0.000000e+00> : vector<32x128xf32>
    %123 = tpu.matmul %1, %122, %cst_72 {dimension_numbers = #tpu.dot_dimension_numbers<[1], [0], [0], [1], [0, 0, 1, 1], [], []>} : vector<32x16xbf16>, vector<16x128xbf16>, vector<32x128xf32> -> vector<32x128xf32>
    %124 = arith.addf %123, %8 : vector<32x128xf32>
    %cst_73 = arith.constant 0.000000e+00 : f32
    %125 = vector.broadcast %cst_73 : f32 to vector<32x128xf32>
    %126 = arith.maximumf %124, %125 : vector<32x128xf32>
    %127 = arith.truncf %126 : vector<32x128xf32> to vector<32x128xbf16>
    %cst_74 = arith.constant dense<0.000000e+00> : vector<32x128xf32>
    %128 = tpu.matmul %2, %127, %cst_74 {dimension_numbers = #tpu.dot_dimension_numbers<[1], [0], [0], [1], [0, 0, 1, 1], [], []>} : vector<32x32xbf16>, vector<32x128xbf16>, vector<32x128xf32> -> vector<32x128xf32>
    %129 = arith.addf %128, %11 : vector<32x128xf32>
    %130 = arith.maximumf %115, %129 : vector<32x128xf32>
    %131 = arith.truncf %130 : vector<32x128xf32> to vector<32x128xbf16>
    %c0_75 = arith.constant 0 : index
    %c0_76 = arith.constant 0 : index
    %132 = vector.load %arg10[%c0_75, %c0_76] : memref<16x3xbf16, #tpu.memory_space<vmem>>, vector<16x3xbf16>
    %c0_77 = arith.constant 0 : index
    %c0_78 = arith.constant 0 : index
    %133 = vector.load %arg12[%c0_77, %c0_78] : memref<32x16xbf16, #tpu.memory_space<vmem>>, vector<32x16xbf16>
    %c0_79 = arith.constant 0 : index
    %c0_80 = arith.constant 0 : index
    %134 = vector.load %arg14[%c0_79, %c0_80] : memref<32x32xbf16, #tpu.memory_space<vmem>>, vector<32x32xbf16>
    %c0_81 = arith.constant 0 : index
    %c0_82 = arith.constant 0 : index
    %135 = vector.load %arg11[%c0_81, %c0_82] : memref<16x1xf32, #tpu.memory_space<vmem>>, vector<16x1xf32>
    %136 = vector.shape_cast %135 : vector<16x1xf32> to vector<16x1xf32>
    %137 = vector.broadcast %136 : vector<16x1xf32> to vector<16x128xf32>
    %c0_83 = arith.constant 0 : index
    %c0_84 = arith.constant 0 : index
    %138 = vector.load %arg13[%c0_83, %c0_84] : memref<32x1xf32, #tpu.memory_space<vmem>>, vector<32x1xf32>
    %139 = vector.shape_cast %138 : vector<32x1xf32> to vector<32x1xf32>
    %140 = vector.broadcast %139 : vector<32x1xf32> to vector<32x128xf32>
    %c0_85 = arith.constant 0 : index
    %c0_86 = arith.constant 0 : index
    %141 = vector.load %arg15[%c0_85, %c0_86] : memref<32x1xf32, #tpu.memory_space<vmem>>, vector<32x1xf32>
    %142 = vector.shape_cast %141 : vector<32x1xf32> to vector<32x1xf32>
    %143 = vector.broadcast %142 : vector<32x1xf32> to vector<32x128xf32>
    %c0_87 = arith.constant 0 : index
    %c0_88 = arith.constant 0 : index
    %c0_89 = arith.constant 0 : index
    %c0_90 = arith.constant 0 : index
    %144 = vector.load %arg3[%c0_87, %c0_88, %c0_89, %c0_90] : memref<1x8x3x128xbf16, #tpu.memory_space<vmem>>, vector<1x1x3x128xbf16>
    %145 = vector.shape_cast %144 : vector<1x1x3x128xbf16> to vector<3x128xbf16>
    %cst_91 = arith.constant dense<0.000000e+00> : vector<16x128xf32>
    %146 = tpu.matmul %132, %145, %cst_91 {dimension_numbers = #tpu.dot_dimension_numbers<[1], [0], [0], [1], [0, 0, 1, 1], [], []>} : vector<16x3xbf16>, vector<3x128xbf16>, vector<16x128xf32> -> vector<16x128xf32>
    %147 = arith.addf %146, %137 : vector<16x128xf32>
    %cst_92 = arith.constant 0.000000e+00 : f32
    %148 = vector.broadcast %cst_92 : f32 to vector<16x128xf32>
    %149 = arith.maximumf %147, %148 : vector<16x128xf32>
    %150 = arith.truncf %149 : vector<16x128xf32> to vector<16x128xbf16>
    %cst_93 = arith.constant dense<0.000000e+00> : vector<32x128xf32>
    %151 = tpu.matmul %133, %150, %cst_93 {dimension_numbers = #tpu.dot_dimension_numbers<[1], [0], [0], [1], [0, 0, 1, 1], [], []>} : vector<32x16xbf16>, vector<16x128xbf16>, vector<32x128xf32> -> vector<32x128xf32>
    %152 = arith.addf %151, %140 : vector<32x128xf32>
    %cst_94 = arith.constant 0.000000e+00 : f32
    %153 = vector.broadcast %cst_94 : f32 to vector<32x128xf32>
    %154 = arith.maximumf %152, %153 : vector<32x128xf32>
    %155 = arith.truncf %154 : vector<32x128xf32> to vector<32x128xbf16>
    %cst_95 = arith.constant dense<0.000000e+00> : vector<32x128xf32>
    %156 = tpu.matmul %134, %155, %cst_95 {dimension_numbers = #tpu.dot_dimension_numbers<[1], [0], [0], [1], [0, 0, 1, 1], [], []>} : vector<32x32xbf16>, vector<32x128xbf16>, vector<32x128xf32> -> vector<32x128xf32>
    %157 = arith.addf %156, %143 : vector<32x128xf32>
    %c0_96 = arith.constant 0 : index
    %c1_97 = arith.constant 1 : index
    %c0_98 = arith.constant 0 : index
    %c0_99 = arith.constant 0 : index
    %158 = vector.load %arg3[%c0_96, %c1_97, %c0_98, %c0_99] : memref<1x8x3x128xbf16, #tpu.memory_space<vmem>>, vector<1x1x3x128xbf16>
    %159 = vector.shape_cast %158 : vector<1x1x3x128xbf16> to vector<3x128xbf16>
    %cst_100 = arith.constant dense<0.000000e+00> : vector<16x128xf32>
    %160 = tpu.matmul %132, %159, %cst_100 {dimension_numbers = #tpu.dot_dimension_numbers<[1], [0], [0], [1], [0, 0, 1, 1], [], []>} : vector<16x3xbf16>, vector<3x128xbf16>, vector<16x128xf32> -> vector<16x128xf32>
    %161 = arith.addf %160, %137 : vector<16x128xf32>
    %cst_101 = arith.constant 0.000000e+00 : f32
    %162 = vector.broadcast %cst_101 : f32 to vector<16x128xf32>
    %163 = arith.maximumf %161, %162 : vector<16x128xf32>
    %164 = arith.truncf %163 : vector<16x128xf32> to vector<16x128xbf16>
    %cst_102 = arith.constant dense<0.000000e+00> : vector<32x128xf32>
    %165 = tpu.matmul %133, %164, %cst_102 {dimension_numbers = #tpu.dot_dimension_numbers<[1], [0], [0], [1], [0, 0, 1, 1], [], []>} : vector<32x16xbf16>, vector<16x128xbf16>, vector<32x128xf32> -> vector<32x128xf32>
    %166 = arith.addf %165, %140 : vector<32x128xf32>
    %cst_103 = arith.constant 0.000000e+00 : f32
    %167 = vector.broadcast %cst_103 : f32 to vector<32x128xf32>
    %168 = arith.maximumf %166, %167 : vector<32x128xf32>
    %169 = arith.truncf %168 : vector<32x128xf32> to vector<32x128xbf16>
    %cst_104 = arith.constant dense<0.000000e+00> : vector<32x128xf32>
    %170 = tpu.matmul %134, %169, %cst_104 {dimension_numbers = #tpu.dot_dimension_numbers<[1], [0], [0], [1], [0, 0, 1, 1], [], []>} : vector<32x32xbf16>, vector<32x128xbf16>, vector<32x128xf32> -> vector<32x128xf32>
    %171 = arith.addf %170, %143 : vector<32x128xf32>
    %172 = arith.maximumf %157, %171 : vector<32x128xf32>
    %c0_105 = arith.constant 0 : index
    %c2_106 = arith.constant 2 : index
    %c0_107 = arith.constant 0 : index
    %c0_108 = arith.constant 0 : index
    %173 = vector.load %arg3[%c0_105, %c2_106, %c0_107, %c0_108] : memref<1x8x3x128xbf16, #tpu.memory_space<vmem>>, vector<1x1x3x128xbf16>
    %174 = vector.shape_cast %173 : vector<1x1x3x128xbf16> to vector<3x128xbf16>
    %cst_109 = arith.constant dense<0.000000e+00> : vector<16x128xf32>
    %175 = tpu.matmul %132, %174, %cst_109 {dimension_numbers = #tpu.dot_dimension_numbers<[1], [0], [0], [1], [0, 0, 1, 1], [], []>} : vector<16x3xbf16>, vector<3x128xbf16>, vector<16x128xf32> -> vector<16x128xf32>
    %176 = arith.addf %175, %137 : vector<16x128xf32>
    %cst_110 = arith.constant 0.000000e+00 : f32
    %177 = vector.broadcast %cst_110 : f32 to vector<16x128xf32>
    %178 = arith.maximumf %176, %177 : vector<16x128xf32>
    %179 = arith.truncf %178 : vector<16x128xf32> to vector<16x128xbf16>
    %cst_111 = arith.constant dense<0.000000e+00> : vector<32x128xf32>
    %180 = tpu.matmul %133, %179, %cst_111 {dimension_numbers = #tpu.dot_dimension_numbers<[1], [0], [0], [1], [0, 0, 1, 1], [], []>} : vector<32x16xbf16>, vector<16x128xbf16>, vector<32x128xf32> -> vector<32x128xf32>
    %181 = arith.addf %180, %140 : vector<32x128xf32>
    %cst_112 = arith.constant 0.000000e+00 : f32
    %182 = vector.broadcast %cst_112 : f32 to vector<32x128xf32>
    %183 = arith.maximumf %181, %182 : vector<32x128xf32>
    %184 = arith.truncf %183 : vector<32x128xf32> to vector<32x128xbf16>
    %cst_113 = arith.constant dense<0.000000e+00> : vector<32x128xf32>
    %185 = tpu.matmul %134, %184, %cst_113 {dimension_numbers = #tpu.dot_dimension_numbers<[1], [0], [0], [1], [0, 0, 1, 1], [], []>} : vector<32x32xbf16>, vector<32x128xbf16>, vector<32x128xf32> -> vector<32x128xf32>
    %186 = arith.addf %185, %143 : vector<32x128xf32>
    %187 = arith.maximumf %172, %186 : vector<32x128xf32>
    %c0_114 = arith.constant 0 : index
    %c3_115 = arith.constant 3 : index
    %c0_116 = arith.constant 0 : index
    %c0_117 = arith.constant 0 : index
    %188 = vector.load %arg3[%c0_114, %c3_115, %c0_116, %c0_117] : memref<1x8x3x128xbf16, #tpu.memory_space<vmem>>, vector<1x1x3x128xbf16>
    %189 = vector.shape_cast %188 : vector<1x1x3x128xbf16> to vector<3x128xbf16>
    %cst_118 = arith.constant dense<0.000000e+00> : vector<16x128xf32>
    %190 = tpu.matmul %132, %189, %cst_118 {dimension_numbers = #tpu.dot_dimension_numbers<[1], [0], [0], [1], [0, 0, 1, 1], [], []>} : vector<16x3xbf16>, vector<3x128xbf16>, vector<16x128xf32> -> vector<16x128xf32>
    %191 = arith.addf %190, %137 : vector<16x128xf32>
    %cst_119 = arith.constant 0.000000e+00 : f32
    %192 = vector.broadcast %cst_119 : f32 to vector<16x128xf32>
    %193 = arith.maximumf %191, %192 : vector<16x128xf32>
    %194 = arith.truncf %193 : vector<16x128xf32> to vector<16x128xbf16>
    %cst_120 = arith.constant dense<0.000000e+00> : vector<32x128xf32>
    %195 = tpu.matmul %133, %194, %cst_120 {dimension_numbers = #tpu.dot_dimension_numbers<[1], [0], [0], [1], [0, 0, 1, 1], [], []>} : vector<32x16xbf16>, vector<16x128xbf16>, vector<32x128xf32> -> vector<32x128xf32>
    %196 = arith.addf %195, %140 : vector<32x128xf32>
    %cst_121 = arith.constant 0.000000e+00 : f32
    %197 = vector.broadcast %cst_121 : f32 to vector<32x128xf32>
    %198 = arith.maximumf %196, %197 : vector<32x128xf32>
    %199 = arith.truncf %198 : vector<32x128xf32> to vector<32x128xbf16>
    %cst_122 = arith.constant dense<0.000000e+00> : vector<32x128xf32>
    %200 = tpu.matmul %134, %199, %cst_122 {dimension_numbers = #tpu.dot_dimension_numbers<[1], [0], [0], [1], [0, 0, 1, 1], [], []>} : vector<32x32xbf16>, vector<32x128xbf16>, vector<32x128xf32> -> vector<32x128xf32>
    %201 = arith.addf %200, %143 : vector<32x128xf32>
    %202 = arith.maximumf %187, %201 : vector<32x128xf32>
    %c0_123 = arith.constant 0 : index
    %c4_124 = arith.constant 4 : index
    %c0_125 = arith.constant 0 : index
    %c0_126 = arith.constant 0 : index
    %203 = vector.load %arg3[%c0_123, %c4_124, %c0_125, %c0_126] : memref<1x8x3x128xbf16, #tpu.memory_space<vmem>>, vector<1x1x3x128xbf16>
    %204 = vector.shape_cast %203 : vector<1x1x3x128xbf16> to vector<3x128xbf16>
    %cst_127 = arith.constant dense<0.000000e+00> : vector<16x128xf32>
    %205 = tpu.matmul %132, %204, %cst_127 {dimension_numbers = #tpu.dot_dimension_numbers<[1], [0], [0], [1], [0, 0, 1, 1], [], []>} : vector<16x3xbf16>, vector<3x128xbf16>, vector<16x128xf32> -> vector<16x128xf32>
    %206 = arith.addf %205, %137 : vector<16x128xf32>
    %cst_128 = arith.constant 0.000000e+00 : f32
    %207 = vector.broadcast %cst_128 : f32 to vector<16x128xf32>
    %208 = arith.maximumf %206, %207 : vector<16x128xf32>
    %209 = arith.truncf %208 : vector<16x128xf32> to vector<16x128xbf16>
    %cst_129 = arith.constant dense<0.000000e+00> : vector<32x128xf32>
    %210 = tpu.matmul %133, %209, %cst_129 {dimension_numbers = #tpu.dot_dimension_numbers<[1], [0], [0], [1], [0, 0, 1, 1], [], []>} : vector<32x16xbf16>, vector<16x128xbf16>, vector<32x128xf32> -> vector<32x128xf32>
    %211 = arith.addf %210, %140 : vector<32x128xf32>
    %cst_130 = arith.constant 0.000000e+00 : f32
    %212 = vector.broadcast %cst_130 : f32 to vector<32x128xf32>
    %213 = arith.maximumf %211, %212 : vector<32x128xf32>
    %214 = arith.truncf %213 : vector<32x128xf32> to vector<32x128xbf16>
    %cst_131 = arith.constant dense<0.000000e+00> : vector<32x128xf32>
    %215 = tpu.matmul %134, %214, %cst_131 {dimension_numbers = #tpu.dot_dimension_numbers<[1], [0], [0], [1], [0, 0, 1, 1], [], []>} : vector<32x32xbf16>, vector<32x128xbf16>, vector<32x128xf32> -> vector<32x128xf32>
    %216 = arith.addf %215, %143 : vector<32x128xf32>
    %217 = arith.maximumf %202, %216 : vector<32x128xf32>
    %c0_132 = arith.constant 0 : index
    %c5_133 = arith.constant 5 : index
    %c0_134 = arith.constant 0 : index
    %c0_135 = arith.constant 0 : index
    %218 = vector.load %arg3[%c0_132, %c5_133, %c0_134, %c0_135] : memref<1x8x3x128xbf16, #tpu.memory_space<vmem>>, vector<1x1x3x128xbf16>
    %219 = vector.shape_cast %218 : vector<1x1x3x128xbf16> to vector<3x128xbf16>
    %cst_136 = arith.constant dense<0.000000e+00> : vector<16x128xf32>
    %220 = tpu.matmul %132, %219, %cst_136 {dimension_numbers = #tpu.dot_dimension_numbers<[1], [0], [0], [1], [0, 0, 1, 1], [], []>} : vector<16x3xbf16>, vector<3x128xbf16>, vector<16x128xf32> -> vector<16x128xf32>
    %221 = arith.addf %220, %137 : vector<16x128xf32>
    %cst_137 = arith.constant 0.000000e+00 : f32
    %222 = vector.broadcast %cst_137 : f32 to vector<16x128xf32>
    %223 = arith.maximumf %221, %222 : vector<16x128xf32>
    %224 = arith.truncf %223 : vector<16x128xf32> to vector<16x128xbf16>
    %cst_138 = arith.constant dense<0.000000e+00> : vector<32x128xf32>
    %225 = tpu.matmul %133, %224, %cst_138 {dimension_numbers = #tpu.dot_dimension_numbers<[1], [0], [0], [1], [0, 0, 1, 1], [], []>} : vector<32x16xbf16>, vector<16x128xbf16>, vector<32x128xf32> -> vector<32x128xf32>
    %226 = arith.addf %225, %140 : vector<32x128xf32>
    %cst_139 = arith.constant 0.000000e+00 : f32
    %227 = vector.broadcast %cst_139 : f32 to vector<32x128xf32>
    %228 = arith.maximumf %226, %227 : vector<32x128xf32>
    %229 = arith.truncf %228 : vector<32x128xf32> to vector<32x128xbf16>
    %cst_140 = arith.constant dense<0.000000e+00> : vector<32x128xf32>
    %230 = tpu.matmul %134, %229, %cst_140 {dimension_numbers = #tpu.dot_dimension_numbers<[1], [0], [0], [1], [0, 0, 1, 1], [], []>} : vector<32x32xbf16>, vector<32x128xbf16>, vector<32x128xf32> -> vector<32x128xf32>
    %231 = arith.addf %230, %143 : vector<32x128xf32>
    %232 = arith.maximumf %217, %231 : vector<32x128xf32>
    %c0_141 = arith.constant 0 : index
    %c6_142 = arith.constant 6 : index
    %c0_143 = arith.constant 0 : index
    %c0_144 = arith.constant 0 : index
    %233 = vector.load %arg3[%c0_141, %c6_142, %c0_143, %c0_144] : memref<1x8x3x128xbf16, #tpu.memory_space<vmem>>, vector<1x1x3x128xbf16>
    %234 = vector.shape_cast %233 : vector<1x1x3x128xbf16> to vector<3x128xbf16>
    %cst_145 = arith.constant dense<0.000000e+00> : vector<16x128xf32>
    %235 = tpu.matmul %132, %234, %cst_145 {dimension_numbers = #tpu.dot_dimension_numbers<[1], [0], [0], [1], [0, 0, 1, 1], [], []>} : vector<16x3xbf16>, vector<3x128xbf16>, vector<16x128xf32> -> vector<16x128xf32>
    %236 = arith.addf %235, %137 : vector<16x128xf32>
    %cst_146 = arith.constant 0.000000e+00 : f32
    %237 = vector.broadcast %cst_146 : f32 to vector<16x128xf32>
    %238 = arith.maximumf %236, %237 : vector<16x128xf32>
    %239 = arith.truncf %238 : vector<16x128xf32> to vector<16x128xbf16>
    %cst_147 = arith.constant dense<0.000000e+00> : vector<32x128xf32>
    %240 = tpu.matmul %133, %239, %cst_147 {dimension_numbers = #tpu.dot_dimension_numbers<[1], [0], [0], [1], [0, 0, 1, 1], [], []>} : vector<32x16xbf16>, vector<16x128xbf16>, vector<32x128xf32> -> vector<32x128xf32>
    %241 = arith.addf %240, %140 : vector<32x128xf32>
    %cst_148 = arith.constant 0.000000e+00 : f32
    %242 = vector.broadcast %cst_148 : f32 to vector<32x128xf32>
    %243 = arith.maximumf %241, %242 : vector<32x128xf32>
    %244 = arith.truncf %243 : vector<32x128xf32> to vector<32x128xbf16>
    %cst_149 = arith.constant dense<0.000000e+00> : vector<32x128xf32>
    %245 = tpu.matmul %134, %244, %cst_149 {dimension_numbers = #tpu.dot_dimension_numbers<[1], [0], [0], [1], [0, 0, 1, 1], [], []>} : vector<32x32xbf16>, vector<32x128xbf16>, vector<32x128xf32> -> vector<32x128xf32>
    %246 = arith.addf %245, %143 : vector<32x128xf32>
    %247 = arith.maximumf %232, %246 : vector<32x128xf32>
    %c0_150 = arith.constant 0 : index
    %c7_151 = arith.constant 7 : index
    %c0_152 = arith.constant 0 : index
    %c0_153 = arith.constant 0 : index
    %248 = vector.load %arg3[%c0_150, %c7_151, %c0_152, %c0_153] : memref<1x8x3x128xbf16, #tpu.memory_space<vmem>>, vector<1x1x3x128xbf16>
    %249 = vector.shape_cast %248 : vector<1x1x3x128xbf16> to vector<3x128xbf16>
    %cst_154 = arith.constant dense<0.000000e+00> : vector<16x128xf32>
    %250 = tpu.matmul %132, %249, %cst_154 {dimension_numbers = #tpu.dot_dimension_numbers<[1], [0], [0], [1], [0, 0, 1, 1], [], []>} : vector<16x3xbf16>, vector<3x128xbf16>, vector<16x128xf32> -> vector<16x128xf32>
    %251 = arith.addf %250, %137 : vector<16x128xf32>
    %cst_155 = arith.constant 0.000000e+00 : f32
    %252 = vector.broadcast %cst_155 : f32 to vector<16x128xf32>
    %253 = arith.maximumf %251, %252 : vector<16x128xf32>
    %254 = arith.truncf %253 : vector<16x128xf32> to vector<16x128xbf16>
    %cst_156 = arith.constant dense<0.000000e+00> : vector<32x128xf32>
    %255 = tpu.matmul %133, %254, %cst_156 {dimension_numbers = #tpu.dot_dimension_numbers<[1], [0], [0], [1], [0, 0, 1, 1], [], []>} : vector<32x16xbf16>, vector<16x128xbf16>, vector<32x128xf32> -> vector<32x128xf32>
    %256 = arith.addf %255, %140 : vector<32x128xf32>
    %cst_157 = arith.constant 0.000000e+00 : f32
    %257 = vector.broadcast %cst_157 : f32 to vector<32x128xf32>
    %258 = arith.maximumf %256, %257 : vector<32x128xf32>
    %259 = arith.truncf %258 : vector<32x128xf32> to vector<32x128xbf16>
    %cst_158 = arith.constant dense<0.000000e+00> : vector<32x128xf32>
    %260 = tpu.matmul %134, %259, %cst_158 {dimension_numbers = #tpu.dot_dimension_numbers<[1], [0], [0], [1], [0, 0, 1, 1], [], []>} : vector<32x32xbf16>, vector<32x128xbf16>, vector<32x128xf32> -> vector<32x128xf32>
    %261 = arith.addf %260, %143 : vector<32x128xf32>
    %262 = arith.maximumf %247, %261 : vector<32x128xf32>
    %263 = arith.truncf %262 : vector<32x128xf32> to vector<32x128xbf16>
    %c0_159 = arith.constant 0 : index
    %c0_160 = arith.constant 0 : index
    %264 = vector.load %arg16[%c0_159, %c0_160] : memref<64x32xbf16, #tpu.memory_space<vmem>>, vector<64x32xbf16>
    %cst_161 = arith.constant dense<0.000000e+00> : vector<64x128xf32>
    %265 = tpu.matmul %264, %131, %cst_161 {dimension_numbers = #tpu.dot_dimension_numbers<[1], [0], [0], [1], [0, 0, 1, 1], [], []>} : vector<64x32xbf16>, vector<32x128xbf16>, vector<64x128xf32> -> vector<64x128xf32>
    %c0_162 = arith.constant 0 : index
    %c0_163 = arith.constant 0 : index
    %266 = vector.load %arg17[%c0_162, %c0_163] : memref<64x32xbf16, #tpu.memory_space<vmem>>, vector<64x32xbf16>
    %cst_164 = arith.constant dense<0.000000e+00> : vector<64x128xf32>
    %267 = tpu.matmul %266, %263, %cst_164 {dimension_numbers = #tpu.dot_dimension_numbers<[1], [0], [0], [1], [0, 0, 1, 1], [], []>} : vector<64x32xbf16>, vector<32x128xbf16>, vector<64x128xf32> -> vector<64x128xf32>
    %268 = arith.addf %265, %267 : vector<64x128xf32>
    %c0_165 = arith.constant 0 : index
    %c0_166 = arith.constant 0 : index
    %269 = vector.load %arg18[%c0_165, %c0_166] : memref<64x1xf32, #tpu.memory_space<vmem>>, vector<64x1xf32>
    %270 = vector.broadcast %269 : vector<64x1xf32> to vector<64x128xf32>
    %271 = arith.addf %268, %270 : vector<64x128xf32>
    %cst_167 = arith.constant 0.000000e+00 : f32
    %272 = vector.broadcast %cst_167 : f32 to vector<64x128xf32>
    %273 = arith.maximumf %271, %272 : vector<64x128xf32>
    %274 = arith.truncf %273 : vector<64x128xf32> to vector<64x128xbf16>
    %c0_168 = arith.constant 0 : index
    %c0_169 = arith.constant 0 : index
    %275 = vector.load %arg19[%c0_168, %c0_169] : memref<128x64xbf16, #tpu.memory_space<vmem>>, vector<128x64xbf16>
    %cst_170 = arith.constant dense<0.000000e+00> : vector<128x128xf32>
    %276 = tpu.matmul %275, %274, %cst_170 {dimension_numbers = #tpu.dot_dimension_numbers<[1], [0], [0], [1], [0, 0, 1, 1], [], []>} : vector<128x64xbf16>, vector<64x128xbf16>, vector<128x128xf32> -> vector<128x128xf32>
    %c0_171 = arith.constant 0 : index
    %c0_172 = arith.constant 0 : index
    %277 = vector.load %arg20[%c0_171, %c0_172] : memref<128x1xf32, #tpu.memory_space<vmem>>, vector<128x1xf32>
    %278 = vector.broadcast %277 : vector<128x1xf32> to vector<128x128xf32>
    %279 = arith.addf %276, %278 : vector<128x128xf32>
    %cst_173 = arith.constant 0.000000e+00 : f32
    %280 = vector.broadcast %cst_173 : f32 to vector<128x128xf32>
    %281 = arith.maximumf %279, %280 : vector<128x128xf32>
    %282 = arith.truncf %281 : vector<128x128xf32> to vector<128x128xbf16>
    %c0_174 = arith.constant 0 : index
    %c0_175 = arith.constant 0 : index
    %283 = vector.load %arg21[%c0_174, %c0_175] : memref<128x128xbf16, #tpu.memory_space<vmem>>, vector<128x128xbf16>
    %cst_176 = arith.constant dense<0.000000e+00> : vector<128x128xf32>
    %284 = tpu.matmul %283, %282, %cst_176 {dimension_numbers = #tpu.dot_dimension_numbers<[1], [0], [0], [1], [0, 0, 1, 1], [], []>} : vector<128x128xbf16>, vector<128x128xbf16>, vector<128x128xf32> -> vector<128x128xf32>
    %c0_177 = arith.constant 0 : index
    %c0_178 = arith.constant 0 : index
    %285 = vector.load %arg22[%c0_177, %c0_178] : memref<128x1xf32, #tpu.memory_space<vmem>>, vector<128x1xf32>
    %286 = vector.broadcast %285 : vector<128x1xf32> to vector<128x128xf32>
    %287 = arith.addf %284, %286 : vector<128x128xf32>
    %c0_179 = arith.constant 0 : index
    %c0_180 = arith.constant 0 : index
    %c0_181 = arith.constant 0 : index
    %288 = vector.load %arg23[%c0_179, %c0_180, %c0_181] : memref<1x128x128xf32, #tpu.memory_space<vmem>>, vector<1x128x128xf32>
    %289 = vector.shape_cast %288 : vector<1x128x128xf32> to vector<128x128xf32>
    %290 = vector.shape_cast %287 : vector<128x128xf32> to vector<1x128x128xf32>
    tpu.vector_store %arg23[%c0_179, %c0_180, %c0_181], %290 {strides = array<i32>} : memref<1x128x128xf32, #tpu.memory_space<vmem>>, vector<1x128x128xf32>,
    return
  }
  func.func @transform_0(%arg0: i32, %arg1: i32) -> (i32, i32, i32, i32) {
    %c0_i32 = arith.constant 0 : i32
    %c0_i32_0 = arith.constant 0 : i32
    %c0_i32_1 = arith.constant 0 : i32
    return %arg0, %c0_i32, %c0_i32_0, %arg1 : i32, i32, i32, i32
  }
  func.func @transform_1(%arg0: i32, %arg1: i32) -> (i32, i32, i32, i32) {
    %c0_i32 = arith.constant 0 : i32
    %c0_i32_0 = arith.constant 0 : i32
    %c0_i32_1 = arith.constant 0 : i32
    return %arg0, %c0_i32, %c0_i32_0, %arg1 : i32, i32, i32, i32
  }
  func.func @transform_2(%arg0: i32, %arg1: i32) -> (i32, i32) {
    %c0_i32 = arith.constant 0 : i32
    %c0_i32_0 = arith.constant 0 : i32
    %c0_i32_1 = arith.constant 0 : i32
    return %c0_i32, %c0_i32_0 : i32, i32
  }
  func.func @transform_3(%arg0: i32, %arg1: i32) -> (i32, i32) {
    %c0_i32 = arith.constant 0 : i32
    %c0_i32_0 = arith.constant 0 : i32
    %c0_i32_1 = arith.constant 0 : i32
    return %c0_i32, %c0_i32_0 : i32, i32
  }
  func.func @transform_4(%arg0: i32, %arg1: i32) -> (i32, i32) {
    %c0_i32 = arith.constant 0 : i32
    %c0_i32_0 = arith.constant 0 : i32
    %c0_i32_1 = arith.constant 0 : i32
    return %c0_i32, %c0_i32_0 : i32, i32
  }
  func.func @transform_5(%arg0: i32, %arg1: i32) -> (i32, i32) {
    %c0_i32 = arith.constant 0 : i32
    %c0_i32_0 = arith.constant 0 : i32
    %c0_i32_1 = arith.constant 0 : i32
    return %c0_i32, %c0_i32_0 : i32, i32
  }
  func.func @transform_6(%arg0: i32, %arg1: i32) -> (i32, i32) {
    %c0_i32 = arith.constant 0 : i32
    %c0_i32_0 = arith.constant 0 : i32
    %c0_i32_1 = arith.constant 0 : i32
    return %c0_i32, %c0_i32_0 : i32, i32
  }
  func.func @transform_7(%arg0: i32, %arg1: i32) -> (i32, i32) {
    %c0_i32 = arith.constant 0 : i32
    %c0_i32_0 = arith.constant 0 : i32
    %c0_i32_1 = arith.constant 0 : i32
    return %c0_i32, %c0_i32_0 : i32, i32
  }
  func.func @transform_8(%arg0: i32, %arg1: i32) -> (i32, i32) {
    %c0_i32 = arith.constant 0 : i32
    %c0_i32_0 = arith.constant 0 : i32
    %c0_i32_1 = arith.constant 0 : i32
    return %c0_i32, %c0_i32_0 : i32, i32
  }
  func.func @transform_9(%arg0: i32, %arg1: i32) -> (i32, i32) {
    %c0_i32 = arith.constant 0 : i32
    %c0_i32_0 = arith.constant 0 : i32
    %c0_i32_1 = arith.constant 0 : i32
    return %c0_i32, %c0_i32_0 : i32, i32
  }
  func.func @transform_10(%arg0: i32, %arg1: i32) -> (i32, i32) {
    %c0_i32 = arith.constant 0 : i32
    %c0_i32_0 = arith.constant 0 : i32
    %c0_i32_1 = arith.constant 0 : i32
    return %c0_i32, %c0_i32_0 : i32, i32
  }
  func.func @transform_11(%arg0: i32, %arg1: i32) -> (i32, i32) {
    %c0_i32 = arith.constant 0 : i32
    %c0_i32_0 = arith.constant 0 : i32
    %c0_i32_1 = arith.constant 0 : i32
    return %c0_i32, %c0_i32_0 : i32, i32
  }
  func.func @transform_12(%arg0: i32, %arg1: i32) -> (i32, i32) {
    %c0_i32 = arith.constant 0 : i32
    %c0_i32_0 = arith.constant 0 : i32
    %c0_i32_1 = arith.constant 0 : i32
    return %c0_i32, %c0_i32_0 : i32, i32
  }
  func.func @transform_13(%arg0: i32, %arg1: i32) -> (i32, i32) {
    %c0_i32 = arith.constant 0 : i32
    %c0_i32_0 = arith.constant 0 : i32
    %c0_i32_1 = arith.constant 0 : i32
    return %c0_i32, %c0_i32_0 : i32, i32
  }
  func.func @transform_14(%arg0: i32, %arg1: i32) -> (i32, i32) {
    %c0_i32 = arith.constant 0 : i32
    %c0_i32_0 = arith.constant 0 : i32
    %c0_i32_1 = arith.constant 0 : i32
    return %c0_i32, %c0_i32_0 : i32, i32
  }
  func.func @transform_15(%arg0: i32, %arg1: i32) -> (i32, i32) {
    %c0_i32 = arith.constant 0 : i32
    %c0_i32_0 = arith.constant 0 : i32
    %c0_i32_1 = arith.constant 0 : i32
    return %c0_i32, %c0_i32_0 : i32, i32
  }
  func.func @transform_16(%arg0: i32, %arg1: i32) -> (i32, i32) {
    %c0_i32 = arith.constant 0 : i32
    %c0_i32_0 = arith.constant 0 : i32
    %c0_i32_1 = arith.constant 0 : i32
    return %c0_i32, %c0_i32_0 : i32, i32
  }
  func.func @transform_17(%arg0: i32, %arg1: i32) -> (i32, i32) {
    %c0_i32 = arith.constant 0 : i32
    %c0_i32_0 = arith.constant 0 : i32
    %c0_i32_1 = arith.constant 0 : i32
    return %c0_i32, %c0_i32_0 : i32, i32
  }
  func.func @transform_18(%arg0: i32, %arg1: i32) -> (i32, i32) {
    %c0_i32 = arith.constant 0 : i32
    %c0_i32_0 = arith.constant 0 : i32
    %c0_i32_1 = arith.constant 0 : i32
    return %c0_i32, %c0_i32_0 : i32, i32
  }
  func.func @transform_19(%arg0: i32, %arg1: i32) -> (i32, i32) {
    %c0_i32 = arith.constant 0 : i32
    %c0_i32_0 = arith.constant 0 : i32
    %c0_i32_1 = arith.constant 0 : i32
    return %c0_i32, %c0_i32_0 : i32, i32
  }
  func.func @transform_20(%arg0: i32, %arg1: i32) -> (i32, i32) {
    %c0_i32 = arith.constant 0 : i32
    %c0_i32_0 = arith.constant 0 : i32
    %c0_i32_1 = arith.constant 0 : i32
    return %c0_i32, %c0_i32_0 : i32, i32
  }
  func.func @transform_21(%arg0: i32, %arg1: i32) -> (i32, i32, i32) {
    %c0_i32 = arith.constant 0 : i32
    %c0_i32_0 = arith.constant 0 : i32
    return %arg0, %c0_i32, %arg1 : i32, i32, i32
  }
}

</mosaic_0001>

<llo_original>
// kernel: ri_decoder_forward.1
$region0: #{ri_decoder_forward.1}
  #allocation0 [shape = 'u32[]', space=smem, size = 0x4, offset = 0x4, fixed_abs, tag = 'smem constant byte address 0x4 - core index']
  #allocation1 [shape = 'u32[144,128]{1,0:T(1,128)}', space=vmem, size = 0x12000, scoped, tag = 'internal scratch']
  %s0 = inlined_call_operand.vmem [shape: bf16[2,8,3,256], index: 0, kind: input, shape index: {}]
  %s1 = inlined_call_operand.vmem [shape: bf16[2,8,3,256], index: 1, kind: input, shape index: {}]
  %s2 = inlined_call_operand.vmem [shape: bf16[16,3], index: 2, kind: input, shape index: {}]
  %s3 = inlined_call_operand.vmem [shape: f32[16,1], index: 3, kind: input, shape index: {}]
  %s4 = inlined_call_operand.vmem [shape: bf16[32,16], index: 4, kind: input, shape index: {}]
  %s5 = inlined_call_operand.vmem [shape: f32[32,1], index: 5, kind: input, shape index: {}]
  %s6 = inlined_call_operand.vmem [shape: bf16[32,32], index: 6, kind: input, shape index: {}]
  %s7 = inlined_call_operand.vmem [shape: f32[32,1], index: 7, kind: input, shape index: {}]
  %s8 = inlined_call_operand.vmem [shape: bf16[16,3], index: 8, kind: input, shape index: {}]
  %s9 = inlined_call_operand.vmem [shape: f32[16,1], index: 9, kind: input, shape index: {}]
  %s10 = inlined_call_operand.vmem [shape: bf16[32,16], index: 10, kind: input, shape index: {}]
  %s11 = inlined_call_operand.vmem [shape: f32[32,1], index: 11, kind: input, shape index: {}]
  %s12 = inlined_call_operand.vmem [shape: bf16[32,32], index: 12, kind: input, shape index: {}]
  %s13 = inlined_call_operand.vmem [shape: f32[32,1], index: 13, kind: input, shape index: {}]
  %s14 = inlined_call_operand.vmem [shape: bf16[64,32], index: 14, kind: input, shape index: {}]
  %s15 = inlined_call_operand.vmem [shape: bf16[64,32], index: 15, kind: input, shape index: {}]
  %s16 = inlined_call_operand.vmem [shape: f32[64,1], index: 16, kind: input, shape index: {}]
  %s17 = inlined_call_operand.vmem [shape: bf16[128,64], index: 17, kind: input, shape index: {}]
  %s18 = inlined_call_operand.vmem [shape: f32[128,1], index: 18, kind: input, shape index: {}]
  %s19 = inlined_call_operand.vmem [shape: bf16[128,128], index: 19, kind: input, shape index: {}]
  %s20 = inlined_call_operand.vmem [shape: f32[128,1], index: 20, kind: input, shape index: {}]
  %s21 = inlined_call_operand.hbm [shape: f32[2,128,256], index: 21, kind: output, shape index: {}]
  %s22 = sld [smem:[#allocation0]]
  $region199: #{ri_decoder_forward.1} parent=0
    _
  %s24 = ssub.s32 1, %s22
  %s25 = scalar_select 0, %s24, %s22
  $region1: #{ri_decoder_forward.1} parent=0
    #allocation2 [shape = 'u8[16384]{0}', space=vmem, size = 0x4000, scoped, tag = 'input window, operand 0']
    #allocation3 [shape = 'u8[16384]{0}', space=vmem, size = 0x4000, scoped, tag = 'input window, operand 1']
    #allocation4 [shape = 'u8[131072]{0}', space=vmem, size = 0x20000, scoped, tag = 'output window, operand 0']
    #allocation5 [shape = 's32[2]{0}', space=sflag, size = 0x8, scoped, tag = 'scoped memory for ri_decoder_forward.1']
    %26 = vsyncpa [#allocation5], 0
    %s27 = scalar_lea.sflag [#allocation5], 1
    %28 = vsyncpa %s27, 0
    loop: start=0, step=1, limit=6
    $region2: #{ri_decoder_forward.1} parent=1 // loop_pre_header
      _
    $region3: #{ri_decoder_forward.1} parent=1 // loop_header
      %s30 = sphi 0, %s34
      %p31 = scmp.ge.s32.totalorder %s30, 6
      %s37 = sphi 0, %s49
      %s38 = sphi 0, %s45
      %s39 = sphi 0, %s37
      %s40 = sphi 0, %s38
      %s41 = sphi 0, %s39
      %s42 = sphi 0, %s40
      %s54 = sphi 0, %s56
      %s57 = sphi 0, %s54
      %s58 = sphi 0, %s57
      %s74 = sphi 0, %s58
      %s82 = sphi 0, %s84
      %s85 = sphi 0, %s82
      %s86 = sphi 0, %s85
      %s102 = sphi 0, %s86
      %s106 = sphi 0, %s106
      %s108 = sphi 0, %s106
      %s109 = sphi 0, %s108
      %s123 = sphi 0, %s109
      %s127 = sphi 0, %s127
      %s129 = sphi 0, %s127
      %s130 = sphi 0, %s129
      %s144 = sphi 0, %s130
      %s148 = sphi 0, %s148
      %s150 = sphi 0, %s148
      %s151 = sphi 0, %s150
      %s165 = sphi 0, %s151
      %s169 = sphi 0, %s169
      %s171 = sphi 0, %s169
      %s172 = sphi 0, %s171
      %s186 = sphi 0, %s172
      %s190 = sphi 0, %s190
      %s192 = sphi 0, %s190
      %s193 = sphi 0, %s192
      %s207 = sphi 0, %s193
      %s211 = sphi 0, %s211
      %s213 = sphi 0, %s211
      %s214 = sphi 0, %s213
      %s228 = sphi 0, %s214
      %s232 = sphi 0, %s232
      %s234 = sphi 0, %s232
      %s235 = sphi 0, %s234
      %s249 = sphi 0, %s235
      %s253 = sphi 0, %s253
      %s255 = sphi 0, %s253
      %s256 = sphi 0, %s255
      %s270 = sphi 0, %s256
      %s274 = sphi 0, %s274
      %s276 = sphi 0, %s274
      %s277 = sphi 0, %s276
      %s291 = sphi 0, %s277
      %s295 = sphi 0, %s295
      %s297 = sphi 0, %s295
      %s298 = sphi 0, %s297
      %s312 = sphi 0, %s298
      %s316 = sphi 0, %s316
      %s318 = sphi 0, %s316
      %s319 = sphi 0, %s318
      %s333 = sphi 0, %s319
      %s337 = sphi 0, %s337
      %s339 = sphi 0, %s337
      %s340 = sphi 0, %s339
      %s354 = sphi 0, %s340
      %s358 = sphi 0, %s358
      %s360 = sphi 0, %s358
      %s361 = sphi 0, %s360
      %s375 = sphi 0, %s361
      %s379 = sphi 0, %s379
      %s381 = sphi 0, %s379
      %s382 = sphi 0, %s381
      %s396 = sphi 0, %s382
      %s400 = sphi 0, %s400
      %s402 = sphi 0, %s400
      %s403 = sphi 0, %s402
      %s417 = sphi 0, %s403
      %s421 = sphi 0, %s421
      %s423 = sphi 0, %s421
      %s424 = sphi 0, %s423
      %s438 = sphi 0, %s424
      %s442 = sphi 0, %s442
      %s444 = sphi 0, %s442
      %s445 = sphi 0, %s444
      %s459 = sphi 0, %s445
      %s463 = sphi 0, %s463
      %s465 = sphi 0, %s463
      %s466 = sphi 0, %s465
      %s480 = sphi 0, %s466
      %s484 = sphi 0, %s484
      %s486 = sphi 0, %s484
      %s487 = sphi 0, %s486
      %s501 = sphi 0, %s487
      %s509 = sphi 0, %s511
      %s512 = sphi 0, %s509
      %s513 = sphi 0, %s512
      %s529 = sphi 0, %s513
    $region4: #{ri_decoder_forward.1} parent=1 // loop_header_branch
      %33 = sbr.rel (%p31) target = $region8
    $region5: #{ri_decoder_forward.1} parent=1 // loop_body
      %s35 = ssub.s32 %s30, 1
      %s36 = ssub.s32 %s30, 2
      %s43 = sadd.s32 1, %s38
      %p44 = scmp.ge.s32.totalorder %s43, 2
      %s45 = scalar_select %p44, 0, %s43
      %s46 = sadd.s32 1, %s37
      %s47 = scalar_select %p44, %s46, %s37
      %p48 = scmp.ge.s32.totalorder %s47, 2
      %s49 = scalar_select %p48, 0, %s47
      %s50 = ssub.s32 %s37, %s49
      %s51 = ssub.s32 %s38, %s45
      %s52 = sor.u32 %s50, %s51
      %p53 = scmp.eq.s32.totalorder %s52, 0
      %s55 = sadd.s32 %s54, 1
      %s56 = scalar_select %p53, %s54, %s55
      %p59 = pneg %p53
      %p60 = scmp.eq.s32.totalorder %s30, 3
      %p61 = por %p59, %p60
      %p62 = scmp.ne.s32.totalorder %s54, %s57
      %p63 = scmp.eq.s32.totalorder %s30, 0
      %p64 = por %p62, %p63
      %p65 = scmp.ne.s32.totalorder %s54, %s57
      %p66 = scmp.eq.s32.totalorder %s35, 3
      %p67 = por %p65, %p66
      %p68 = scmp.ne.s32.totalorder %s57, %s58
      %p69 = scmp.eq.s32.totalorder %s35, 0
      %p70 = por %p68, %p69
      %p71 = scmp.ne.s32.totalorder %s57, %s58
      %p72 = scmp.eq.s32.totalorder %s36, 3
      %p73 = por %p71, %p72
      %p75 = scmp.ne.s32.totalorder %s58, %s74
      %p76 = scmp.eq.s32.totalorder %s36, 0
      %p77 = por %p75, %p76
      %s78 = ssub.s32 %s37, %s49
      %s79 = ssub.s32 %s38, %s45
      %s80 = sor.u32 %s78, %s79
      %p81 = scmp.eq.s32.totalorder %s80, 0
      %s83 = sadd.s32 %s82, 1
      %s84 = scalar_select %p81, %s82, %s83
      %p87 = pneg %p81
      %p88 = scmp.eq.s32.totalorder %s30, 3
      %p89 = por %p87, %p88
      %p90 = scmp.ne.s32.totalorder %s82, %s85
      %p91 = scmp.eq.s32.totalorder %s30, 0
      %p92 = por %p90, %p91
      %p93 = scmp.ne.s32.totalorder %s82, %s85
      %p94 = scmp.eq.s32.totalorder %s35, 3
      %p95 = por %p93, %p94
      %p96 = scmp.ne.s32.totalorder %s85, %s86
      %p97 = scmp.eq.s32.totalorder %s35, 0
      %p98 = por %p96, %p97
      %p99 = scmp.ne.s32.totalorder %s85, %s86
      %p100 = scmp.eq.s32.totalorder %s36, 3
      %p101 = por %p99, %p100
      %p103 = scmp.ne.s32.totalorder %s86, %s102
      %p104 = scmp.eq.s32.totalorder %s36, 0
      %p105 = por %p103, %p104
      %s107 = sadd.s32 %s106, 1
      %p110 = scmp.eq.s32.totalorder %s30, 3
      %p111 = scmp.ne.s32.totalorder %s106, %s108
      %p112 = scmp.eq.s32.totalorder %s30, 0
      %p113 = por %p111, %p112
      %p114 = scmp.ne.s32.totalorder %s106, %s108
      %p115 = scmp.eq.s32.totalorder %s35, 3
      %p116 = por %p114, %p115
      %p117 = scmp.ne.s32.totalorder %s108, %s109
      %p118 = scmp.eq.s32.totalorder %s35, 0
      %p119 = por %p117, %p118
      %p120 = scmp.ne.s32.totalorder %s108, %s109
      %p121 = scmp.eq.s32.totalorder %s36, 3
      %p122 = por %p120, %p121
      %p124 = scmp.ne.s32.totalorder %s109, %s123
      %p125 = scmp.eq.s32.totalorder %s36, 0
      %p126 = por %p124, %p125
      %s128 = sadd.s32 %s127, 1
      %p131 = scmp.eq.s32.totalorder %s30, 3
      %p132 = scmp.ne.s32.totalorder %s127, %s129
      %p133 = scmp.eq.s32.totalorder %s30, 0
      %p134 = por %p132, %p133
      %p135 = scmp.ne.s32.totalorder %s127, %s129
      %p136 = scmp.eq.s32.totalorder %s35, 3
      %p137 = por %p135, %p136
      %p138 = scmp.ne.s32.totalorder %s129, %s130
      %p139 = scmp.eq.s32.totalorder %s35, 0
      %p140 = por %p138, %p139
      %p141 = scmp.ne.s32.totalorder %s129, %s130
      %p142 = scmp.eq.s32.totalorder %s36, 3
      %p143 = por %p141, %p142
      %p145 = scmp.ne.s32.totalorder %s130, %s144
      %p146 = scmp.eq.s32.totalorder %s36, 0
      %p147 = por %p145, %p146
      %s149 = sadd.s32 %s148, 1
      %p152 = scmp.eq.s32.totalorder %s30, 3
      %p153 = scmp.ne.s32.totalorder %s148, %s150
      %p154 = scmp.eq.s32.totalorder %s30, 0
      %p155 = por %p153, %p154
      %p156 = scmp.ne.s32.totalorder %s148, %s150
      %p157 = scmp.eq.s32.totalorder %s35, 3
      %p158 = por %p156, %p157
      %p159 = scmp.ne.s32.totalorder %s150, %s151
      %p160 = scmp.eq.s32.totalorder %s35, 0
      %p161 = por %p159, %p160
      %p162 = scmp.ne.s32.totalorder %s150, %s151
      %p163 = scmp.eq.s32.totalorder %s36, 3
      %p164 = por %p162, %p163
      %p166 = scmp.ne.s32.totalorder %s151, %s165
      %p167 = scmp.eq.s32.totalorder %s36, 0
      %p168 = por %p166, %p167
      %s170 = sadd.s32 %s169, 1
      %p173 = scmp.eq.s32.totalorder %s30, 3
      %p174 = scmp.ne.s32.totalorder %s169, %s171
      %p175 = scmp.eq.s32.totalorder %s30, 0
      %p176 = por %p174, %p175
      %p177 = scmp.ne.s32.totalorder %s169, %s171
      %p178 = scmp.eq.s32.totalorder %s35, 3
      %p179 = por %p177, %p178
      %p180 = scmp.ne.s32.totalorder %s171, %s172
      %p181 = scmp.eq.s32.totalorder %s35, 0
      %p182 = por %p180, %p181
      %p183 = scmp.ne.s32.totalorder %s171, %s172
      %p184 = scmp.eq.s32.totalorder %s36, 3
      %p185 = por %p183, %p184
      %p187 = scmp.ne.s32.totalorder %s172, %s186
      %p188 = scmp.eq.s32.totalorder %s36, 0
      %p189 = por %p187, %p188
      %s191 = sadd.s32 %s190, 1
      %p194 = scmp.eq.s32.totalorder %s30, 3
      %p195 = scmp.ne.s32.totalorder %s190, %s192
      %p196 = scmp.eq.s32.totalorder %s30, 0
      %p197 = por %p195, %p196
      %p198 = scmp.ne.s32.totalorder %s190, %s192
      %p199 = scmp.eq.s32.totalorder %s35, 3
      %p200 = por %p198, %p199
      %p201 = scmp.ne.s32.totalorder %s192, %s193
      %p202 = scmp.eq.s32.totalorder %s35, 0
      %p203 = por %p201, %p202
      %p204 = scmp.ne.s32.totalorder %s192, %s193
      %p205 = scmp.eq.s32.totalorder %s36, 3
      %p206 = por %p204, %p205
      %p208 = scmp.ne.s32.totalorder %s193, %s207
      %p209 = scmp.eq.s32.totalorder %s36, 0
      %p210 = por %p208, %p209
      %s212 = sadd.s32 %s211, 1
      %p215 = scmp.eq.s32.totalorder %s30, 3
      %p216 = scmp.ne.s32.totalorder %s211, %s213
      %p217 = scmp.eq.s32.totalorder %s30, 0
      %p218 = por %p216, %p217
      %p219 = scmp.ne.s32.totalorder %s211, %s213
      %p220 = scmp.eq.s32.totalorder %s35, 3
      %p221 = por %p219, %p220
      %p222 = scmp.ne.s32.totalorder %s213, %s214
      %p223 = scmp.eq.s32.totalorder %s35, 0
      %p224 = por %p222, %p223
      %p225 = scmp.ne.s32.totalorder %s213, %s214
      %p226 = scmp.eq.s32.totalorder %s36, 3
      %p227 = por %p225, %p226
      %p229 = scmp.ne.s32.totalorder %s214, %s228
      %p230 = scmp.eq.s32.totalorder %s36, 0
      %p231 = por %p229, %p230
      %s233 = sadd.s32 %s232, 1
      %p236 = scmp.eq.s32.totalorder %s30, 3
      %p237 = scmp.ne.s32.totalorder %s232, %s234
      %p238 = scmp.eq.s32.totalorder %s30, 0
      %p239 = por %p237, %p238
      %p240 = scmp.ne.s32.totalorder %s232, %s234
      %p241 = scmp.eq.s32.totalorder %s35, 3
      %p242 = por %p240, %p241
      %p243 = scmp.ne.s32.totalorder %s234, %s235
      %p244 = scmp.eq.s32.totalorder %s35, 0
      %p245 = por %p243, %p244
      %p246 = scmp.ne.s32.totalorder %s234, %s235
      %p247 = scmp.eq.s32.totalorder %s36, 3
      %p248 = por %p246, %p247
      %p250 = scmp.ne.s32.totalorder %s235, %s249
      %p251 = scmp.eq.s32.totalorder %s36, 0
      %p252 = por %p250, %p251
      %s254 = sadd.s32 %s253, 1
      %p257 = scmp.eq.s32.totalorder %s30, 3
      %p258 = scmp.ne.s32.totalorder %s253, %s255
      %p259 = scmp.eq.s32.totalorder %s30, 0
      %p260 = por %p258, %p259
      %p261 = scmp.ne.s32.totalorder %s253, %s255
      %p262 = scmp.eq.s32.totalorder %s35, 3
      %p263 = por %p261, %p262
      %p264 = scmp.ne.s32.totalorder %s255, %s256
      %p265 = scmp.eq.s32.totalorder %s35, 0
      %p266 = por %p264, %p265
      %p267 = scmp.ne.s32.totalorder %s255, %s256
      %p268 = scmp.eq.s32.totalorder %s36, 3
      %p269 = por %p267, %p268
      %p271 = scmp.ne.s32.totalorder %s256, %s270
      %p272 = scmp.eq.s32.totalorder %s36, 0
      %p273 = por %p271, %p272
      %s275 = sadd.s32 %s274, 1
      %p278 = scmp.eq.s32.totalorder %s30, 3
      %p279 = scmp.ne.s32.totalorder %s274, %s276
      %p280 = scmp.eq.s32.totalorder %s30, 0
      %p281 = por %p279, %p280
      %p282 = scmp.ne.s32.totalorder %s274, %s276
      %p283 = scmp.eq.s32.totalorder %s35, 3
      %p284 = por %p282, %p283
      %p285 = scmp.ne.s32.totalorder %s276, %s277
      %p286 = scmp.eq.s32.totalorder %s35, 0
      %p287 = por %p285, %p286
      %p288 = scmp.ne.s32.totalorder %s276, %s277
      %p289 = scmp.eq.s32.totalorder %s36, 3
      %p290 = por %p288, %p289
      %p292 = scmp.ne.s32.totalorder %s277, %s291
      %p293 = scmp.eq.s32.totalorder %s36, 0
      %p294 = por %p292, %p293
      %s296 = sadd.s32 %s295, 1
      %p299 = scmp.eq.s32.totalorder %s30, 3
      %p300 = scmp.ne.s32.totalorder %s295, %s297
      %p301 = scmp.eq.s32.totalorder %s30, 0
      %p302 = por %p300, %p301
      %p303 = scmp.ne.s32.totalorder %s295, %s297
      %p304 = scmp.eq.s32.totalorder %s35, 3
      %p305 = por %p303, %p304
      %p306 = scmp.ne.s32.totalorder %s297, %s298
      %p307 = scmp.eq.s32.totalorder %s35, 0
      %p308 = por %p306, %p307
      %p309 = scmp.ne.s32.totalorder %s297, %s298
      %p310 = scmp.eq.s32.totalorder %s36, 3
      %p311 = por %p309, %p310
      %p313 = scmp.ne.s32.totalorder %s298, %s312
      %p314 = scmp.eq.s32.totalorder %s36, 0
      %p315 = por %p313, %p314
      %s317 = sadd.s32 %s316, 1
      %p320 = scmp.eq.s32.totalorder %s30, 3
      %p321 = scmp.ne.s32.totalorder %s316, %s318
      %p322 = scmp.eq.s32.totalorder %s30, 0
      %p323 = por %p321, %p322
      %p324 = scmp.ne.s32.totalorder %s316, %s318
      %p325 = scmp.eq.s32.totalorder %s35, 3
      %p326 = por %p324, %p325
      %p327 = scmp.ne.s32.totalorder %s318, %s319
      %p328 = scmp.eq.s32.totalorder %s35, 0
      %p329 = por %p327, %p328
      %p330 = scmp.ne.s32.totalorder %s318, %s319
      %p331 = scmp.eq.s32.totalorder %s36, 3
      %p332 = por %p330, %p331
      %p334 = scmp.ne.s32.totalorder %s319, %s333
      %p335 = scmp.eq.s32.totalorder %s36, 0
      %p336 = por %p334, %p335
      %s338 = sadd.s32 %s337, 1
      %p341 = scmp.eq.s32.totalorder %s30, 3
      %p342 = scmp.ne.s32.totalorder %s337, %s339
      %p343 = scmp.eq.s32.totalorder %s30, 0
      %p344 = por %p342, %p343
      %p345 = scmp.ne.s32.totalorder %s337, %s339
      %p346 = scmp.eq.s32.totalorder %s35, 3
      %p347 = por %p345, %p346
      %p348 = scmp.ne.s32.totalorder %s339, %s340
      %p349 = scmp.eq.s32.totalorder %s35, 0
      %p350 = por %p348, %p349
      %p351 = scmp.ne.s32.totalorder %s339, %s340
      %p352 = scmp.eq.s32.totalorder %s36, 3
      %p353 = por %p351, %p352
      %p355 = scmp.ne.s32.totalorder %s340, %s354
      %p356 = scmp.eq.s32.totalorder %s36, 0
      %p357 = por %p355, %p356
      %s359 = sadd.s32 %s358, 1
      %p362 = scmp.eq.s32.totalorder %s30, 3
      %p363 = scmp.ne.s32.totalorder %s358, %s360
      %p364 = scmp.eq.s32.totalorder %s30, 0
      %p365 = por %p363, %p364
      %p366 = scmp.ne.s32.totalorder %s358, %s360
      %p367 = scmp.eq.s32.totalorder %s35, 3
      %p368 = por %p366, %p367
      %p369 = scmp.ne.s32.totalorder %s360, %s361
      %p370 = scmp.eq.s32.totalorder %s35, 0
      %p371 = por %p369, %p370
      %p372 = scmp.ne.s32.totalorder %s360, %s361
      %p373 = scmp.eq.s32.totalorder %s36, 3
      %p374 = por %p372, %p373
      %p376 = scmp.ne.s32.totalorder %s361, %s375
      %p377 = scmp.eq.s32.totalorder %s36, 0
      %p378 = por %p376, %p377
      %s380 = sadd.s32 %s379, 1
      %p383 = scmp.eq.s32.totalorder %s30, 3
      %p384 = scmp.ne.s32.totalorder %s379, %s381
      %p385 = scmp.eq.s32.totalorder %s30, 0
      %p386 = por %p384, %p385
      %p387 = scmp.ne.s32.totalorder %s379, %s381
      %p388 = scmp.eq.s32.totalorder %s35, 3
      %p389 = por %p387, %p388
      %p390 = scmp.ne.s32.totalorder %s381, %s382
      %p391 = scmp.eq.s32.totalorder %s35, 0
      %p392 = por %p390, %p391
      %p393 = scmp.ne.s32.totalorder %s381, %s382
      %p394 = scmp.eq.s32.totalorder %s36, 3
      %p395 = por %p393, %p394
      %p397 = scmp.ne.s32.totalorder %s382, %s396
      %p398 = scmp.eq.s32.totalorder %s36, 0
      %p399 = por %p397, %p398
      %s401 = sadd.s32 %s400, 1
      %p404 = scmp.eq.s32.totalorder %s30, 3
      %p405 = scmp.ne.s32.totalorder %s400, %s402
      %p406 = scmp.eq.s32.totalorder %s30, 0
      %p407 = por %p405, %p406
      %p408 = scmp.ne.s32.totalorder %s400, %s402
      %p409 = scmp.eq.s32.totalorder %s35, 3
      %p410 = por %p408, %p409
      %p411 = scmp.ne.s32.totalorder %s402, %s403
      %p412 = scmp.eq.s32.totalorder %s35, 0
      %p413 = por %p411, %p412
      %p414 = scmp.ne.s32.totalorder %s402, %s403
      %p415 = scmp.eq.s32.totalorder %s36, 3
      %p416 = por %p414, %p415
      %p418 = scmp.ne.s32.totalorder %s403, %s417
      %p419 = scmp.eq.s32.totalorder %s36, 0
      %p420 = por %p418, %p419
      %s422 = sadd.s32 %s421, 1
      %p425 = scmp.eq.s32.totalorder %s30, 3
      %p426 = scmp.ne.s32.totalorder %s421, %s423
      %p427 = scmp.eq.s32.totalorder %s30, 0
      %p428 = por %p426, %p427
      %p429 = scmp.ne.s32.totalorder %s421, %s423
      %p430 = scmp.eq.s32.totalorder %s35, 3
      %p431 = por %p429, %p430
      %p432 = scmp.ne.s32.totalorder %s423, %s424
      %p433 = scmp.eq.s32.totalorder %s35, 0
      %p434 = por %p432, %p433
      %p435 = scmp.ne.s32.totalorder %s423, %s424
      %p436 = scmp.eq.s32.totalorder %s36, 3
      %p437 = por %p435, %p436
      %p439 = scmp.ne.s32.totalorder %s424, %s438
      %p440 = scmp.eq.s32.totalorder %s36, 0
      %p441 = por %p439, %p440
      %s443 = sadd.s32 %s442, 1
      %p446 = scmp.eq.s32.totalorder %s30, 3
      %p447 = scmp.ne.s32.totalorder %s442, %s444
      %p448 = scmp.eq.s32.totalorder %s30, 0
      %p449 = por %p447, %p448
      %p450 = scmp.ne.s32.totalorder %s442, %s444
      %p451 = scmp.eq.s32.totalorder %s35, 3
      %p452 = por %p450, %p451
      %p453 = scmp.ne.s32.totalorder %s444, %s445
      %p454 = scmp.eq.s32.totalorder %s35, 0
      %p455 = por %p453, %p454
      %p456 = scmp.ne.s32.totalorder %s444, %s445
      %p457 = scmp.eq.s32.totalorder %s36, 3
      %p458 = por %p456, %p457
      %p460 = scmp.ne.s32.totalorder %s445, %s459
      %p461 = scmp.eq.s32.totalorder %s36, 0
      %p462 = por %p460, %p461
      %s464 = sadd.s32 %s463, 1
      %p467 = scmp.eq.s32.totalorder %s30, 3
      %p468 = scmp.ne.s32.totalorder %s463, %s465
      %p469 = scmp.eq.s32.totalorder %s30, 0
      %p470 = por %p468, %p469
      %p471 = scmp.ne.s32.totalorder %s463, %s465
      %p472 = scmp.eq.s32.totalorder %s35, 3
      %p473 = por %p471, %p472
      %p474 = scmp.ne.s32.totalorder %s465, %s466
      %p475 = scmp.eq.s32.totalorder %s35, 0
      %p476 = por %p474, %p475
      %p477 = scmp.ne.s32.totalorder %s465, %s466
      %p478 = scmp.eq.s32.totalorder %s36, 3
      %p479 = por %p477, %p478
      %p481 = scmp.ne.s32.totalorder %s466, %s480
      %p482 = scmp.eq.s32.totalorder %s36, 0
      %p483 = por %p481, %p482
      %s485 = sadd.s32 %s484, 1
      %p488 = scmp.eq.s32.totalorder %s30, 3
      %p489 = scmp.ne.s32.totalorder %s484, %s486
      %p490 = scmp.eq.s32.totalorder %s30, 0
      %p491 = por %p489, %p490
      %p492 = scmp.ne.s32.totalorder %s484, %s486
      %p493 = scmp.eq.s32.totalorder %s35, 3
      %p494 = por %p492, %p493
      %p495 = scmp.ne.s32.totalorder %s486, %s487
      %p496 = scmp.eq.s32.totalorder %s35, 0
      %p497 = por %p495, %p496
      %p498 = scmp.ne.s32.totalorder %s486, %s487
      %p499 = scmp.eq.s32.totalorder %s36, 3
      %p500 = por %p498, %p499
      %p502 = scmp.ne.s32.totalorder %s487, %s501
      %p503 = scmp.eq.s32.totalorder %s36, 0
      %p504 = por %p502, %p503
      %s505 = ssub.s32 %s37, %s49
      %s506 = ssub.s32 %s38, %s45
      %s507 = sor.u32 %s505, %s506
      %p508 = scmp.eq.s32.totalorder %s507, 0
      %s510 = sadd.s32 %s509, 1
      %s511 = scalar_select %p508, %s509, %s510
      %p514 = pneg %p508
      %p515 = scmp.eq.s32.totalorder %s30, 3
      %p516 = por %p514, %p515
      %p517 = scmp.ne.s32.totalorder %s509, %s512
      %p518 = scmp.eq.s32.totalorder %s30, 0
      %p519 = por %p517, %p518
      %p520 = scmp.ne.s32.totalorder %s509, %s512
      %p521 = scmp.eq.s32.totalorder %s35, 3
      %p522 = por %p520, %p521
      %p523 = scmp.ne.s32.totalorder %s512, %s513
      %p524 = scmp.eq.s32.totalorder %s35, 0
      %p525 = por %p523, %p524
      %p526 = scmp.ne.s32.totalorder %s512, %s513
      %p527 = scmp.eq.s32.totalorder %s36, 3
      %p528 = por %p526, %p527
      %p530 = scmp.ne.s32.totalorder %s513, %s529
      %p531 = scmp.eq.s32.totalorder %s36, 0
      %p532 = por %p530, %p531
      %p533 = scmp.le.s32.totalorder 1, %s30
      %p534 = scmp.lt.s32.totalorder %s30, 5
      %p535 = pnand %p533, %p534
      %p536 = pneg %p535
      // Predicated region
      $region9: #{ri_decoder_forward.1} parent=5 // pred_check
        _
      $region10: #{ri_decoder_forward.1} parent=5 // pred_check_branch
        %538 = sbr.rel (%p535) target = $region12
      $region11: #{ri_decoder_forward.1} parent=5 // pred_region
        %s539 = ssub.s32 %s30, 1
        // Predicated region
        $region13: #{ri_decoder_forward.1} parent=11 // pred_check
          %p540 = pneg %p119
        $region14: #{ri_decoder_forward.1} parent=11 // pred_check_branch
          %542 = sbr.rel (%p540) target = $region16
        $region15: #{ri_decoder_forward.1} parent=11 // pred_region
          _
        $region16: #{ri_decoder_forward.1} parent=11 // pred_fallthru
          _
        // Predicated region
        $region17: #{ri_decoder_forward.1} parent=11 // pred_check
          %p543 = pneg %p140
        $region18: #{ri_decoder_forward.1} parent=11 // pred_check_branch
          %545 = sbr.rel (%p543) target = $region20
        $region19: #{ri_decoder_forward.1} parent=11 // pred_region
          _
        $region20: #{ri_decoder_forward.1} parent=11 // pred_fallthru
          _
        // Predicated region
        $region21: #{ri_decoder_forward.1} parent=11 // pred_check
          %p546 = pneg %p161
        $region22: #{ri_decoder_forward.1} parent=11 // pred_check_branch
          %548 = sbr.rel (%p546) target = $region24
        $region23: #{ri_decoder_forward.1} parent=11 // pred_region
          _
        $region24: #{ri_decoder_forward.1} parent=11 // pred_fallthru
          _
        // Predicated region
        $region25: #{ri_decoder_forward.1} parent=11 // pred_check
          %p549 = pneg %p182
        $region26: #{ri_decoder_forward.1} parent=11 // pred_check_branch
          %551 = sbr.rel (%p549) target = $region28
        $region27: #{ri_decoder_forward.1} parent=11 // pred_region
          _
        $region28: #{ri_decoder_forward.1} parent=11 // pred_fallthru
          _
        // Predicated region
        $region29: #{ri_decoder_forward.1} parent=11 // pred_check
          %p552 = pneg %p203
        $region30: #{ri_decoder_forward.1} parent=11 // pred_check_branch
          %554 = sbr.rel (%p552) target = $region32
        $region31: #{ri_decoder_forward.1} parent=11 // pred_region
          _
        $region32: #{ri_decoder_forward.1} parent=11 // pred_fallthru
          _
        // Predicated region
        $region33: #{ri_decoder_forward.1} parent=11 // pred_check
          %p555 = pneg %p224
        $region34: #{ri_decoder_forward.1} parent=11 // pred_check_branch
          %557 = sbr.rel (%p555) target = $region36
        $region35: #{ri_decoder_forward.1} parent=11 // pred_region
          _
        $region36: #{ri_decoder_forward.1} parent=11 // pred_fallthru
          _
        // Predicated region
        $region37: #{ri_decoder_forward.1} parent=11 // pred_check
          %p558 = pneg %p245
        $region38: #{ri_decoder_forward.1} parent=11 // pred_check_branch
          %560 = sbr.rel (%p558) target = $region40
        $region39: #{ri_decoder_forward.1} parent=11 // pred_region
          _
        $region40: #{ri_decoder_forward.1} parent=11 // pred_fallthru
          _
        // Predicated region
        $region41: #{ri_decoder_forward.1} parent=11 // pred_check
          %p561 = pneg %p266
        $region42: #{ri_decoder_forward.1} parent=11 // pred_check_branch
          %563 = sbr.rel (%p561) target = $region44
        $region43: #{ri_decoder_forward.1} parent=11 // pred_region
          _
        $region44: #{ri_decoder_forward.1} parent=11 // pred_fallthru
          _
        // Predicated region
        $region45: #{ri_decoder_forward.1} parent=11 // pred_check
          %p564 = pneg %p287
        $region46: #{ri_decoder_forward.1} parent=11 // pred_check_branch
          %566 = sbr.rel (%p564) target = $region48
        $region47: #{ri_decoder_forward.1} parent=11 // pred_region
          _
        $region48: #{ri_decoder_forward.1} parent=11 // pred_fallthru
          _
        // Predicated region
        $region49: #{ri_decoder_forward.1} parent=11 // pred_check
          %p567 = pneg %p308
        $region50: #{ri_decoder_forward.1} parent=11 // pred_check_branch
          %569 = sbr.rel (%p567) target = $region52
        $region51: #{ri_decoder_forward.1} parent=11 // pred_region
          _
        $region52: #{ri_decoder_forward.1} parent=11 // pred_fallthru
          _
        // Predicated region
        $region53: #{ri_decoder_forward.1} parent=11 // pred_check
          %p570 = pneg %p329
        $region54: #{ri_decoder_forward.1} parent=11 // pred_check_branch
          %572 = sbr.rel (%p570) target = $region56
        $region55: #{ri_decoder_forward.1} parent=11 // pred_region
          _
        $region56: #{ri_decoder_forward.1} parent=11 // pred_fallthru
          _
        // Predicated region
        $region57: #{ri_decoder_forward.1} parent=11 // pred_check
          %p573 = pneg %p350
        $region58: #{ri_decoder_forward.1} parent=11 // pred_check_branch
          %575 = sbr.rel (%p573) target = $region60
        $region59: #{ri_decoder_forward.1} parent=11 // pred_region
          _
        $region60: #{ri_decoder_forward.1} parent=11 // pred_fallthru
          _
        // Predicated region
        $region61: #{ri_decoder_forward.1} parent=11 // pred_check
          %p576 = pneg %p371
        $region62: #{ri_decoder_forward.1} parent=11 // pred_check_branch
          %578 = sbr.rel (%p576) target = $region64
        $region63: #{ri_decoder_forward.1} parent=11 // pred_region
          _
        $region64: #{ri_decoder_forward.1} parent=11 // pred_fallthru
          _
        // Predicated region
        $region65: #{ri_decoder_forward.1} parent=11 // pred_check
          %p579 = pneg %p392
        $region66: #{ri_decoder_forward.1} parent=11 // pred_check_branch
          %581 = sbr.rel (%p579) target = $region68
        $region67: #{ri_decoder_forward.1} parent=11 // pred_region
          _
        $region68: #{ri_decoder_forward.1} parent=11 // pred_fallthru
          _
        // Predicated region
        $region69: #{ri_decoder_forward.1} parent=11 // pred_check
          %p582 = pneg %p413
        $region70: #{ri_decoder_forward.1} parent=11 // pred_check_branch
          %584 = sbr.rel (%p582) target = $region72
        $region71: #{ri_decoder_forward.1} parent=11 // pred_region
          _
        $region72: #{ri_decoder_forward.1} parent=11 // pred_fallthru
          _
        // Predicated region
        $region73: #{ri_decoder_forward.1} parent=11 // pred_check
          %p585 = pneg %p434
        $region74: #{ri_decoder_forward.1} parent=11 // pred_check_branch
          %587 = sbr.rel (%p585) target = $region76
        $region75: #{ri_decoder_forward.1} parent=11 // pred_region
          _
        $region76: #{ri_decoder_forward.1} parent=11 // pred_fallthru
          _
        // Predicated region
        $region77: #{ri_decoder_forward.1} parent=11 // pred_check
          %p588 = pneg %p455
        $region78: #{ri_decoder_forward.1} parent=11 // pred_check_branch
          %590 = sbr.rel (%p588) target = $region80
        $region79: #{ri_decoder_forward.1} parent=11 // pred_region
          _
        $region80: #{ri_decoder_forward.1} parent=11 // pred_fallthru
          _
        // Predicated region
        $region81: #{ri_decoder_forward.1} parent=11 // pred_check
          %p591 = pneg %p476
        $region82: #{ri_decoder_forward.1} parent=11 // pred_check_branch
          %593 = sbr.rel (%p591) target = $region84
        $region83: #{ri_decoder_forward.1} parent=11 // pred_region
          _
        $region84: #{ri_decoder_forward.1} parent=11 // pred_fallthru
          _
        // Predicated region
        $region85: #{ri_decoder_forward.1} parent=11 // pred_check
          %p594 = pneg %p497
        $region86: #{ri_decoder_forward.1} parent=11 // pred_check_branch
          %596 = sbr.rel (%p594) target = $region88
        $region87: #{ri_decoder_forward.1} parent=11 // pred_region
          _
        $region88: #{ri_decoder_forward.1} parent=11 // pred_fallthru
          _
      $region12: #{ri_decoder_forward.1} parent=5 // pred_fallthru
        _
      %p597 = scmp.lt.s32.totalorder %s30, 4
      // Predicated region
      $region89: #{ri_decoder_forward.1} parent=5 // pred_check
        %p598 = pneg %p597
      $region90: #{ri_decoder_forward.1} parent=5 // pred_check_branch
        %600 = sbr.rel (%p598) target = $region92
      $region91: #{ri_decoder_forward.1} parent=5 // pred_region
        // Predicated region
        $region93: #{ri_decoder_forward.1} parent=91 // pred_check
          %p601 = pneg %p64
        $region94: #{ri_decoder_forward.1} parent=91 // pred_check_branch
          %603 = sbr.rel (%p601) target = $region96
        $region95: #{ri_decoder_forward.1} parent=91 // pred_region
          %s604 = sand.u32 %s54, 1
          %s605 = sand.u32 %s54, 1
          %s606 = smul.addr %s605, 16
          %s607 = scalar_lea.vmem [#allocation2], %s606
          %s608 = smul.addr %s37, 16
          %s609 = sadd.s32 %s38, %s608
          %s610 = smul.addr %s609, 2
          %s611 = scalar_lea.vmem %s0, %s610
          // Predicated region
          $region97: #{ri_decoder_forward.1} parent=95 // pred_check
            _
          $region98: #{ri_decoder_forward.1} parent=95 // pred_check_branch
            %613 = sbr.rel (0) target = $region100
          $region99: #{ri_decoder_forward.1} parent=95 // pred_region
            // Predicated region
            $region101: #{ri_decoder_forward.1} parent=99 // pred_check
              _
            $region102: #{ri_decoder_forward.1} parent=99 // pred_check_branch
              %615 = sbr.rel target = $region104
            $region103: #{ri_decoder_forward.1} parent=99 // pred_region
              // Predicated region
              $region116: #{ri_decoder_forward.1} parent=103 // pred_check
                _
              $region117: #{ri_decoder_forward.1} parent=103 // pred_check_branch
                %644 = sbr.rel (0) target = $region119
              $region118: #{ri_decoder_forward.1} parent=103 // pred_region
                loop: start=0, step=1, limit=1
                $region120: #{ri_decoder_forward.1} parent=118 // loop_pre_header
                  _
                $region121: #{ri_decoder_forward.1} parent=118 // loop_header
                  %s646 = sphi 0, %s650
                  %p647 = scmp.ge.s32.totalorder %s646, 1
                  %s651 = sphi %s611, %s611
                  %s652 = sphi %s607, %s607
                $region122: #{ri_decoder_forward.1} parent=118 // loop_header_branch
                  %649 = sbr.rel (%p647) target = $region126
                $region123: #{ri_decoder_forward.1} parent=118 // loop_body
                  _
                $region124: #{ri_decoder_forward.1} parent=118 // loop_footer
                  %s650 = sadd.s32 1, %s646
                $region125: #{ri_decoder_forward.1} parent=118 // loop_footer_branch
                  %645 = sbr.rel target = $region121
                $region126: #{ri_decoder_forward.1} parent=118 // loop_exit
                  _
                loop: start=0, step=1, limit=1
                $region127: #{ri_decoder_forward.1} parent=118 // loop_pre_header
                  _
                $region128: #{ri_decoder_forward.1} parent=118 // loop_header
                  %s655 = sphi 0, %s659
                  %p656 = scmp.ge.s32.totalorder %s655, 1
                  %s660 = sphi %s611, %s611
                  %s661 = sphi %s607, %s607
                $region129: #{ri_decoder_forward.1} parent=118 // loop_header_branch
                  %658 = sbr.rel (%p656) target = $region133
                $region130: #{ri_decoder_forward.1} parent=118 // loop_body
                  %v662 = vld [vmem:[%s660] sm:$0x3]
                  %663 = vst [vmem:[%s661] sm:$0x3] %v662
                  %v664 = vld [vmem:[%s660 + $0x4] sm:$0x3]
                  %665 = vst [vmem:[%s661 + $0x2] sm:$0x3] %v664
                  %v666 = vld [vmem:[%s660 + $0x8] sm:$0x3]
                  %667 = vst [vmem:[%s661 + $0x4] sm:$0x3] %v666
                  %v668 = vld [vmem:[%s660 + $0xc] sm:$0x3]
                  %669 = vst [vmem:[%s661 + $0x6] sm:$0x3] %v668
                  %v670 = vld [vmem:[%s660 + $0x10] sm:$0x3]
                  %671 = vst [vmem:[%s661 + $0x8] sm:$0x3] %v670
                  %v672 = vld [vmem:[%s660 + $0x14] sm:$0x3]
                  %673 = vst [vmem:[%s661 + $0xa] sm:$0x3] %v672
                  %v674 = vld [vmem:[%s660 + $0x18] sm:$0x3]
                  %675 = vst [vmem:[%s661 + $0xc] sm:$0x3] %v674
                  %v676 = vld [vmem:[%s660 + $0x1c] sm:$0x3]
                  %677 = vst [vmem:[%s661 + $0xe] sm:$0x3] %v676
                $region131: #{ri_decoder_forward.1} parent=118 // loop_footer
                  %s659 = sadd.s32 1, %s655
                $region132: #{ri_decoder_forward.1} parent=118 // loop_footer_branch
                  %654 = sbr.rel target = $region128
                $region133: #{ri_decoder_forward.1} parent=118 // loop_exit
                  _
              $region119: #{ri_decoder_forward.1} parent=103 // pred_fallthru
                _
            $region104: #{ri_decoder_forward.1} parent=99 // pred_fallthru
              _
            // Predicated region
            $region105: #{ri_decoder_forward.1} parent=99 // pred_check
              _
            $region106: #{ri_decoder_forward.1} parent=99 // pred_check_branch
              %617 = sbr.rel (0) target = $region108
            $region107: #{ri_decoder_forward.1} parent=99 // pred_region
              loop: start=0, step=1, limit=1
              $region109: #{ri_decoder_forward.1} parent=107 // loop_pre_header
                _
              $region110: #{ri_decoder_forward.1} parent=107 // loop_header
                %s620 = sphi 0, %s624
                %p621 = scmp.ge.s32.totalorder %s620, 1
                %s625 = sphi %s611, %s611
                %s626 = sphi %s607, %s607
              $region111: #{ri_decoder_forward.1} parent=107 // loop_header_branch
                %623 = sbr.rel (%p621) target = $region115
              $region112: #{ri_decoder_forward.1} parent=107 // loop_body
                %v627 = vld [vmem:[%s625] sm:$0x3]
                %628 = vst [vmem:[%s626] sm:$0x3] %v627
                %v629 = vld [vmem:[%s625 + $0x4] sm:$0x3]
                %630 = vst [vmem:[%s626 + $0x2] sm:$0x3] %v629
                %v631 = vld [vmem:[%s625 + $0x8] sm:$0x3]
                %632 = vst [vmem:[%s626 + $0x4] sm:$0x3] %v631
                %v633 = vld [vmem:[%s625 + $0xc] sm:$0x3]
                %634 = vst [vmem:[%s626 + $0x6] sm:$0x3] %v633
                %v635 = vld [vmem:[%s625 + $0x10] sm:$0x3]
                %636 = vst [vmem:[%s626 + $0x8] sm:$0x3] %v635
                %v637 = vld [vmem:[%s625 + $0x14] sm:$0x3]
                %638 = vst [vmem:[%s626 + $0xa] sm:$0x3] %v637
                %v639 = vld [vmem:[%s625 + $0x18] sm:$0x3]
                %640 = vst [vmem:[%s626 + $0xc] sm:$0x3] %v639
                %v641 = vld [vmem:[%s625 + $0x1c] sm:$0x3]
                %642 = vst [vmem:[%s626 + $0xe] sm:$0x3] %v641
              $region113: #{ri_decoder_forward.1} parent=107 // loop_footer
                %s624 = sadd.s32 1, %s620
              $region114: #{ri_decoder_forward.1} parent=107 // loop_footer_branch
                %619 = sbr.rel target = $region110
              $region115: #{ri_decoder_forward.1} parent=107 // loop_exit
                _
            $region108: #{ri_decoder_forward.1} parent=99 // pred_fallthru
              _
          $region100: #{ri_decoder_forward.1} parent=95 // pred_fallthru
            _
          %678 = vnop
        $region96: #{ri_decoder_forward.1} parent=91 // pred_fallthru
          _
        // Predicated region
        $region134: #{ri_decoder_forward.1} parent=91 // pred_check
          %p679 = pneg %p92
        $region135: #{ri_decoder_forward.1} parent=91 // pred_check_branch
          %681 = sbr.rel (%p679) target = $region137
        $region136: #{ri_decoder_forward.1} parent=91 // pred_region
          %s682 = sand.u32 %s82, 1
          %s683 = sand.u32 %s82, 1
          %s684 = smul.addr %s683, 16
          %s685 = scalar_lea.vmem [#allocation3], %s684
          %s686 = smul.addr %s37, 16
          %s687 = sadd.s32 %s38, %s686
          %s688 = smul.addr %s687, 2
          %s689 = scalar_lea.vmem %s1, %s688
          // Predicated region
          $region138: #{ri_decoder_forward.1} parent=136 // pred_check
            _
          $region139: #{ri_decoder_forward.1} parent=136 // pred_check_branch
            %691 = sbr.rel (0) target = $region141
          $region140: #{ri_decoder_forward.1} parent=136 // pred_region
            // Predicated region
            $region142: #{ri_decoder_forward.1} parent=140 // pred_check
              _
            $region143: #{ri_decoder_forward.1} parent=140 // pred_check_branch
              %693 = sbr.rel target = $region145
            $region144: #{ri_decoder_forward.1} parent=140 // pred_region
              // Predicated region
              $region157: #{ri_decoder_forward.1} parent=144 // pred_check
                _
              $region158: #{ri_decoder_forward.1} parent=144 // pred_check_branch
                %722 = sbr.rel (0) target = $region160
              $region159: #{ri_decoder_forward.1} parent=144 // pred_region
                loop: start=0, step=1, limit=1
                $region161: #{ri_decoder_forward.1} parent=159 // loop_pre_header
                  _
                $region162: #{ri_decoder_forward.1} parent=159 // loop_header
                  %s724 = sphi 0, %s728
                  %p725 = scmp.ge.s32.totalorder %s724, 1
                  %s729 = sphi %s689, %s689
                  %s730 = sphi %s685, %s685
                $region163: #{ri_decoder_forward.1} parent=159 // loop_header_branch
                  %727 = sbr.rel (%p725) target = $region167
                $region164: #{ri_decoder_forward.1} parent=159 // loop_body
                  _
                $region165: #{ri_decoder_forward.1} parent=159 // loop_footer
                  %s728 = sadd.s32 1, %s724
                $region166: #{ri_decoder_forward.1} parent=159 // loop_footer_branch
                  %723 = sbr.rel target = $region162
                $region167: #{ri_decoder_forward.1} parent=159 // loop_exit
                  _
                loop: start=0, step=1, limit=1
                $region168: #{ri_decoder_forward.1} parent=159 // loop_pre_header
                  _
                $region169: #{ri_decoder_forward.1} parent=159 // loop_header
                  %s733 = sphi 0, %s737
                  %p734 = scmp.ge.s32.totalorder %s733, 1
                  %s738 = sphi %s689, %s689
                  %s739 = sphi %s685, %s685
                $region170: #{ri_decoder_forward.1} parent=159 // loop_header_branch
                  %736 = sbr.rel (%p734) target = $region174
                $region171: #{ri_decoder_forward.1} parent=159 // loop_body
                  %v740 = vld [vmem:[%s738] sm:$0x3]
                  %741 = vst [vmem:[%s739] sm:$0x3] %v740
                  %v742 = vld [vmem:[%s738 + $0x4] sm:$0x3]
                  %743 = vst [vmem:[%s739 + $0x2] sm:$0x3] %v742
                  %v744 = vld [vmem:[%s738 + $0x8] sm:$0x3]
                  %745 = vst [vmem:[%s739 + $0x4] sm:$0x3] %v744
                  %v746 = vld [vmem:[%s738 + $0xc] sm:$0x3]
                  %747 = vst [vmem:[%s739 + $0x6] sm:$0x3] %v746
                  %v748 = vld [vmem:[%s738 + $0x10] sm:$0x3]
                  %749 = vst [vmem:[%s739 + $0x8] sm:$0x3] %v748
                  %v750 = vld [vmem:[%s738 + $0x14] sm:$0x3]
                  %751 = vst [vmem:[%s739 + $0xa] sm:$0x3] %v750
                  %v752 = vld [vmem:[%s738 + $0x18] sm:$0x3]
                  %753 = vst [vmem:[%s739 + $0xc] sm:$0x3] %v752
                  %v754 = vld [vmem:[%s738 + $0x1c] sm:$0x3]
                  %755 = vst [vmem:[%s739 + $0xe] sm:$0x3] %v754
                $region172: #{ri_decoder_forward.1} parent=159 // loop_footer
                  %s737 = sadd.s32 1, %s733
                $region173: #{ri_decoder_forward.1} parent=159 // loop_footer_branch
                  %732 = sbr.rel target = $region169
                $region174: #{ri_decoder_forward.1} parent=159 // loop_exit
                  _
              $region160: #{ri_decoder_forward.1} parent=144 // pred_fallthru
                _
            $region145: #{ri_decoder_forward.1} parent=140 // pred_fallthru
              _
            // Predicated region
            $region146: #{ri_decoder_forward.1} parent=140 // pred_check
              _
            $region147: #{ri_decoder_forward.1} parent=140 // pred_check_branch
              %695 = sbr.rel (0) target = $region149
            $region148: #{ri_decoder_forward.1} parent=140 // pred_region
              loop: start=0, step=1, limit=1
              $region150: #{ri_decoder_forward.1} parent=148 // loop_pre_header
                _
              $region151: #{ri_decoder_forward.1} parent=148 // loop_header
                %s698 = sphi 0, %s702
                %p699 = scmp.ge.s32.totalorder %s698, 1
                %s703 = sphi %s689, %s689
                %s704 = sphi %s685, %s685
              $region152: #{ri_decoder_forward.1} parent=148 // loop_header_branch
                %701 = sbr.rel (%p699) target = $region156
              $region153: #{ri_decoder_forward.1} parent=148 // loop_body
                %v705 = vld [vmem:[%s703] sm:$0x3]
                %706 = vst [vmem:[%s704] sm:$0x3] %v705
                %v707 = vld [vmem:[%s703 + $0x4] sm:$0x3]
                %708 = vst [vmem:[%s704 + $0x2] sm:$0x3] %v707
                %v709 = vld [vmem:[%s703 + $0x8] sm:$0x3]
                %710 = vst [vmem:[%s704 + $0x4] sm:$0x3] %v709
                %v711 = vld [vmem:[%s703 + $0xc] sm:$0x3]
                %712 = vst [vmem:[%s704 + $0x6] sm:$0x3] %v711
                %v713 = vld [vmem:[%s703 + $0x10] sm:$0x3]
                %714 = vst [vmem:[%s704 + $0x8] sm:$0x3] %v713
                %v715 = vld [vmem:[%s703 + $0x14] sm:$0x3]
                %716 = vst [vmem:[%s704 + $0xa] sm:$0x3] %v715
                %v717 = vld [vmem:[%s703 + $0x18] sm:$0x3]
                %718 = vst [vmem:[%s704 + $0xc] sm:$0x3] %v717
                %v719 = vld [vmem:[%s703 + $0x1c] sm:$0x3]
                %720 = vst [vmem:[%s704 + $0xe] sm:$0x3] %v719
              $region154: #{ri_decoder_forward.1} parent=148 // loop_footer
                %s702 = sadd.s32 1, %s698
              $region155: #{ri_decoder_forward.1} parent=148 // loop_footer_branch
                %697 = sbr.rel target = $region151
              $region156: #{ri_decoder_forward.1} parent=148 // loop_exit
                _
            $region149: #{ri_decoder_forward.1} parent=140 // pred_fallthru
              _
          $region141: #{ri_decoder_forward.1} parent=136 // pred_fallthru
            _
          %756 = vnop
        $region137: #{ri_decoder_forward.1} parent=91 // pred_fallthru
          _
      $region92: #{ri_decoder_forward.1} parent=5 // pred_fallthru
        _
      %p757 = scmp.le.s32.totalorder 1, %s30
      %p758 = scmp.lt.s32.totalorder %s30, 5
      %p759 = pnand %p757, %p758
      %p760 = pneg %p759
      // Predicated region
      $region175: #{ri_decoder_forward.1} parent=5 // pred_check
        _
      $region176: #{ri_decoder_forward.1} parent=5 // pred_check_branch
        %762 = sbr.rel (%p759) target = $region178
      $region177: #{ri_decoder_forward.1} parent=5 // pred_region
        %s763 = ssub.s32 %s30, 1
        %s764 = sand.u32 %s57, 1
        %s765 = sand.u32 %s57, 1
        %s766 = smul.addr %s765, 16
        %s767 = scalar_lea.vmem [#allocation2], %s766
        // Predicated region
        $region179: #{ri_decoder_forward.1} parent=177 // pred_check
          %p768 = pneg %p70
        $region180: #{ri_decoder_forward.1} parent=177 // pred_check_branch
          %770 = sbr.rel (%p768) target = $region182
        $region181: #{ri_decoder_forward.1} parent=177 // pred_region
          _
        $region182: #{ri_decoder_forward.1} parent=177 // pred_fallthru
          _
        %s771 = sand.u32 %s85, 1
        %s772 = sand.u32 %s85, 1
        %s773 = smul.addr %s772, 16
        %s774 = scalar_lea.vmem [#allocation3], %s773
        // Predicated region
        $region183: #{ri_decoder_forward.1} parent=177 // pred_check
          %p775 = pneg %p98
        $region184: #{ri_decoder_forward.1} parent=177 // pred_check_branch
          %777 = sbr.rel (%p775) target = $region186
        $region185: #{ri_decoder_forward.1} parent=177 // pred_region
          _
        $region186: #{ri_decoder_forward.1} parent=177 // pred_fallthru
          _
        %s778 = sand.u32 %s57, 1
        %s779 = sand.u32 %s57, 1
        %s780 = smul.addr %s779, 16
        %s781 = scalar_lea.vmem [#allocation2], %s780
        %p782 = pneg %p70
        %p783 = pneg %p67
        %s784 = sand.u32 %s85, 1
        %s785 = sand.u32 %s85, 1
        %s786 = smul.addr %s785, 16
        %s787 = scalar_lea.vmem [#allocation3], %s786
        %p788 = pneg %p98
        %p789 = pneg %p95
        %p790 = pneg %p119
        %p791 = pneg %p116
        %p792 = pneg %p140
        %p793 = pneg %p137
        %p794 = pneg %p161
        %p795 = pneg %p158
        %p796 = pneg %p182
        %p797 = pneg %p179
        %p798 = pneg %p203
        %p799 = pneg %p200
        %p800 = pneg %p224
        %p801 = pneg %p221
        %p802 = pneg %p245
        %p803 = pneg %p242
        %p804 = pneg %p266
        %p805 = pneg %p263
        %p806 = pneg %p287
        %p807 = pneg %p284
        %p808 = pneg %p308
        %p809 = pneg %p305
        %p810 = pneg %p329
        %p811 = pneg %p326
        %p812 = pneg %p350
        %p813 = pneg %p347
        %p814 = pneg %p371
        %p815 = pneg %p368
        %p816 = pneg %p392
        %p817 = pneg %p389
        %p818 = pneg %p413
        %p819 = pneg %p410
        %p820 = pneg %p434
        %p821 = pneg %p431
        %p822 = pneg %p455
        %p823 = pneg %p452
        %p824 = pneg %p476
        %p825 = pneg %p473
        %p826 = pneg %p497
        %p827 = pneg %p494
        %p828 = pneg %p525
        %p829 = pneg %p522
        %s830 = sand.u32 %s512, 1
        %s831 = scalar_lea.sflag [#allocation5], %s830
        %s832 = sand.u32 %s512, 1
        %s833 = smul.addr %s832, 128
        %s834 = scalar_lea.vmem [#allocation4], %s833
        %v836 = vld [vmem:[%s2] sm:$0xf]
        %v837 = vld [vmem:[%s2 + $0x4] sm:$0xf]
        %v838 = vld [vmem:[%s4] sm:$0xf]
        %v839 = vld [vmem:[%s4 + $0x4] sm:$0xf]
        %v840 = vld [vmem:[%s4 + $0x8] sm:$0xf]
        %v841 = vld [vmem:[%s4 + $0xc] sm:$0xf]
        %v842 = vld [vmem:[%s6] sm:$0xf]
        %v843 = vld [vmem:[%s6 + $0x4] sm:$0xf]
        %v844 = vld [vmem:[%s6 + $0x8] sm:$0xf]
        %v845 = vld [vmem:[%s6 + $0xc] sm:$0xf]
        %v846 = vld [vmem:[%s3] sm:$0xff]
        %v847 = vld [vmem:[%s3 + $0x8] sm:$0xff]
        %849 = vset.pattern.permute.xlu0 0
        %850 = vperm.xlu0 %849, %v846
        %v851 = vpop.permute.xlu0 %850
        %854 = vset.pattern.permute.xlu0 0
        %855 = vperm.xlu0 %854, %v847
        %v856 = vpop.permute.xlu0 %855
        %v858 = vld [vmem:[%s5] sm:$0xff]
        %v859 = vld [vmem:[%s5 + $0x8] sm:$0xff]
        %v860 = vld [vmem:[%s5 + $0x10] sm:$0xff]
        %v861 = vld [vmem:[%s5 + $0x18] sm:$0xff]
        %863 = vset.pattern.permute.xlu0 0
        %864 = vperm.xlu0 %863, %v858
        %v865 = vpop.permute.xlu0 %864
        %868 = vset.pattern.permute.xlu0 0
        %869 = vperm.xlu0 %868, %v859
        %v870 = vpop.permute.xlu0 %869
        %873 = vset.pattern.permute.xlu0 0
        %874 = vperm.xlu0 %873, %v860
        %v875 = vpop.permute.xlu0 %874
        %878 = vset.pattern.permute.xlu0 0
        %879 = vperm.xlu0 %878, %v861
        %v880 = vpop.permute.xlu0 %879
        %v882 = vld [vmem:[%s7] sm:$0xff]
        %v883 = vld [vmem:[%s7 + $0x8] sm:$0xff]
        %v884 = vld [vmem:[%s7 + $0x10] sm:$0xff]
        %v885 = vld [vmem:[%s7 + $0x18] sm:$0xff]
        %887 = vset.pattern.permute.xlu0 0
        %888 = vperm.xlu0 %887, %v882
        %v889 = vpop.permute.xlu0 %888
        %892 = vset.pattern.permute.xlu0 0
        %893 = vperm.xlu0 %892, %v883
        %v894 = vpop.permute.xlu0 %893
        %897 = vset.pattern.permute.xlu0 0
        %898 = vperm.xlu0 %897, %v884
        %v899 = vpop.permute.xlu0 %898
        %902 = vset.pattern.permute.xlu0 0
        %903 = vperm.xlu0 %902, %v885
        %v904 = vpop.permute.xlu0 %903
        %v906 = vld [vmem:[%s767] sm:$0x3]
        %v909 = vunpack.c.l.b16 %v836
        %v910 = vunpack.c.l.b16 %v837
        %v911 = vpack.c.b16 %v910, %v909
        %vm912 = vcmask 23552
        %v914 = vsel %vm912, %v911, 0
        %vm916 = vcmask 1040384
        %vm917 = vcmask 1041408
        %v918 = vsel %vm916, 4294967295, 65535
        %v919 = vsel %vm917, %v918, 0
        %v921 = vand.u32 %v906, %v919
        %923 = vmatprep.subr.bf16.mxu0 0
        %924 = vmatpush1.bf16.msra.mxu0 %v921
        %925 = vmatprep.subr.bf16.mxu0 0
        %926 = vmatpush1.bf16.msra.mxu0 0
        %927 = vmatprep.subr.bf16.mxu0 0
        %928 = vmatpush1.bf16.msra.mxu0 0
        %929 = vmatprep.subr.bf16.mxu0 0
        %930 = vmatpush1.bf16.msra.mxu0 0
        %931 = vmatprep.subr.bf16.mxu0 0
        %932 = vmatpush1.bf16.msra.mxu0 0
        %933 = vmatprep.subr.bf16.mxu0 0
        %934 = vmatpush1.bf16.msra.mxu0 0
        %935 = vmatprep.subr.bf16.mxu0 0
        %936 = vmatpush1.bf16.msra.mxu0 0
        %937 = vmatprep.subr.bf16.mxu0 0
        %938 = vmatpush1.bf16.msra.mxu0 0
        %939 = vmatprep.subr.bf16.mxu0 0
        %940 = vmatpush1.bf16.msra.mxu0 0
        %941 = vmatprep.subr.bf16.mxu0 0
        %942 = vmatpush1.bf16.msra.mxu0 0
        %943 = vmatprep.subr.bf16.mxu0 0
        %944 = vmatpush1.bf16.msra.mxu0 0
        %945 = vmatprep.subr.bf16.mxu0 0
        %946 = vmatpush1.bf16.msra.mxu0 0
        %947 = vmatprep.subr.bf16.mxu0 0
        %948 = vmatpush1.bf16.msra.mxu0 0
        %949 = vmatprep.subr.bf16.mxu0 0
        %950 = vmatpush1.bf16.msra.mxu0 0
        %951 = vmatprep.subr.bf16.mxu0 0
        %952 = vmatpush1.bf16.msra.mxu0 0
        %953 = vmatprep.subr.bf16.mxu0 0
        %954 = vmatpush1.bf16.msra.mxu0 0
        %955 = vmatprep.mubr.bf16.mxu0 0
        %956 = vmatmul.mubr.bf16.gmra.mrb[0].mxu0 %v914
        %v957 = vpop.f32.mrb[0].mxu0
        %v958 = vadd.f32 %v851, %v957
        %v959 = vpop.f32.mrb[0].mxu0
        %v960 = vpop.f32.mrb[0].mxu0
        %v961 = vadd.f32 %v856, %v960
        %v962 = vpop.f32.mrb[0].mxu0
        %963 = vdwg.mxu0
        %v964 = vmax.f32 %v958, 0.0
        %v965 = vmax.f32 %v961, 0.0
        %v966 = vpack.c.bf16 %v965, %v964
        %v971 = vunpack.c.l.b16 %v838
        %v972 = vunpack.c.l.b16 %v839
        %v973 = vunpack.c.l.b16 %v840
        %v974 = vunpack.c.l.b16 %v841
        %v975 = vpack.c.b16 %v972, %v971
        %v976 = vpack.c.b16 %v974, %v973
        %vm977 = vcmask 130048
        %v979 = vsel %vm977, %v975, 0
        %v982 = vsel %vm977, %v976, 0
        %984 = vmatprep.subr.bf16.mxu0 0
        %985 = vmatpush1.bf16.msra.mxu0 %v966
        %986 = vmatprep.subr.bf16.mxu0 0
        %987 = vmatpush1.bf16.msra.mxu0 0
        %988 = vmatprep.subr.bf16.mxu0 0
        %989 = vmatpush1.bf16.msra.mxu0 0
        %990 = vmatprep.subr.bf16.mxu0 0
        %991 = vmatpush1.bf16.msra.mxu0 0
        %992 = vmatprep.subr.bf16.mxu0 0
        %993 = vmatpush1.bf16.msra.mxu0 0
        %994 = vmatprep.subr.bf16.mxu0 0
        %995 = vmatpush1.bf16.msra.mxu0 0
        %996 = vmatprep.subr.bf16.mxu0 0
        %997 = vmatpush1.bf16.msra.mxu0 0
        %998 = vmatprep.subr.bf16.mxu0 0
        %999 = vmatpush1.bf16.msra.mxu0 0
        %1000 = vmatprep.subr.bf16.mxu0 0
        %1001 = vmatpush1.bf16.msra.mxu0 0
        %1002 = vmatprep.subr.bf16.mxu0 0
        %1003 = vmatpush1.bf16.msra.mxu0 0
        %1004 = vmatprep.subr.bf16.mxu0 0
        %1005 = vmatpush1.bf16.msra.mxu0 0
        %1006 = vmatprep.subr.bf16.mxu0 0
        %1007 = vmatpush1.bf16.msra.mxu0 0
        %1008 = vmatprep.subr.bf16.mxu0 0
        %1009 = vmatpush1.bf16.msra.mxu0 0
        %1010 = vmatprep.subr.bf16.mxu0 0
        %1011 = vmatpush1.bf16.msra.mxu0 0
        %1012 = vmatprep.subr.bf16.mxu0 0
        %1013 = vmatpush1.bf16.msra.mxu0 0
        %1014 = vmatprep.subr.bf16.mxu0 0
        %1015 = vmatpush1.bf16.msra.mxu0 0
        %1016 = vmatprep.mubr.bf16.mxu0 0
        %1017 = vmatmul.mubr.bf16.gmra.mrb[0].mxu0 %v979
        %v1018 = vpop.f32.mrb[0].mxu0
        %v1019 = vadd.f32 %v865, %v1018
        %v1020 = vpop.f32.mrb[0].mxu0
        %v1021 = vpop.f32.mrb[0].mxu0
        %v1022 = vadd.f32 %v870, %v1021
        %v1023 = vpop.f32.mrb[0].mxu0
        %1024 = vmatprep.mubr.bf16.mxu0 0
        %1025 = vmatmul.mubr.bf16.gmra.mrb[0].mxu0 %v982
        %v1026 = vpop.f32.mrb[0].mxu0
        %v1027 = vadd.f32 %v875, %v1026
        %v1028 = vpop.f32.mrb[0].mxu0
        %v1029 = vpop.f32.mrb[0].mxu0
        %v1030 = vadd.f32 %v880, %v1029
        %v1031 = vpop.f32.mrb[0].mxu0
        %1032 = vdwg.mxu0
        %v1033 = vmax.f32 %v1019, 0.0
        %v1034 = vmax.f32 %v1022, 0.0
        %v1035 = vmax.f32 %v1027, 0.0
        %v1036 = vmax.f32 %v1030, 0.0
        %v1037 = vpack.c.bf16 %v1034, %v1033
        %v1038 = vpack.c.bf16 %v1036, %v1035
        %v1043 = vunpack.c.l.b16 %v842
        %v1044 = vunpack.c.l.b16 %v843
        %v1045 = vunpack.c.l.b16 %v844
        %v1046 = vunpack.c.l.b16 %v845
        %v1047 = vpack.c.b16 %v1044, %v1043
        %v1048 = vpack.c.b16 %v1046, %v1045
        %vm1049 = vcmask 261120
        %v1051 = vsel %vm1049, %v1047, 0
        %v1054 = vsel %vm1049, %v1048, 0
        %1056 = vmatprep.subr.bf16.mxu0 0
        %1057 = vmatpush1.bf16.msra.mxu0 %v1037
        %1058 = vmatprep.subr.bf16.mxu0 0
        %1059 = vmatpush1.bf16.msra.mxu0 %v1038
        %1060 = vmatprep.subr.bf16.mxu0 0
        %1061 = vmatpush1.bf16.msra.mxu0 0
        %1062 = vmatprep.subr.bf16.mxu0 0
        %1063 = vmatpush1.bf16.msra.mxu0 0
        %1064 = vmatprep.subr.bf16.mxu0 0
        %1065 = vmatpush1.bf16.msra.mxu0 0
        %1066 = vmatprep.subr.bf16.mxu0 0
        %1067 = vmatpush1.bf16.msra.mxu0 0
        %1068 = vmatprep.subr.bf16.mxu0 0
        %1069 = vmatpush1.bf16.msra.mxu0 0
        %1070 = vmatprep.subr.bf16.mxu0 0
        %1071 = vmatpush1.bf16.msra.mxu0 0
        %1072 = vmatprep.subr.bf16.mxu0 0
        %1073 = vmatpush1.bf16.msra.mxu0 0
        %1074 = vmatprep.subr.bf16.mxu0 0
        %1075 = vmatpush1.bf16.msra.mxu0 0
        %1076 = vmatprep.subr.bf16.mxu0 0
        %1077 = vmatpush1.bf16.msra.mxu0 0
        %1078 = vmatprep.subr.bf16.mxu0 0
        %1079 = vmatpush1.bf16.msra.mxu0 0
        %1080 = vmatprep.subr.bf16.mxu0 0
        %1081 = vmatpush1.bf16.msra.mxu0 0
        %1082 = vmatprep.subr.bf16.mxu0 0
        %1083 = vmatpush1.bf16.msra.mxu0 0
        %1084 = vmatprep.subr.bf16.mxu0 0
        %1085 = vmatpush1.bf16.msra.mxu0 0
        %1086 = vmatprep.subr.bf16.mxu0 0
        %1087 = vmatpush1.bf16.msra.mxu0 0
        %1088 = vmatprep.mubr.bf16.mxu0 0
        %1089 = vmatmul.mubr.bf16.gmra.mrb[0].mxu0 %v1051
        %v1090 = vpop.f32.mrb[0].mxu0
        %v1091 = vadd.f32 %v889, %v1090
        %v1092 = vpop.f32.mrb[0].mxu0
        %v1093 = vpop.f32.mrb[0].mxu0
        %v1094 = vadd.f32 %v894, %v1093
        %v1095 = vpop.f32.mrb[0].mxu0
        %1096 = vmatprep.mubr.bf16.mxu0 0
        %1097 = vmatmul.mubr.bf16.gmra.mrb[0].mxu0 %v1054
        %v1098 = vpop.f32.mrb[0].mxu0
        %v1099 = vadd.f32 %v899, %v1098
        %v1100 = vpop.f32.mrb[0].mxu0
        %v1101 = vpop.f32.mrb[0].mxu0
        %v1102 = vadd.f32 %v904, %v1101
        %v1103 = vpop.f32.mrb[0].mxu0
        %1104 = vdwg.mxu0
        %s1105 = scalar_lea.vmem %s767, 2 [#allocation2]
        %v1106 = vld [vmem:[%s1105] sm:$0x3]
        %v1108 = vand.u32 %v1106, %v919
        %1110 = vmatprep.subr.bf16.mxu0 0
        %1111 = vmatpush1.bf16.msra.mxu0 %v1108
        %1112 = vmatprep.subr.bf16.mxu0 0
        %1113 = vmatpush1.bf16.msra.mxu0 0
        %1114 = vmatprep.subr.bf16.mxu0 0
        %1115 = vmatpush1.bf16.msra.mxu0 0
        %1116 = vmatprep.subr.bf16.mxu0 0
        %1117 = vmatpush1.bf16.msra.mxu0 0
        %1118 = vmatprep.subr.bf16.mxu0 0
        %1119 = vmatpush1.bf16.msra.mxu0 0
        %1120 = vmatprep.subr.bf16.mxu0 0
        %1121 = vmatpush1.bf16.msra.mxu0 0
        %1122 = vmatprep.subr.bf16.mxu0 0
        %1123 = vmatpush1.bf16.msra.mxu0 0
        %1124 = vmatprep.subr.bf16.mxu0 0
        %1125 = vmatpush1.bf16.msra.mxu0 0
        %1126 = vmatprep.subr.bf16.mxu0 0
        %1127 = vmatpush1.bf16.msra.mxu0 0
        %1128 = vmatprep.subr.bf16.mxu0 0
        %1129 = vmatpush1.bf16.msra.mxu0 0
        %1130 = vmatprep.subr.bf16.mxu0 0
        %1131 = vmatpush1.bf16.msra.mxu0 0
        %1132 = vmatprep.subr.bf16.mxu0 0
        %1133 = vmatpush1.bf16.msra.mxu0 0
        %1134 = vmatprep.subr.bf16.mxu0 0
        %1135 = vmatpush1.bf16.msra.mxu0 0
        %1136 = vmatprep.subr.bf16.mxu0 0
        %1137 = vmatpush1.bf16.msra.mxu0 0
        %1138 = vmatprep.subr.bf16.mxu0 0
        %1139 = vmatpush1.bf16.msra.mxu0 0
        %1140 = vmatprep.subr.bf16.mxu0 0
        %1141 = vmatpush1.bf16.msra.mxu0 0
        %1142 = vmatprep.mubr.bf16.mxu0 0
        %1143 = vmatmul.mubr.bf16.gmra.mrb[0].mxu0 %v914
        %v1144 = vpop.f32.mrb[0].mxu0
        %v1145 = vadd.f32 %v851, %v1144
        %v1146 = vpop.f32.mrb[0].mxu0
        %v1147 = vpop.f32.mrb[0].mxu0
        %v1148 = vadd.f32 %v856, %v1147
        %v1149 = vpop.f32.mrb[0].mxu0
        %1150 = vdwg.mxu0
        %v1151 = vmax.f32 %v1145, 0.0
        %v1152 = vmax.f32 %v1148, 0.0
        %v1153 = vpack.c.bf16 %v1152, %v1151
        %1154 = vmatprep.subr.bf16.mxu0 0
        %1155 = vmatpush1.bf16.msra.mxu0 %v1153
        %1156 = vmatprep.subr.bf16.mxu0 0
        %1157 = vmatpush1.bf16.msra.mxu0 0
        %1158 = vmatprep.subr.bf16.mxu0 0
        %1159 = vmatpush1.bf16.msra.mxu0 0
        %1160 = vmatprep.subr.bf16.mxu0 0
        %1161 = vmatpush1.bf16.msra.mxu0 0
        %1162 = vmatprep.subr.bf16.mxu0 0
        %1163 = vmatpush1.bf16.msra.mxu0 0
        %1164 = vmatprep.subr.bf16.mxu0 0
        %1165 = vmatpush1.bf16.msra.mxu0 0
        %1166 = vmatprep.subr.bf16.mxu0 0
        %1167 = vmatpush1.bf16.msra.mxu0 0
        %1168 = vmatprep.subr.bf16.mxu0 0
        %1169 = vmatpush1.bf16.msra.mxu0 0
        %1170 = vmatprep.subr.bf16.mxu0 0
        %1171 = vmatpush1.bf16.msra.mxu0 0
        %1172 = vmatprep.subr.bf16.mxu0 0
        %1173 = vmatpush1.bf16.msra.mxu0 0
        %1174 = vmatprep.subr.bf16.mxu0 0
        %1175 = vmatpush1.bf16.msra.mxu0 0
        %1176 = vmatprep.subr.bf16.mxu0 0
        %1177 = vmatpush1.bf16.msra.mxu0 0
        %1178 = vmatprep.subr.bf16.mxu0 0
        %1179 = vmatpush1.bf16.msra.mxu0 0
        %1180 = vmatprep.subr.bf16.mxu0 0
        %1181 = vmatpush1.bf16.msra.mxu0 0
        %1182 = vmatprep.subr.bf16.mxu0 0
        %1183 = vmatpush1.bf16.msra.mxu0 0
        %1184 = vmatprep.subr.bf16.mxu0 0
        %1185 = vmatpush1.bf16.msra.mxu0 0
        %1186 = vmatprep.mubr.bf16.mxu0 0
        %1187 = vmatmul.mubr.bf16.gmra.mrb[0].mxu0 %v979
        %v1188 = vpop.f32.mrb[0].mxu0
        %v1189 = vadd.f32 %v865, %v1188
        %v1190 = vpop.f32.mrb[0].mxu0
        %v1191 = vpop.f32.mrb[0].mxu0
        %v1192 = vadd.f32 %v870, %v1191
        %v1193 = vpop.f32.mrb[0].mxu0
        %1194 = vmatprep.mubr.bf16.mxu0 0
        %1195 = vmatmul.mubr.bf16.gmra.mrb[0].mxu0 %v982
        %v1196 = vpop.f32.mrb[0].mxu0
        %v1197 = vadd.f32 %v875, %v1196
        %v1198 = vpop.f32.mrb[0].mxu0
        %v1199 = vpop.f32.mrb[0].mxu0
        %v1200 = vadd.f32 %v880, %v1199
        %v1201 = vpop.f32.mrb[0].mxu0
        %1202 = vdwg.mxu0
        %v1203 = vmax.f32 %v1189, 0.0
        %v1204 = vmax.f32 %v1192, 0.0
        %v1205 = vmax.f32 %v1197, 0.0
        %v1206 = vmax.f32 %v1200, 0.0
        %v1207 = vpack.c.bf16 %v1204, %v1203
        %v1208 = vpack.c.bf16 %v1206, %v1205
        %1209 = vmatprep.subr.bf16.mxu0 0
        %1210 = vmatpush1.bf16.msra.mxu0 %v1207
        %1211 = vmatprep.subr.bf16.mxu0 0
        %1212 = vmatpush1.bf16.msra.mxu0 %v1208
        %1213 = vmatprep.subr.bf16.mxu0 0
        %1214 = vmatpush1.bf16.msra.mxu0 0
        %1215 = vmatprep.subr.bf16.mxu0 0
        %1216 = vmatpush1.bf16.msra.mxu0 0
        %1217 = vmatprep.subr.bf16.mxu0 0
        %1218 = vmatpush1.bf16.msra.mxu0 0
        %1219 = vmatprep.subr.bf16.mxu0 0
        %1220 = vmatpush1.bf16.msra.mxu0 0
        %1221 = vmatprep.subr.bf16.mxu0 0
        %1222 = vmatpush1.bf16.msra.mxu0 0
        %1223 = vmatprep.subr.bf16.mxu0 0
        %1224 = vmatpush1.bf16.msra.mxu0 0
        %1225 = vmatprep.subr.bf16.mxu0 0
        %1226 = vmatpush1.bf16.msra.mxu0 0
        %1227 = vmatprep.subr.bf16.mxu0 0
        %1228 = vmatpush1.bf16.msra.mxu0 0
        %1229 = vmatprep.subr.bf16.mxu0 0
        %1230 = vmatpush1.bf16.msra.mxu0 0
        %1231 = vmatprep.subr.bf16.mxu0 0
        %1232 = vmatpush1.bf16.msra.mxu0 0
        %1233 = vmatprep.subr.bf16.mxu0 0
        %1234 = vmatpush1.bf16.msra.mxu0 0
        %1235 = vmatprep.subr.bf16.mxu0 0
        %1236 = vmatpush1.bf16.msra.mxu0 0
        %1237 = vmatprep.subr.bf16.mxu0 0
        %1238 = vmatpush1.bf16.msra.mxu0 0
        %1239 = vmatprep.subr.bf16.mxu0 0
        %1240 = vmatpush1.bf16.msra.mxu0 0
        %1241 = vmatprep.mubr.bf16.mxu0 0
        %1242 = vmatmul.mubr.bf16.gmra.mrb[0].mxu0 %v1051
        %v1243 = vpop.f32.mrb[0].mxu0
        %v1244 = vadd.f32 %v889, %v1243
        %v1245 = vpop.f32.mrb[0].mxu0
        %v1246 = vpop.f32.mrb[0].mxu0
        %v1247 = vadd.f32 %v894, %v1246
        %v1248 = vpop.f32.mrb[0].mxu0
        %1249 = vmatprep.mubr.bf16.mxu0 0
        %1250 = vmatmul.mubr.bf16.gmra.mrb[0].mxu0 %v1054
        %v1251 = vpop.f32.mrb[0].mxu0
        %v1252 = vadd.f32 %v899, %v1251
        %v1253 = vpop.f32.mrb[0].mxu0
        %v1254 = vpop.f32.mrb[0].mxu0
        %v1255 = vadd.f32 %v904, %v1254
        %v1256 = vpop.f32.mrb[0].mxu0
        %1257 = vdwg.mxu0
        %v1258 = vmax.f32 %v1091, %v1244
        %v1259 = vmax.f32 %v1094, %v1247
        %v1260 = vmax.f32 %v1099, %v1252
        %v1261 = vmax.f32 %v1102, %v1255
        %s1262 = scalar_lea.vmem %s767, 4 [#allocation2]
        %v1263 = vld [vmem:[%s1262] sm:$0x3]
        %v1265 = vand.u32 %v1263, %v919
        %1267 = vmatprep.subr.bf16.mxu0 0
        %1268 = vmatpush1.bf16.msra.mxu0 %v1265
        %1269 = vmatprep.subr.bf16.mxu0 0
        %1270 = vmatpush1.bf16.msra.mxu0 0
        %1271 = vmatprep.subr.bf16.mxu0 0
        %1272 = vmatpush1.bf16.msra.mxu0 0
        %1273 = vmatprep.subr.bf16.mxu0 0
        %1274 = vmatpush1.bf16.msra.mxu0 0
        %1275 = vmatprep.subr.bf16.mxu0 0
        %1276 = vmatpush1.bf16.msra.mxu0 0
        %1277 = vmatprep.subr.bf16.mxu0 0
        %1278 = vmatpush1.bf16.msra.mxu0 0
        %1279 = vmatprep.subr.bf16.mxu0 0
        %1280 = vmatpush1.bf16.msra.mxu0 0
        %1281 = vmatprep.subr.bf16.mxu0 0
        %1282 = vmatpush1.bf16.msra.mxu0 0
        %1283 = vmatprep.subr.bf16.mxu0 0
        %1284 = vmatpush1.bf16.msra.mxu0 0
        %1285 = vmatprep.subr.bf16.mxu0 0
        %1286 = vmatpush1.bf16.msra.mxu0 0
        %1287 = vmatprep.subr.bf16.mxu0 0
        %1288 = vmatpush1.bf16.msra.mxu0 0
        %1289 = vmatprep.subr.bf16.mxu0 0
        %1290 = vmatpush1.bf16.msra.mxu0 0
        %1291 = vmatprep.subr.bf16.mxu0 0
        %1292 = vmatpush1.bf16.msra.mxu0 0
        %1293 = vmatprep.subr.bf16.mxu0 0
        %1294 = vmatpush1.bf16.msra.mxu0 0
        %1295 = vmatprep.subr.bf16.mxu0 0
        %1296 = vmatpush1.bf16.msra.mxu0 0
        %1297 = vmatprep.subr.bf16.mxu0 0
        %1298 = vmatpush1.bf16.msra.mxu0 0
        %1299 = vmatprep.mubr.bf16.mxu0 0
        %1300 = vmatmul.mubr.bf16.gmra.mrb[0].mxu0 %v914
        %v1301 = vpop.f32.mrb[0].mxu0
        %v1302 = vadd.f32 %v851, %v1301
        %v1303 = vpop.f32.mrb[0].mxu0
        %v1304 = vpop.f32.mrb[0].mxu0
        %v1305 = vadd.f32 %v856, %v1304
        %v1306 = vpop.f32.mrb[0].mxu0
        %1307 = vdwg.mxu0
        %v1308 = vmax.f32 %v1302, 0.0
        %v1309 = vmax.f32 %v1305, 0.0
        %v1310 = vpack.c.bf16 %v1309, %v1308
        %1311 = vmatprep.subr.bf16.mxu0 0
        %1312 = vmatpush1.bf16.msra.mxu0 %v1310
        %1313 = vmatprep.subr.bf16.mxu0 0
        %1314 = vmatpush1.bf16.msra.mxu0 0
        %1315 = vmatprep.subr.bf16.mxu0 0
        %1316 = vmatpush1.bf16.msra.mxu0 0
        %1317 = vmatprep.subr.bf16.mxu0 0
        %1318 = vmatpush1.bf16.msra.mxu0 0
        %1319 = vmatprep.subr.bf16.mxu0 0
        %1320 = vmatpush1.bf16.msra.mxu0 0
        %1321 = vmatprep.subr.bf16.mxu0 0
        %1322 = vmatpush1.bf16.msra.mxu0 0
        %1323 = vmatprep.subr.bf16.mxu0 0
        %1324 = vmatpush1.bf16.msra.mxu0 0
        %1325 = vmatprep.subr.bf16.mxu0 0
        %1326 = vmatpush1.bf16.msra.mxu0 0
        %1327 = vmatprep.subr.bf16.mxu0 0
        %1328 = vmatpush1.bf16.msra.mxu0 0
        %1329 = vmatprep.subr.bf16.mxu0 0
        %1330 = vmatpush1.bf16.msra.mxu0 0
        %1331 = vmatprep.subr.bf16.mxu0 0
        %1332 = vmatpush1.bf16.msra.mxu0 0
        %1333 = vmatprep.subr.bf16.mxu0 0
        %1334 = vmatpush1.bf16.msra.mxu0 0
        %1335 = vmatprep.subr.bf16.mxu0 0
        %1336 = vmatpush1.bf16.msra.mxu0 0
        %1337 = vmatprep.subr.bf16.mxu0 0
        %1338 = vmatpush1.bf16.msra.mxu0 0
        %1339 = vmatprep.subr.bf16.mxu0 0
        %1340 = vmatpush1.bf16.msra.mxu0 0
        %1341 = vmatprep.subr.bf16.mxu0 0
        %1342 = vmatpush1.bf16.msra.mxu0 0
        %1343 = vmatprep.mubr.bf16.mxu0 0
        %1344 = vmatmul.mubr.bf16.gmra.mrb[0].mxu0 %v979
        %v1345 = vpop.f32.mrb[0].mxu0
        %v1346 = vadd.f32 %v865, %v1345
        %v1347 = vpop.f32.mrb[0].mxu0
        %v1348 = vpop.f32.mrb[0].mxu0
        %v1349 = vadd.f32 %v870, %v1348
        %v1350 = vpop.f32.mrb[0].mxu0
        %1351 = vmatprep.mubr.bf16.mxu0 0
        %1352 = vmatmul.mubr.bf16.gmra.mrb[0].mxu0 %v982
        %v1353 = vpop.f32.mrb[0].mxu0
        %v1354 = vadd.f32 %v875, %v1353
        %v1355 = vpop.f32.mrb[0].mxu0
        %v1356 = vpop.f32.mrb[0].mxu0
        %v1357 = vadd.f32 %v880, %v1356
        %v1358 = vpop.f32.mrb[0].mxu0
        %1359 = vdwg.mxu0
        %v1360 = vmax.f32 %v1346, 0.0
        %v1361 = vmax.f32 %v1349, 0.0
        %v1362 = vmax.f32 %v1354, 0.0
        %v1363 = vmax.f32 %v1357, 0.0
        %v1364 = vpack.c.bf16 %v1361, %v1360
        %v1365 = vpack.c.bf16 %v1363, %v1362
        %1366 = vmatprep.subr.bf16.mxu0 0
        %1367 = vmatpush1.bf16.msra.mxu0 %v1364
        %1368 = vmatprep.subr.bf16.mxu0 0
        %1369 = vmatpush1.bf16.msra.mxu0 %v1365
        %1370 = vmatprep.subr.bf16.mxu0 0
        %1371 = vmatpush1.bf16.msra.mxu0 0
        %1372 = vmatprep.subr.bf16.mxu0 0
        %1373 = vmatpush1.bf16.msra.mxu0 0
        %1374 = vmatprep.subr.bf16.mxu0 0
        %1375 = vmatpush1.bf16.msra.mxu0 0
        %1376 = vmatprep.subr.bf16.mxu0 0
        %1377 = vmatpush1.bf16.msra.mxu0 0
        %1378 = vmatprep.subr.bf16.mxu0 0
        %1379 = vmatpush1.bf16.msra.mxu0 0
        %1380 = vmatprep.subr.bf16.mxu0 0
        %1381 = vmatpush1.bf16.msra.mxu0 0
        %1382 = vmatprep.subr.bf16.mxu0 0
        %1383 = vmatpush1.bf16.msra.mxu0 0
        %1384 = vmatprep.subr.bf16.mxu0 0
        %1385 = vmatpush1.bf16.msra.mxu0 0
        %1386 = vmatprep.subr.bf16.mxu0 0
        %1387 = vmatpush1.bf16.msra.mxu0 0
        %1388 = vmatprep.subr.bf16.mxu0 0
        %1389 = vmatpush1.bf16.msra.mxu0 0
        %1390 = vmatprep.subr.bf16.mxu0 0
        %1391 = vmatpush1.bf16.msra.mxu0 0
        %1392 = vmatprep.subr.bf16.mxu0 0
        %1393 = vmatpush1.bf16.msra.mxu0 0
        %1394 = vmatprep.subr.bf16.mxu0 0
        %1395 = vmatpush1.bf16.msra.mxu0 0
        %1396 = vmatprep.subr.bf16.mxu0 0
        %1397 = vmatpush1.bf16.msra.mxu0 0
        %1398 = vmatprep.mubr.bf16.mxu0 0
        %1399 = vmatmul.mubr.bf16.gmra.mrb[0].mxu0 %v1051
        %v1400 = vpop.f32.mrb[0].mxu0
        %v1401 = vadd.f32 %v889, %v1400
        %v1402 = vpop.f32.mrb[0].mxu0
        %v1403 = vpop.f32.mrb[0].mxu0
        %v1404 = vadd.f32 %v894, %v1403
        %v1405 = vpop.f32.mrb[0].mxu0
        %1406 = vmatprep.mubr.bf16.mxu0 0
        %1407 = vmatmul.mubr.bf16.gmra.mrb[0].mxu0 %v1054
        %v1408 = vpop.f32.mrb[0].mxu0
        %v1409 = vadd.f32 %v899, %v1408
        %v1410 = vpop.f32.mrb[0].mxu0
        %v1411 = vpop.f32.mrb[0].mxu0
        %v1412 = vadd.f32 %v904, %v1411
        %v1413 = vpop.f32.mrb[0].mxu0
        %1414 = vdwg.mxu0
        %v1415 = vmax.f32 %v1258, %v1401
        %v1416 = vmax.f32 %v1259, %v1404
        %v1417 = vmax.f32 %v1260, %v1409
        %v1418 = vmax.f32 %v1261, %v1412
        %s1419 = scalar_lea.vmem %s767, 6 [#allocation2]
        %v1420 = vld [vmem:[%s1419] sm:$0x3]
        %v1422 = vand.u32 %v1420, %v919
        %1424 = vmatprep.subr.bf16.mxu0 0
        %1425 = vmatpush1.bf16.msra.mxu0 %v1422
        %1426 = vmatprep.subr.bf16.mxu0 0
        %1427 = vmatpush1.bf16.msra.mxu0 0
        %1428 = vmatprep.subr.bf16.mxu0 0
        %1429 = vmatpush1.bf16.msra.mxu0 0
        %1430 = vmatprep.subr.bf16.mxu0 0
        %1431 = vmatpush1.bf16.msra.mxu0 0
        %1432 = vmatprep.subr.bf16.mxu0 0
        %1433 = vmatpush1.bf16.msra.mxu0 0
        %1434 = vmatprep.subr.bf16.mxu0 0
        %1435 = vmatpush1.bf16.msra.mxu0 0
        %1436 = vmatprep.subr.bf16.mxu0 0
        %1437 = vmatpush1.bf16.msra.mxu0 0
        %1438 = vmatprep.subr.bf16.mxu0 0
        %1439 = vmatpush1.bf16.msra.mxu0 0
        %1440 = vmatprep.subr.bf16.mxu0 0
        %1441 = vmatpush1.bf16.msra.mxu0 0
        %1442 = vmatprep.subr.bf16.mxu0 0
        %1443 = vmatpush1.bf16.msra.mxu0 0
        %1444 = vmatprep.subr.bf16.mxu0 0
        %1445 = vmatpush1.bf16.msra.mxu0 0
        %1446 = vmatprep.subr.bf16.mxu0 0
        %1447 = vmatpush1.bf16.msra.mxu0 0
        %1448 = vmatprep.subr.bf16.mxu0 0
        %1449 = vmatpush1.bf16.msra.mxu0 0
        %1450 = vmatprep.subr.bf16.mxu0 0
        %1451 = vmatpush1.bf16.msra.mxu0 0
        %1452 = vmatprep.subr.bf16.mxu0 0
        %1453 = vmatpush1.bf16.msra.mxu0 0
        %1454 = vmatprep.subr.bf16.mxu0 0
        %1455 = vmatpush1.bf16.msra.mxu0 0
        %1456 = vmatprep.mubr.bf16.mxu0 0
        %1457 = vmatmul.mubr.bf16.gmra.mrb[0].mxu0 %v914
        %v1458 = vpop.f32.mrb[0].mxu0
        %v1459 = vadd.f32 %v851, %v1458
        %v1460 = vpop.f32.mrb[0].mxu0
        %v1461 = vpop.f32.mrb[0].mxu0
        %v1462 = vadd.f32 %v856, %v1461
        %v1463 = vpop.f32.mrb[0].mxu0
        %1464 = vdwg.mxu0
        %v1465 = vmax.f32 %v1459, 0.0
        %v1466 = vmax.f32 %v1462, 0.0
        %v1467 = vpack.c.bf16 %v1466, %v1465
        %1468 = vmatprep.subr.bf16.mxu0 0
        %1469 = vmatpush1.bf16.msra.mxu0 %v1467
        %1470 = vmatprep.subr.bf16.mxu0 0
        %1471 = vmatpush1.bf16.msra.mxu0 0
        %1472 = vmatprep.subr.bf16.mxu0 0
        %1473 = vmatpush1.bf16.msra.mxu0 0
        %1474 = vmatprep.subr.bf16.mxu0 0
        %1475 = vmatpush1.bf16.msra.mxu0 0
        %1476 = vmatprep.subr.bf16.mxu0 0
        %1477 = vmatpush1.bf16.msra.mxu0 0
        %1478 = vmatprep.subr.bf16.mxu0 0
        %1479 = vmatpush1.bf16.msra.mxu0 0
        %1480 = vmatprep.subr.bf16.mxu0 0
        %1481 = vmatpush1.bf16.msra.mxu0 0
        %1482 = vmatprep.subr.bf16.mxu0 0
        %1483 = vmatpush1.bf16.msra.mxu0 0
        %1484 = vmatprep.subr.bf16.mxu0 0
        %1485 = vmatpush1.bf16.msra.mxu0 0
        %1486 = vmatprep.subr.bf16.mxu0 0
        %1487 = vmatpush1.bf16.msra.mxu0 0
        %1488 = vmatprep.subr.bf16.mxu0 0
        %1489 = vmatpush1.bf16.msra.mxu0 0
        %1490 = vmatprep.subr.bf16.mxu0 0
        %1491 = vmatpush1.bf16.msra.mxu0 0
        %1492 = vmatprep.subr.bf16.mxu0 0
        %1493 = vmatpush1.bf16.msra.mxu0 0
        %1494 = vmatprep.subr.bf16.mxu0 0
        %1495 = vmatpush1.bf16.msra.mxu0 0
        %1496 = vmatprep.subr.bf16.mxu0 0
        %1497 = vmatpush1.bf16.msra.mxu0 0
        %1498 = vmatprep.subr.bf16.mxu0 0
        %1499 = vmatpush1.bf16.msra.mxu0 0
        %1500 = vmatprep.mubr.bf16.mxu0 0
        %1501 = vmatmul.mubr.bf16.gmra.mrb[0].mxu0 %v979
        %v1502 = vpop.f32.mrb[0].mxu0
        %v1503 = vadd.f32 %v865, %v1502
        %v1504 = vpop.f32.mrb[0].mxu0
        %v1505 = vpop.f32.mrb[0].mxu0
        %v1506 = vadd.f32 %v870, %v1505
        %v1507 = vpop.f32.mrb[0].mxu0
        %1508 = vmatprep.mubr.bf16.mxu0 0
        %1509 = vmatmul.mubr.bf16.gmra.mrb[0].mxu0 %v982
        %v1510 = vpop.f32.mrb[0].mxu0
        %v1511 = vadd.f32 %v875, %v1510
        %v1512 = vpop.f32.mrb[0].mxu0
        %v1513 = vpop.f32.mrb[0].mxu0
        %v1514 = vadd.f32 %v880, %v1513
        %v1515 = vpop.f32.mrb[0].mxu0
        %1516 = vdwg.mxu0
        %v1517 = vmax.f32 %v1503, 0.0
        %v1518 = vmax.f32 %v1506, 0.0
        %v1519 = vmax.f32 %v1511, 0.0
        %v1520 = vmax.f32 %v1514, 0.0
        %v1521 = vpack.c.bf16 %v1518, %v1517
        %v1522 = vpack.c.bf16 %v1520, %v1519
        %1523 = vmatprep.subr.bf16.mxu0 0
        %1524 = vmatpush1.bf16.msra.mxu0 %v1521
        %1525 = vmatprep.subr.bf16.mxu0 0
        %1526 = vmatpush1.bf16.msra.mxu0 %v1522
        %1527 = vmatprep.subr.bf16.mxu0 0
        %1528 = vmatpush1.bf16.msra.mxu0 0
        %1529 = vmatprep.subr.bf16.mxu0 0
        %1530 = vmatpush1.bf16.msra.mxu0 0
        %1531 = vmatprep.subr.bf16.mxu0 0
        %1532 = vmatpush1.bf16.msra.mxu0 0
        %1533 = vmatprep.subr.bf16.mxu0 0
        %1534 = vmatpush1.bf16.msra.mxu0 0
        %1535 = vmatprep.subr.bf16.mxu0 0
        %1536 = vmatpush1.bf16.msra.mxu0 0
        %1537 = vmatprep.subr.bf16.mxu0 0
        %1538 = vmatpush1.bf16.msra.mxu0 0
        %1539 = vmatprep.subr.bf16.mxu0 0
        %1540 = vmatpush1.bf16.msra.mxu0 0
        %1541 = vmatprep.subr.bf16.mxu0 0
        %1542 = vmatpush1.bf16.msra.mxu0 0
        %1543 = vmatprep.subr.bf16.mxu0 0
        %1544 = vmatpush1.bf16.msra.mxu0 0
        %1545 = vmatprep.subr.bf16.mxu0 0
        %1546 = vmatpush1.bf16.msra.mxu0 0
        %1547 = vmatprep.subr.bf16.mxu0 0
        %1548 = vmatpush1.bf16.msra.mxu0 0
        %1549 = vmatprep.subr.bf16.mxu0 0
        %1550 = vmatpush1.bf16.msra.mxu0 0
        %1551 = vmatprep.subr.bf16.mxu0 0
        %1552 = vmatpush1.bf16.msra.mxu0 0
        %1553 = vmatprep.subr.bf16.mxu0 0
        %1554 = vmatpush1.bf16.msra.mxu0 0
        %1555 = vmatprep.mubr.bf16.mxu0 0
        %1556 = vmatmul.mubr.bf16.gmra.mrb[0].mxu0 %v1051
        %v1557 = vpop.f32.mrb[0].mxu0
        %v1558 = vadd.f32 %v889, %v1557
        %v1559 = vpop.f32.mrb[0].mxu0
        %v1560 = vpop.f32.mrb[0].mxu0
        %v1561 = vadd.f32 %v894, %v1560
        %v1562 = vpop.f32.mrb[0].mxu0
        %1563 = vmatprep.mubr.bf16.mxu0 0
        %1564 = vmatmul.mubr.bf16.gmra.mrb[0].mxu0 %v1054
        %v1565 = vpop.f32.mrb[0].mxu0
        %v1566 = vadd.f32 %v899, %v1565
        %v1567 = vpop.f32.mrb[0].mxu0
        %v1568 = vpop.f32.mrb[0].mxu0
        %v1569 = vadd.f32 %v904, %v1568
        %v1570 = vpop.f32.mrb[0].mxu0
        %1571 = vdwg.mxu0
        %v1572 = vmax.f32 %v1415, %v1558
        %v1573 = vmax.f32 %v1416, %v1561
        %v1574 = vmax.f32 %v1417, %v1566
        %v1575 = vmax.f32 %v1418, %v1569
        %s1576 = scalar_lea.vmem %s767, 8 [#allocation2]
        %v1577 = vld [vmem:[%s1576] sm:$0x3]
        %v1579 = vand.u32 %v1577, %v919
        %1581 = vmatprep.subr.bf16.mxu0 0
        %1582 = vmatpush1.bf16.msra.mxu0 %v1579
        %1583 = vmatprep.subr.bf16.mxu0 0
        %1584 = vmatpush1.bf16.msra.mxu0 0
        %1585 = vmatprep.subr.bf16.mxu0 0
        %1586 = vmatpush1.bf16.msra.mxu0 0
        %1587 = vmatprep.subr.bf16.mxu0 0
        %1588 = vmatpush1.bf16.msra.mxu0 0
        %1589 = vmatprep.subr.bf16.mxu0 0
        %1590 = vmatpush1.bf16.msra.mxu0 0
        %1591 = vmatprep.subr.bf16.mxu0 0
        %1592 = vmatpush1.bf16.msra.mxu0 0
        %1593 = vmatprep.subr.bf16.mxu0 0
        %1594 = vmatpush1.bf16.msra.mxu0 0
        %1595 = vmatprep.subr.bf16.mxu0 0
        %1596 = vmatpush1.bf16.msra.mxu0 0
        %1597 = vmatprep.subr.bf16.mxu0 0
        %1598 = vmatpush1.bf16.msra.mxu0 0
        %1599 = vmatprep.subr.bf16.mxu0 0
        %1600 = vmatpush1.bf16.msra.mxu0 0
        %1601 = vmatprep.subr.bf16.mxu0 0
        %1602 = vmatpush1.bf16.msra.mxu0 0
        %1603 = vmatprep.subr.bf16.mxu0 0
        %1604 = vmatpush1.bf16.msra.mxu0 0
        %1605 = vmatprep.subr.bf16.mxu0 0
        %1606 = vmatpush1.bf16.msra.mxu0 0
        %1607 = vmatprep.subr.bf16.mxu0 0
        %1608 = vmatpush1.bf16.msra.mxu0 0
        %1609 = vmatprep.subr.bf16.mxu0 0
        %1610 = vmatpush1.bf16.msra.mxu0 0
        %1611 = vmatprep.subr.bf16.mxu0 0
        %1612 = vmatpush1.bf16.msra.mxu0 0
        %1613 = vmatprep.mubr.bf16.mxu0 0
        %1614 = vmatmul.mubr.bf16.gmra.mrb[0].mxu0 %v914
        %v1615 = vpop.f32.mrb[0].mxu0
        %v1616 = vadd.f32 %v851, %v1615
        %v1617 = vpop.f32.mrb[0].mxu0
        %v1618 = vpop.f32.mrb[0].mxu0
        %v1619 = vadd.f32 %v856, %v1618
        %v1620 = vpop.f32.mrb[0].mxu0
        %1621 = vdwg.mxu0
        %v1622 = vmax.f32 %v1616, 0.0
        %v1623 = vmax.f32 %v1619, 0.0
        %v1624 = vpack.c.bf16 %v1623, %v1622
        %1625 = vmatprep.subr.bf16.mxu0 0
        %1626 = vmatpush1.bf16.msra.mxu0 %v1624
        %1627 = vmatprep.subr.bf16.mxu0 0
        %1628 = vmatpush1.bf16.msra.mxu0 0
        %1629 = vmatprep.subr.bf16.mxu0 0
        %1630 = vmatpush1.bf16.msra.mxu0 0
        %1631 = vmatprep.subr.bf16.mxu0 0
        %1632 = vmatpush1.bf16.msra.mxu0 0
        %1633 = vmatprep.subr.bf16.mxu0 0
        %1634 = vmatpush1.bf16.msra.mxu0 0
        %1635 = vmatprep.subr.bf16.mxu0 0
        %1636 = vmatpush1.bf16.msra.mxu0 0
        %1637 = vmatprep.subr.bf16.mxu0 0
        %1638 = vmatpush1.bf16.msra.mxu0 0
        %1639 = vmatprep.subr.bf16.mxu0 0
        %1640 = vmatpush1.bf16.msra.mxu0 0
        %1641 = vmatprep.subr.bf16.mxu0 0
        %1642 = vmatpush1.bf16.msra.mxu0 0
        %1643 = vmatprep.subr.bf16.mxu0 0
        %1644 = vmatpush1.bf16.msra.mxu0 0
        %1645 = vmatprep.subr.bf16.mxu0 0
        %1646 = vmatpush1.bf16.msra.mxu0 0
        %1647 = vmatprep.subr.bf16.mxu0 0
        %1648 = vmatpush1.bf16.msra.mxu0 0
        %1649 = vmatprep.subr.bf16.mxu0 0
        %1650 = vmatpush1.bf16.msra.mxu0 0
        %1651 = vmatprep.subr.bf16.mxu0 0
        %1652 = vmatpush1.bf16.msra.mxu0 0
        %1653 = vmatprep.subr.bf16.mxu0 0
        %1654 = vmatpush1.bf16.msra.mxu0 0
        %1655 = vmatprep.subr.bf16.mxu0 0
        %1656 = vmatpush1.bf16.msra.mxu0 0
        %1657 = vmatprep.mubr.bf16.mxu0 0
        %1658 = vmatmul.mubr.bf16.gmra.mrb[0].mxu0 %v979
        %v1659 = vpop.f32.mrb[0].mxu0
        %v1660 = vadd.f32 %v865, %v1659
        %v1661 = vpop.f32.mrb[0].mxu0
        %v1662 = vpop.f32.mrb[0].mxu0
        %v1663 = vadd.f32 %v870, %v1662
        %v1664 = vpop.f32.mrb[0].mxu0
        %1665 = vmatprep.mubr.bf16.mxu0 0
        %1666 = vmatmul.mubr.bf16.gmra.mrb[0].mxu0 %v982
        %v1667 = vpop.f32.mrb[0].mxu0
        %v1668 = vadd.f32 %v875, %v1667
        %v1669 = vpop.f32.mrb[0].mxu0
        %v1670 = vpop.f32.mrb[0].mxu0
        %v1671 = vadd.f32 %v880, %v1670
        %v1672 = vpop.f32.mrb[0].mxu0
        %1673 = vdwg.mxu0
        %v1674 = vmax.f32 %v1660, 0.0
        %v1675 = vmax.f32 %v1663, 0.0
        %v1676 = vmax.f32 %v1668, 0.0
        %v1677 = vmax.f32 %v1671, 0.0
        %v1678 = vpack.c.bf16 %v1675, %v1674
        %v1679 = vpack.c.bf16 %v1677, %v1676
        %1680 = vmatprep.subr.bf16.mxu0 0
        %1681 = vmatpush1.bf16.msra.mxu0 %v1678
        %1682 = vmatprep.subr.bf16.mxu0 0
        %1683 = vmatpush1.bf16.msra.mxu0 %v1679
        %1684 = vmatprep.subr.bf16.mxu0 0
        %1685 = vmatpush1.bf16.msra.mxu0 0
        %1686 = vmatprep.subr.bf16.mxu0 0
        %1687 = vmatpush1.bf16.msra.mxu0 0
        %1688 = vmatprep.subr.bf16.mxu0 0
        %1689 = vmatpush1.bf16.msra.mxu0 0
        %1690 = vmatprep.subr.bf16.mxu0 0
        %1691 = vmatpush1.bf16.msra.mxu0 0
        %1692 = vmatprep.subr.bf16.mxu0 0
        %1693 = vmatpush1.bf16.msra.mxu0 0
        %1694 = vmatprep.subr.bf16.mxu0 0
        %1695 = vmatpush1.bf16.msra.mxu0 0
        %1696 = vmatprep.subr.bf16.mxu0 0
        %1697 = vmatpush1.bf16.msra.mxu0 0
        %1698 = vmatprep.subr.bf16.mxu0 0
        %1699 = vmatpush1.bf16.msra.mxu0 0
        %1700 = vmatprep.subr.bf16.mxu0 0
        %1701 = vmatpush1.bf16.msra.mxu0 0
        %1702 = vmatprep.subr.bf16.mxu0 0
        %1703 = vmatpush1.bf16.msra.mxu0 0
        %1704 = vmatprep.subr.bf16.mxu0 0
        %1705 = vmatpush1.bf16.msra.mxu0 0
        %1706 = vmatprep.subr.bf16.mxu0 0
        %1707 = vmatpush1.bf16.msra.mxu0 0
        %1708 = vmatprep.subr.bf16.mxu0 0
        %1709 = vmatpush1.bf16.msra.mxu0 0
        %1710 = vmatprep.subr.bf16.mxu0 0
        %1711 = vmatpush1.bf16.msra.mxu0 0
        %1712 = vmatprep.mubr.bf16.mxu0 0
        %1713 = vmatmul.mubr.bf16.gmra.mrb[0].mxu0 %v1051
        %v1714 = vpop.f32.mrb[0].mxu0
        %v1715 = vadd.f32 %v889, %v1714
        %v1716 = vpop.f32.mrb[0].mxu0
        %v1717 = vpop.f32.mrb[0].mxu0
        %v1718 = vadd.f32 %v894, %v1717
        %v1719 = vpop.f32.mrb[0].mxu0
        %1720 = vmatprep.mubr.bf16.mxu0 0
        %1721 = vmatmul.mubr.bf16.gmra.mrb[0].mxu0 %v1054
        %v1722 = vpop.f32.mrb[0].mxu0
        %v1723 = vadd.f32 %v899, %v1722
        %v1724 = vpop.f32.mrb[0].mxu0
        %v1725 = vpop.f32.mrb[0].mxu0
        %v1726 = vadd.f32 %v904, %v1725
        %v1727 = vpop.f32.mrb[0].mxu0
        %1728 = vdwg.mxu0
        %v1729 = vmax.f32 %v1572, %v1715
        %v1730 = vmax.f32 %v1573, %v1718
        %v1731 = vmax.f32 %v1574, %v1723
        %v1732 = vmax.f32 %v1575, %v1726
        %s1733 = scalar_lea.vmem %s767, 10 [#allocation2]
        %v1734 = vld [vmem:[%s1733] sm:$0x3]
        %v1736 = vand.u32 %v1734, %v919
        %1738 = vmatprep.subr.bf16.mxu0 0
        %1739 = vmatpush1.bf16.msra.mxu0 %v1736
        %1740 = vmatprep.subr.bf16.mxu0 0
        %1741 = vmatpush1.bf16.msra.mxu0 0
        %1742 = vmatprep.subr.bf16.mxu0 0
        %1743 = vmatpush1.bf16.msra.mxu0 0
        %1744 = vmatprep.subr.bf16.mxu0 0
        %1745 = vmatpush1.bf16.msra.mxu0 0
        %1746 = vmatprep.subr.bf16.mxu0 0
        %1747 = vmatpush1.bf16.msra.mxu0 0
        %1748 = vmatprep.subr.bf16.mxu0 0
        %1749 = vmatpush1.bf16.msra.mxu0 0
        %1750 = vmatprep.subr.bf16.mxu0 0
        %1751 = vmatpush1.bf16.msra.mxu0 0
        %1752 = vmatprep.subr.bf16.mxu0 0
        %1753 = vmatpush1.bf16.msra.mxu0 0
        %1754 = vmatprep.subr.bf16.mxu0 0
        %1755 = vmatpush1.bf16.msra.mxu0 0
        %1756 = vmatprep.subr.bf16.mxu0 0
        %1757 = vmatpush1.bf16.msra.mxu0 0
        %1758 = vmatprep.subr.bf16.mxu0 0
        %1759 = vmatpush1.bf16.msra.mxu0 0
        %1760 = vmatprep.subr.bf16.mxu0 0
        %1761 = vmatpush1.bf16.msra.mxu0 0
        %1762 = vmatprep.subr.bf16.mxu0 0
        %1763 = vmatpush1.bf16.msra.mxu0 0
        %1764 = vmatprep.subr.bf16.mxu0 0
        %1765 = vmatpush1.bf16.msra.mxu0 0
        %1766 = vmatprep.subr.bf16.mxu0 0
        %1767 = vmatpush1.bf16.msra.mxu0 0
        %1768 = vmatprep.subr.bf16.mxu0 0
        %1769 = vmatpush1.bf16.msra.mxu0 0
        %1770 = vmatprep.mubr.bf16.mxu0 0
        %1771 = vmatmul.mubr.bf16.gmra.mrb[0].mxu0 %v914
        %v1772 = vpop.f32.mrb[0].mxu0
        %v1773 = vadd.f32 %v851, %v1772
        %v1774 = vpop.f32.mrb[0].mxu0
        %v1775 = vpop.f32.mrb[0].mxu0
        %v1776 = vadd.f32 %v856, %v1775
        %v1777 = vpop.f32.mrb[0].mxu0
        %1778 = vdwg.mxu0
        %v1779 = vmax.f32 %v1773, 0.0
        %v1780 = vmax.f32 %v1776, 0.0
        %v1781 = vpack.c.bf16 %v1780, %v1779
        %1782 = vmatprep.subr.bf16.mxu0 0
        %1783 = vmatpush1.bf16.msra.mxu0 %v1781
        %1784 = vmatprep.subr.bf16.mxu0 0
        %1785 = vmatpush1.bf16.msra.mxu0 0
        %1786 = vmatprep.subr.bf16.mxu0 0
        %1787 = vmatpush1.bf16.msra.mxu0 0
        %1788 = vmatprep.subr.bf16.mxu0 0
        %1789 = vmatpush1.bf16.msra.mxu0 0
        %1790 = vmatprep.subr.bf16.mxu0 0
        %1791 = vmatpush1.bf16.msra.mxu0 0
        %1792 = vmatprep.subr.bf16.mxu0 0
        %1793 = vmatpush1.bf16.msra.mxu0 0
        %1794 = vmatprep.subr.bf16.mxu0 0
        %1795 = vmatpush1.bf16.msra.mxu0 0
        %1796 = vmatprep.subr.bf16.mxu0 0
        %1797 = vmatpush1.bf16.msra.mxu0 0
        %1798 = vmatprep.subr.bf16.mxu0 0
        %1799 = vmatpush1.bf16.msra.mxu0 0
        %1800 = vmatprep.subr.bf16.mxu0 0
        %1801 = vmatpush1.bf16.msra.mxu0 0
        %1802 = vmatprep.subr.bf16.mxu0 0
        %1803 = vmatpush1.bf16.msra.mxu0 0
        %1804 = vmatprep.subr.bf16.mxu0 0
        %1805 = vmatpush1.bf16.msra.mxu0 0
        %1806 = vmatprep.subr.bf16.mxu0 0
        %1807 = vmatpush1.bf16.msra.mxu0 0
        %1808 = vmatprep.subr.bf16.mxu0 0
        %1809 = vmatpush1.bf16.msra.mxu0 0
        %1810 = vmatprep.subr.bf16.mxu0 0
        %1811 = vmatpush1.bf16.msra.mxu0 0
        %1812 = vmatprep.subr.bf16.mxu0 0
        %1813 = vmatpush1.bf16.msra.mxu0 0
        %1814 = vmatprep.mubr.bf16.mxu0 0
        %1815 = vmatmul.mubr.bf16.gmra.mrb[0].mxu0 %v979
        %v1816 = vpop.f32.mrb[0].mxu0
        %v1817 = vadd.f32 %v865, %v1816
        %v1818 = vpop.f32.mrb[0].mxu0
        %v1819 = vpop.f32.mrb[0].mxu0
        %v1820 = vadd.f32 %v870, %v1819
        %v1821 = vpop.f32.mrb[0].mxu0
        %1822 = vmatprep.mubr.bf16.mxu0 0
        %1823 = vmatmul.mubr.bf16.gmra.mrb[0].mxu0 %v982
        %v1824 = vpop.f32.mrb[0].mxu0
        %v1825 = vadd.f32 %v875, %v1824
        %v1826 = vpop.f32.mrb[0].mxu0
        %v1827 = vpop.f32.mrb[0].mxu0
        %v1828 = vadd.f32 %v880, %v1827
        %v1829 = vpop.f32.mrb[0].mxu0
        %1830 = vdwg.mxu0
        %v1831 = vmax.f32 %v1817, 0.0
        %v1832 = vmax.f32 %v1820, 0.0
        %v1833 = vmax.f32 %v1825, 0.0
        %v1834 = vmax.f32 %v1828, 0.0
        %v1835 = vpack.c.bf16 %v1832, %v1831
        %v1836 = vpack.c.bf16 %v1834, %v1833
        %1837 = vmatprep.subr.bf16.mxu0 0
        %1838 = vmatpush1.bf16.msra.mxu0 %v1835
        %1839 = vmatprep.subr.bf16.mxu0 0
        %1840 = vmatpush1.bf16.msra.mxu0 %v1836
        %1841 = vmatprep.subr.bf16.mxu0 0
        %1842 = vmatpush1.bf16.msra.mxu0 0
        %1843 = vmatprep.subr.bf16.mxu0 0
        %1844 = vmatpush1.bf16.msra.mxu0 0
        %1845 = vmatprep.subr.bf16.mxu0 0
        %1846 = vmatpush1.bf16.msra.mxu0 0
        %1847 = vmatprep.subr.bf16.mxu0 0
        %1848 = vmatpush1.bf16.msra.mxu0 0
        %1849 = vmatprep.subr.bf16.mxu0 0
        %1850 = vmatpush1.bf16.msra.mxu0 0
        %1851 = vmatprep.subr.bf16.mxu0 0
        %1852 = vmatpush1.bf16.msra.mxu0 0
        %1853 = vmatprep.subr.bf16.mxu0 0
        %1854 = vmatpush1.bf16.msra.mxu0 0
        %1855 = vmatprep.subr.bf16.mxu0 0
        %1856 = vmatpush1.bf16.msra.mxu0 0
        %1857 = vmatprep.subr.bf16.mxu0 0
        %1858 = vmatpush1.bf16.msra.mxu0 0
        %1859 = vmatprep.subr.bf16.mxu0 0
        %1860 = vmatpush1.bf16.msra.mxu0 0
        %1861 = vmatprep.subr.bf16.mxu0 0
        %1862 = vmatpush1.bf16.msra.mxu0 0
        %1863 = vmatprep.subr.bf16.mxu0 0
        %1864 = vmatpush1.bf16.msra.mxu0 0
        %1865 = vmatprep.subr.bf16.mxu0 0
        %1866 = vmatpush1.bf16.msra.mxu0 0
        %1867 = vmatprep.subr.bf16.mxu0 0
        %1868 = vmatpush1.bf16.msra.mxu0 0
        %1869 = vmatprep.mubr.bf16.mxu0 0
        %1870 = vmatmul.mubr.bf16.gmra.mrb[0].mxu0 %v1051
        %v1871 = vpop.f32.mrb[0].mxu0
        %v1872 = vadd.f32 %v889, %v1871
        %v1873 = vpop.f32.mrb[0].mxu0
        %v1874 = vpop.f32.mrb[0].mxu0
        %v1875 = vadd.f32 %v894, %v1874
        %v1876 = vpop.f32.mrb[0].mxu0
        %1877 = vmatprep.mubr.bf16.mxu0 0
        %1878 = vmatmul.mubr.bf16.gmra.mrb[0].mxu0 %v1054
        %v1879 = vpop.f32.mrb[0].mxu0
        %v1880 = vadd.f32 %v899, %v1879
        %v1881 = vpop.f32.mrb[0].mxu0
        %v1882 = vpop.f32.mrb[0].mxu0
        %v1883 = vadd.f32 %v904, %v1882
        %v1884 = vpop.f32.mrb[0].mxu0
        %1885 = vdwg.mxu0
        %v1886 = vmax.f32 %v1729, %v1872
        %v1887 = vmax.f32 %v1730, %v1875
        %v1888 = vmax.f32 %v1731, %v1880
        %v1889 = vmax.f32 %v1732, %v1883
        %s1890 = scalar_lea.vmem %s767, 12 [#allocation2]
        %v1891 = vld [vmem:[%s1890] sm:$0x3]
        %v1893 = vand.u32 %v1891, %v919
        %1895 = vmatprep.subr.bf16.mxu0 0
        %1896 = vmatpush1.bf16.msra.mxu0 %v1893
        %1897 = vmatprep.subr.bf16.mxu0 0
        %1898 = vmatpush1.bf16.msra.mxu0 0
        %1899 = vmatprep.subr.bf16.mxu0 0
        %1900 = vmatpush1.bf16.msra.mxu0 0
        %1901 = vmatprep.subr.bf16.mxu0 0
        %1902 = vmatpush1.bf16.msra.mxu0 0
        %1903 = vmatprep.subr.bf16.mxu0 0
        %1904 = vmatpush1.bf16.msra.mxu0 0
        %1905 = vmatprep.subr.bf16.mxu0 0
        %1906 = vmatpush1.bf16.msra.mxu0 0
        %1907 = vmatprep.subr.bf16.mxu0 0
        %1908 = vmatpush1.bf16.msra.mxu0 0
        %1909 = vmatprep.subr.bf16.mxu0 0
        %1910 = vmatpush1.bf16.msra.mxu0 0
        %1911 = vmatprep.subr.bf16.mxu0 0
        %1912 = vmatpush1.bf16.msra.mxu0 0
        %1913 = vmatprep.subr.bf16.mxu0 0
        %1914 = vmatpush1.bf16.msra.mxu0 0
        %1915 = vmatprep.subr.bf16.mxu0 0
        %1916 = vmatpush1.bf16.msra.mxu0 0
        %1917 = vmatprep.subr.bf16.mxu0 0
        %1918 = vmatpush1.bf16.msra.mxu0 0
        %1919 = vmatprep.subr.bf16.mxu0 0
        %1920 = vmatpush1.bf16.msra.mxu0 0
        %1921 = vmatprep.subr.bf16.mxu0 0
        %1922 = vmatpush1.bf16.msra.mxu0 0
        %1923 = vmatprep.subr.bf16.mxu0 0
        %1924 = vmatpush1.bf16.msra.mxu0 0
        %1925 = vmatprep.subr.bf16.mxu0 0
        %1926 = vmatpush1.bf16.msra.mxu0 0
        %1927 = vmatprep.mubr.bf16.mxu0 0
        %1928 = vmatmul.mubr.bf16.gmra.mrb[0].mxu0 %v914
        %v1929 = vpop.f32.mrb[0].mxu0
        %v1930 = vadd.f32 %v851, %v1929
        %v1931 = vpop.f32.mrb[0].mxu0
        %v1932 = vpop.f32.mrb[0].mxu0
        %v1933 = vadd.f32 %v856, %v1932
        %v1934 = vpop.f32.mrb[0].mxu0
        %1935 = vdwg.mxu0
        %v1936 = vmax.f32 %v1930, 0.0
        %v1937 = vmax.f32 %v1933, 0.0
        %v1938 = vpack.c.bf16 %v1937, %v1936
        %1939 = vmatprep.subr.bf16.mxu0 0
        %1940 = vmatpush1.bf16.msra.mxu0 %v1938
        %1941 = vmatprep.subr.bf16.mxu0 0
        %1942 = vmatpush1.bf16.msra.mxu0 0
        %1943 = vmatprep.subr.bf16.mxu0 0
        %1944 = vmatpush1.bf16.msra.mxu0 0
        %1945 = vmatprep.subr.bf16.mxu0 0
        %1946 = vmatpush1.bf16.msra.mxu0 0
        %1947 = vmatprep.subr.bf16.mxu0 0
        %1948 = vmatpush1.bf16.msra.mxu0 0
        %1949 = vmatprep.subr.bf16.mxu0 0
        %1950 = vmatpush1.bf16.msra.mxu0 0
        %1951 = vmatprep.subr.bf16.mxu0 0
        %1952 = vmatpush1.bf16.msra.mxu0 0
        %1953 = vmatprep.subr.bf16.mxu0 0
        %1954 = vmatpush1.bf16.msra.mxu0 0
        %1955 = vmatprep.subr.bf16.mxu0 0
        %1956 = vmatpush1.bf16.msra.mxu0 0
        %1957 = vmatprep.subr.bf16.mxu0 0
        %1958 = vmatpush1.bf16.msra.mxu0 0
        %1959 = vmatprep.subr.bf16.mxu0 0
        %1960 = vmatpush1.bf16.msra.mxu0 0
        %1961 = vmatprep.subr.bf16.mxu0 0
        %1962 = vmatpush1.bf16.msra.mxu0 0
        %1963 = vmatprep.subr.bf16.mxu0 0
        %1964 = vmatpush1.bf16.msra.mxu0 0
        %1965 = vmatprep.subr.bf16.mxu0 0
        %1966 = vmatpush1.bf16.msra.mxu0 0
        %1967 = vmatprep.subr.bf16.mxu0 0
        %1968 = vmatpush1.bf16.msra.mxu0 0
        %1969 = vmatprep.subr.bf16.mxu0 0
        %1970 = vmatpush1.bf16.msra.mxu0 0
        %1971 = vmatprep.mubr.bf16.mxu0 0
        %1972 = vmatmul.mubr.bf16.gmra.mrb[0].mxu0 %v979
        %v1973 = vpop.f32.mrb[0].mxu0
        %v1974 = vadd.f32 %v865, %v1973
        %v1975 = vpop.f32.mrb[0].mxu0
        %v1976 = vpop.f32.mrb[0].mxu0
        %v1977 = vadd.f32 %v870, %v1976
        %v1978 = vpop.f32.mrb[0].mxu0
        %1979 = vmatprep.mubr.bf16.mxu0 0
        %1980 = vmatmul.mubr.bf16.gmra.mrb[0].mxu0 %v982
        %v1981 = vpop.f32.mrb[0].mxu0
        %v1982 = vadd.f32 %v875, %v1981
        %v1983 = vpop.f32.mrb[0].mxu0
        %v1984 = vpop.f32.mrb[0].mxu0
        %v1985 = vadd.f32 %v880, %v1984
        %v1986 = vpop.f32.mrb[0].mxu0
        %1987 = vdwg.mxu0
        %v1988 = vmax.f32 %v1974, 0.0
        %v1989 = vmax.f32 %v1977, 0.0
        %v1990 = vmax.f32 %v1982, 0.0
        %v1991 = vmax.f32 %v1985, 0.0
        %v1992 = vpack.c.bf16 %v1989, %v1988
        %v1993 = vpack.c.bf16 %v1991, %v1990
        %1994 = vmatprep.subr.bf16.mxu0 0
        %1995 = vmatpush1.bf16.msra.mxu0 %v1992
        %1996 = vmatprep.subr.bf16.mxu0 0
        %1997 = vmatpush1.bf16.msra.mxu0 %v1993
        %1998 = vmatprep.subr.bf16.mxu0 0
        %1999 = vmatpush1.bf16.msra.mxu0 0
        %2000 = vmatprep.subr.bf16.mxu0 0
        %2001 = vmatpush1.bf16.msra.mxu0 0
        %2002 = vmatprep.subr.bf16.mxu0 0
        %2003 = vmatpush1.bf16.msra.mxu0 0
        %2004 = vmatprep.subr.bf16.mxu0 0
        %2005 = vmatpush1.bf16.msra.mxu0 0
        %2006 = vmatprep.subr.bf16.mxu0 0
        %2007 = vmatpush1.bf16.msra.mxu0 0
        %2008 = vmatprep.subr.bf16.mxu0 0
        %2009 = vmatpush1.bf16.msra.mxu0 0
        %2010 = vmatprep.subr.bf16.mxu0 0
        %2011 = vmatpush1.bf16.msra.mxu0 0
        %2012 = vmatprep.subr.bf16.mxu0 0
        %2013 = vmatpush1.bf16.msra.mxu0 0
        %2014 = vmatprep.subr.bf16.mxu0 0
        %2015 = vmatpush1.bf16.msra.mxu0 0
        %2016 = vmatprep.subr.bf16.mxu0 0
        %2017 = vmatpush1.bf16.msra.mxu0 0
        %2018 = vmatprep.subr.bf16.mxu0 0
        %2019 = vmatpush1.bf16.msra.mxu0 0
        %2020 = vmatprep.subr.bf16.mxu0 0
        %2021 = vmatpush1.bf16.msra.mxu0 0
        %2022 = vmatprep.subr.bf16.mxu0 0
        %2023 = vmatpush1.bf16.msra.mxu0 0
        %2024 = vmatprep.subr.bf16.mxu0 0
        %2025 = vmatpush1.bf16.msra.mxu0 0
        %2026 = vmatprep.mubr.bf16.mxu0 0
        %2027 = vmatmul.mubr.bf16.gmra.mrb[0].mxu0 %v1051
        %v2028 = vpop.f32.mrb[0].mxu0
        %v2029 = vadd.f32 %v889, %v2028
        %v2030 = vpop.f32.mrb[0].mxu0
        %v2031 = vpop.f32.mrb[0].mxu0
        %v2032 = vadd.f32 %v894, %v2031
        %v2033 = vpop.f32.mrb[0].mxu0
        %2034 = vmatprep.mubr.bf16.mxu0 0
        %2035 = vmatmul.mubr.bf16.gmra.mrb[0].mxu0 %v1054
        %v2036 = vpop.f32.mrb[0].mxu0
        %v2037 = vadd.f32 %v899, %v2036
        %v2038 = vpop.f32.mrb[0].mxu0
        %v2039 = vpop.f32.mrb[0].mxu0
        %v2040 = vadd.f32 %v904, %v2039
        %v2041 = vpop.f32.mrb[0].mxu0
        %2042 = vdwg.mxu0
        %v2043 = vmax.f32 %v1886, %v2029
        %v2044 = vmax.f32 %v1887, %v2032
        %v2045 = vmax.f32 %v1888, %v2037
        %v2046 = vmax.f32 %v1889, %v2040
        %s2047 = scalar_lea.vmem %s767, 14 [#allocation2]
        %v2048 = vld [vmem:[%s2047] sm:$0x3]
        %v2050 = vand.u32 %v2048, %v919
        %2052 = vmatprep.subr.bf16.mxu0 0
        %2053 = vmatpush1.bf16.msra.mxu0 %v2050
        %2054 = vmatprep.subr.bf16.mxu0 0
        %2055 = vmatpush1.bf16.msra.mxu0 0
        %2056 = vmatprep.subr.bf16.mxu0 0
        %2057 = vmatpush1.bf16.msra.mxu0 0
        %2058 = vmatprep.subr.bf16.mxu0 0
        %2059 = vmatpush1.bf16.msra.mxu0 0
        %2060 = vmatprep.subr.bf16.mxu0 0
        %2061 = vmatpush1.bf16.msra.mxu0 0
        %2062 = vmatprep.subr.bf16.mxu0 0
        %2063 = vmatpush1.bf16.msra.mxu0 0
        %2064 = vmatprep.subr.bf16.mxu0 0
        %2065 = vmatpush1.bf16.msra.mxu0 0
        %2066 = vmatprep.subr.bf16.mxu0 0
        %2067 = vmatpush1.bf16.msra.mxu0 0
        %2068 = vmatprep.subr.bf16.mxu0 0
        %2069 = vmatpush1.bf16.msra.mxu0 0
        %2070 = vmatprep.subr.bf16.mxu0 0
        %2071 = vmatpush1.bf16.msra.mxu0 0
        %2072 = vmatprep.subr.bf16.mxu0 0
        %2073 = vmatpush1.bf16.msra.mxu0 0
        %2074 = vmatprep.subr.bf16.mxu0 0
        %2075 = vmatpush1.bf16.msra.mxu0 0
        %2076 = vmatprep.subr.bf16.mxu0 0
        %2077 = vmatpush1.bf16.msra.mxu0 0
        %2078 = vmatprep.subr.bf16.mxu0 0
        %2079 = vmatpush1.bf16.msra.mxu0 0
        %2080 = vmatprep.subr.bf16.mxu0 0
        %2081 = vmatpush1.bf16.msra.mxu0 0
        %2082 = vmatprep.subr.bf16.mxu0 0
        %2083 = vmatpush1.bf16.msra.mxu0 0
        %2084 = vmatprep.mubr.bf16.mxu0 0
        %2085 = vmatmul.mubr.bf16.gmra.mrb[0].mxu0 %v914
        %v2086 = vpop.f32.mrb[0].mxu0
        %v2087 = vadd.f32 %v851, %v2086
        %v2088 = vpop.f32.mrb[0].mxu0
        %v2089 = vpop.f32.mrb[0].mxu0
        %v2090 = vadd.f32 %v856, %v2089
        %v2091 = vpop.f32.mrb[0].mxu0
        %2092 = vdwg.mxu0
        %v2093 = vmax.f32 %v2087, 0.0
        %v2094 = vmax.f32 %v2090, 0.0
        %v2095 = vpack.c.bf16 %v2094, %v2093
        %2096 = vmatprep.subr.bf16.mxu0 0
        %2097 = vmatpush1.bf16.msra.mxu0 %v2095
        %2098 = vmatprep.subr.bf16.mxu0 0
        %2099 = vmatpush1.bf16.msra.mxu0 0
        %2100 = vmatprep.subr.bf16.mxu0 0
        %2101 = vmatpush1.bf16.msra.mxu0 0
        %2102 = vmatprep.subr.bf16.mxu0 0
        %2103 = vmatpush1.bf16.msra.mxu0 0
        %2104 = vmatprep.subr.bf16.mxu0 0
        %2105 = vmatpush1.bf16.msra.mxu0 0
        %2106 = vmatprep.subr.bf16.mxu0 0
        %2107 = vmatpush1.bf16.msra.mxu0 0
        %2108 = vmatprep.subr.bf16.mxu0 0
        %2109 = vmatpush1.bf16.msra.mxu0 0
        %2110 = vmatprep.subr.bf16.mxu0 0
        %2111 = vmatpush1.bf16.msra.mxu0 0
        %2112 = vmatprep.subr.bf16.mxu0 0
        %2113 = vmatpush1.bf16.msra.mxu0 0
        %2114 = vmatprep.subr.bf16.mxu0 0
        %2115 = vmatpush1.bf16.msra.mxu0 0
        %2116 = vmatprep.subr.bf16.mxu0 0
        %2117 = vmatpush1.bf16.msra.mxu0 0
        %2118 = vmatprep.subr.bf16.mxu0 0
        %2119 = vmatpush1.bf16.msra.mxu0 0
        %2120 = vmatprep.subr.bf16.mxu0 0
        %2121 = vmatpush1.bf16.msra.mxu0 0
        %2122 = vmatprep.subr.bf16.mxu0 0
        %2123 = vmatpush1.bf16.msra.mxu0 0
        %2124 = vmatprep.subr.bf16.mxu0 0
        %2125 = vmatpush1.bf16.msra.mxu0 0
        %2126 = vmatprep.subr.bf16.mxu0 0
        %2127 = vmatpush1.bf16.msra.mxu0 0
        %2128 = vmatprep.mubr.bf16.mxu0 0
        %2129 = vmatmul.mubr.bf16.gmra.mrb[0].mxu0 %v979
        %v2130 = vpop.f32.mrb[0].mxu0
        %v2131 = vadd.f32 %v865, %v2130
        %v2132 = vpop.f32.mrb[0].mxu0
        %v2133 = vpop.f32.mrb[0].mxu0
        %v2134 = vadd.f32 %v870, %v2133
        %v2135 = vpop.f32.mrb[0].mxu0
        %2136 = vmatprep.mubr.bf16.mxu0 0
        %2137 = vmatmul.mubr.bf16.gmra.mrb[0].mxu0 %v982
        %v2138 = vpop.f32.mrb[0].mxu0
        %v2139 = vadd.f32 %v875, %v2138
        %v2140 = vpop.f32.mrb[0].mxu0
        %v2141 = vpop.f32.mrb[0].mxu0
        %v2142 = vadd.f32 %v880, %v2141
        %v2143 = vpop.f32.mrb[0].mxu0
        %2144 = vdwg.mxu0
        %v2145 = vmax.f32 %v2131, 0.0
        %v2146 = vmax.f32 %v2134, 0.0
        %v2147 = vmax.f32 %v2139, 0.0
        %v2148 = vmax.f32 %v2142, 0.0
        %v2149 = vpack.c.bf16 %v2146, %v2145
        %v2150 = vpack.c.bf16 %v2148, %v2147
        %2151 = vmatprep.subr.bf16.mxu0 0
        %2152 = vmatpush1.bf16.msra.mxu0 %v2149
        %2153 = vmatprep.subr.bf16.mxu0 0
        %2154 = vmatpush1.bf16.msra.mxu0 %v2150
        %2155 = vmatprep.subr.bf16.mxu0 0
        %2156 = vmatpush1.bf16.msra.mxu0 0
        %2157 = vmatprep.subr.bf16.mxu0 0
        %2158 = vmatpush1.bf16.msra.mxu0 0
        %2159 = vmatprep.subr.bf16.mxu0 0
        %2160 = vmatpush1.bf16.msra.mxu0 0
        %2161 = vmatprep.subr.bf16.mxu0 0
        %2162 = vmatpush1.bf16.msra.mxu0 0
        %2163 = vmatprep.subr.bf16.mxu0 0
        %2164 = vmatpush1.bf16.msra.mxu0 0
        %2165 = vmatprep.subr.bf16.mxu0 0
        %2166 = vmatpush1.bf16.msra.mxu0 0
        %2167 = vmatprep.subr.bf16.mxu0 0
        %2168 = vmatpush1.bf16.msra.mxu0 0
        %2169 = vmatprep.subr.bf16.mxu0 0
        %2170 = vmatpush1.bf16.msra.mxu0 0
        %2171 = vmatprep.subr.bf16.mxu0 0
        %2172 = vmatpush1.bf16.msra.mxu0 0
        %2173 = vmatprep.subr.bf16.mxu0 0
        %2174 = vmatpush1.bf16.msra.mxu0 0
        %2175 = vmatprep.subr.bf16.mxu0 0
        %2176 = vmatpush1.bf16.msra.mxu0 0
        %2177 = vmatprep.subr.bf16.mxu0 0
        %2178 = vmatpush1.bf16.msra.mxu0 0
        %2179 = vmatprep.subr.bf16.mxu0 0
        %2180 = vmatpush1.bf16.msra.mxu0 0
        %2181 = vmatprep.subr.bf16.mxu0 0
        %2182 = vmatpush1.bf16.msra.mxu0 0
        %2183 = vmatprep.mubr.bf16.mxu0 0
        %2184 = vmatmul.mubr.bf16.gmra.mrb[0].mxu0 %v1051
        %v2185 = vpop.f32.mrb[0].mxu0
        %v2186 = vadd.f32 %v889, %v2185
        %v2187 = vpop.f32.mrb[0].mxu0
        %v2188 = vpop.f32.mrb[0].mxu0
        %v2189 = vadd.f32 %v894, %v2188
        %v2190 = vpop.f32.mrb[0].mxu0
        %2191 = vmatprep.mubr.bf16.mxu0 0
        %2192 = vmatmul.mubr.bf16.gmra.mrb[0].mxu0 %v1054
        %v2193 = vpop.f32.mrb[0].mxu0
        %v2194 = vadd.f32 %v899, %v2193
        %v2195 = vpop.f32.mrb[0].mxu0
        %v2196 = vpop.f32.mrb[0].mxu0
        %v2197 = vadd.f32 %v904, %v2196
        %v2198 = vpop.f32.mrb[0].mxu0
        %2199 = vdwg.mxu0
        %v2200 = vmax.f32 %v2043, %v2186
        %v2201 = vmax.f32 %v2044, %v2189
        %v2202 = vmax.f32 %v2045, %v2194
        %v2203 = vmax.f32 %v2046, %v2197
        %v2204 = vpack.c.bf16 %v2201, %v2200
        %v2205 = vpack.c.bf16 %v2203, %v2202
        %v2206 = vld [vmem:[%s8] sm:$0xf]
        %v2207 = vld [vmem:[%s8 + $0x4] sm:$0xf]
        %v2208 = vld [vmem:[%s10] sm:$0xf]
        %v2209 = vld [vmem:[%s10 + $0x4] sm:$0xf]
        %v2210 = vld [vmem:[%s10 + $0x8] sm:$0xf]
        %v2211 = vld [vmem:[%s10 + $0xc] sm:$0xf]
        %v2212 = vld [vmem:[%s12] sm:$0xf]
        %v2213 = vld [vmem:[%s12 + $0x4] sm:$0xf]
        %v2214 = vld [vmem:[%s12 + $0x8] sm:$0xf]
        %v2215 = vld [vmem:[%s12 + $0xc] sm:$0xf]
        %v2216 = vld [vmem:[%s9] sm:$0xff]
        %v2217 = vld [vmem:[%s9 + $0x8] sm:$0xff]
        %2219 = vset.pattern.permute.xlu0 0
        %2220 = vperm.xlu0 %2219, %v2216
        %v2221 = vpop.permute.xlu0 %2220
        %2224 = vset.pattern.permute.xlu0 0
        %2225 = vperm.xlu0 %2224, %v2217
        %v2226 = vpop.permute.xlu0 %2225
        %v2228 = vld [vmem:[%s11] sm:$0xff]
        %v2229 = vld [vmem:[%s11 + $0x8] sm:$0xff]
        %v2230 = vld [vmem:[%s11 + $0x10] sm:$0xff]
        %v2231 = vld [vmem:[%s11 + $0x18] sm:$0xff]
        %2233 = vset.pattern.permute.xlu0 0
        %2234 = vperm.xlu0 %2233, %v2228
        %v2235 = vpop.permute.xlu0 %2234
        %2238 = vset.pattern.permute.xlu0 0
        %2239 = vperm.xlu0 %2238, %v2229
        %v2240 = vpop.permute.xlu0 %2239
        %2243 = vset.pattern.permute.xlu0 0
        %2244 = vperm.xlu0 %2243, %v2230
        %v2245 = vpop.permute.xlu0 %2244
        %2248 = vset.pattern.permute.xlu0 0
        %2249 = vperm.xlu0 %2248, %v2231
        %v2250 = vpop.permute.xlu0 %2249
        %v2252 = vld [vmem:[%s13] sm:$0xff]
        %v2253 = vld [vmem:[%s13 + $0x8] sm:$0xff]
        %v2254 = vld [vmem:[%s13 + $0x10] sm:$0xff]
        %v2255 = vld [vmem:[%s13 + $0x18] sm:$0xff]
        %2257 = vset.pattern.permute.xlu0 0
        %2258 = vperm.xlu0 %2257, %v2252
        %v2259 = vpop.permute.xlu0 %2258
        %2262 = vset.pattern.permute.xlu0 0
        %2263 = vperm.xlu0 %2262, %v2253
        %v2264 = vpop.permute.xlu0 %2263
        %2267 = vset.pattern.permute.xlu0 0
        %2268 = vperm.xlu0 %2267, %v2254
        %v2269 = vpop.permute.xlu0 %2268
        %2272 = vset.pattern.permute.xlu0 0
        %2273 = vperm.xlu0 %2272, %v2255
        %v2274 = vpop.permute.xlu0 %2273
        %v2276 = vld [vmem:[%s774] sm:$0x3]
        %v2279 = vunpack.c.l.b16 %v2206
        %v2280 = vunpack.c.l.b16 %v2207
        %v2281 = vpack.c.b16 %v2280, %v2279
        %v2283 = vsel %vm912, %v2281, 0
        %v2286 = vand.u32 %v2276, %v919
        %2288 = vmatprep.subr.bf16.mxu0 0
        %2289 = vmatpush1.bf16.msra.mxu0 %v2286
        %2290 = vmatprep.subr.bf16.mxu0 0
        %2291 = vmatpush1.bf16.msra.mxu0 0
        %2292 = vmatprep.subr.bf16.mxu0 0
        %2293 = vmatpush1.bf16.msra.mxu0 0
        %2294 = vmatprep.subr.bf16.mxu0 0
        %2295 = vmatpush1.bf16.msra.mxu0 0
        %2296 = vmatprep.subr.bf16.mxu0 0
        %2297 = vmatpush1.bf16.msra.mxu0 0
        %2298 = vmatprep.subr.bf16.mxu0 0
        %2299 = vmatpush1.bf16.msra.mxu0 0
        %2300 = vmatprep.subr.bf16.mxu0 0
        %2301 = vmatpush1.bf16.msra.mxu0 0
        %2302 = vmatprep.subr.bf16.mxu0 0
        %2303 = vmatpush1.bf16.msra.mxu0 0
        %2304 = vmatprep.subr.bf16.mxu0 0
        %2305 = vmatpush1.bf16.msra.mxu0 0
        %2306 = vmatprep.subr.bf16.mxu0 0
        %2307 = vmatpush1.bf16.msra.mxu0 0
        %2308 = vmatprep.subr.bf16.mxu0 0
        %2309 = vmatpush1.bf16.msra.mxu0 0
        %2310 = vmatprep.subr.bf16.mxu0 0
        %2311 = vmatpush1.bf16.msra.mxu0 0
        %2312 = vmatprep.subr.bf16.mxu0 0
        %2313 = vmatpush1.bf16.msra.mxu0 0
        %2314 = vmatprep.subr.bf16.mxu0 0
        %2315 = vmatpush1.bf16.msra.mxu0 0
        %2316 = vmatprep.subr.bf16.mxu0 0
        %2317 = vmatpush1.bf16.msra.mxu0 0
        %2318 = vmatprep.subr.bf16.mxu0 0
        %2319 = vmatpush1.bf16.msra.mxu0 0
        %2320 = vmatprep.mubr.bf16.mxu0 0
        %2321 = vmatmul.mubr.bf16.gmra.mrb[0].mxu0 %v2283
        %v2322 = vpop.f32.mrb[0].mxu0
        %v2323 = vadd.f32 %v2221, %v2322
        %v2324 = vpop.f32.mrb[0].mxu0
        %v2325 = vpop.f32.mrb[0].mxu0
        %v2326 = vadd.f32 %v2226, %v2325
        %v2327 = vpop.f32.mrb[0].mxu0
        %2328 = vdwg.mxu0
        %v2329 = vmax.f32 %v2323, 0.0
        %v2330 = vmax.f32 %v2326, 0.0
        %v2331 = vpack.c.bf16 %v2330, %v2329
        %v2336 = vunpack.c.l.b16 %v2208
        %v2337 = vunpack.c.l.b16 %v2209
        %v2338 = vunpack.c.l.b16 %v2210
        %v2339 = vunpack.c.l.b16 %v2211
        %v2340 = vpack.c.b16 %v2337, %v2336
        %v2341 = vpack.c.b16 %v2339, %v2338
        %v2343 = vsel %vm977, %v2340, 0
        %v2346 = vsel %vm977, %v2341, 0
        %2348 = vmatprep.subr.bf16.mxu0 0
        %2349 = vmatpush1.bf16.msra.mxu0 %v2331
        %2350 = vmatprep.subr.bf16.mxu0 0
        %2351 = vmatpush1.bf16.msra.mxu0 0
        %2352 = vmatprep.subr.bf16.mxu0 0
        %2353 = vmatpush1.bf16.msra.mxu0 0
        %2354 = vmatprep.subr.bf16.mxu0 0
        %2355 = vmatpush1.bf16.msra.mxu0 0
        %2356 = vmatprep.subr.bf16.mxu0 0
        %2357 = vmatpush1.bf16.msra.mxu0 0
        %2358 = vmatprep.subr.bf16.mxu0 0
        %2359 = vmatpush1.bf16.msra.mxu0 0
        %2360 = vmatprep.subr.bf16.mxu0 0
        %2361 = vmatpush1.bf16.msra.mxu0 0
        %2362 = vmatprep.subr.bf16.mxu0 0
        %2363 = vmatpush1.bf16.msra.mxu0 0
        %2364 = vmatprep.subr.bf16.mxu0 0
        %2365 = vmatpush1.bf16.msra.mxu0 0
        %2366 = vmatprep.subr.bf16.mxu0 0
        %2367 = vmatpush1.bf16.msra.mxu0 0
        %2368 = vmatprep.subr.bf16.mxu0 0
        %2369 = vmatpush1.bf16.msra.mxu0 0
        %2370 = vmatprep.subr.bf16.mxu0 0
        %2371 = vmatpush1.bf16.msra.mxu0 0
        %2372 = vmatprep.subr.bf16.mxu0 0
        %2373 = vmatpush1.bf16.msra.mxu0 0
        %2374 = vmatprep.subr.bf16.mxu0 0
        %2375 = vmatpush1.bf16.msra.mxu0 0
        %2376 = vmatprep.subr.bf16.mxu0 0
        %2377 = vmatpush1.bf16.msra.mxu0 0
        %2378 = vmatprep.subr.bf16.mxu0 0
        %2379 = vmatpush1.bf16.msra.mxu0 0
        %2380 = vmatprep.mubr.bf16.mxu0 0
        %2381 = vmatmul.mubr.bf16.gmra.mrb[0].mxu0 %v2343
        %v2382 = vpop.f32.mrb[0].mxu0
        %v2383 = vadd.f32 %v2235, %v2382
        %v2384 = vpop.f32.mrb[0].mxu0
        %v2385 = vpop.f32.mrb[0].mxu0
        %v2386 = vadd.f32 %v2240, %v2385
        %v2387 = vpop.f32.mrb[0].mxu0
        %2388 = vmatprep.mubr.bf16.mxu0 0
        %2389 = vmatmul.mubr.bf16.gmra.mrb[0].mxu0 %v2346
        %v2390 = vpop.f32.mrb[0].mxu0
        %v2391 = vadd.f32 %v2245, %v2390
        %v2392 = vpop.f32.mrb[0].mxu0
        %v2393 = vpop.f32.mrb[0].mxu0
        %v2394 = vadd.f32 %v2250, %v2393
        %v2395 = vpop.f32.mrb[0].mxu0
        %2396 = vdwg.mxu0
        %v2397 = vmax.f32 %v2383, 0.0
        %v2398 = vmax.f32 %v2386, 0.0
        %v2399 = vmax.f32 %v2391, 0.0
        %v2400 = vmax.f32 %v2394, 0.0
        %v2401 = vpack.c.bf16 %v2398, %v2397
        %v2402 = vpack.c.bf16 %v2400, %v2399
        %v2407 = vunpack.c.l.b16 %v2212
        %v2408 = vunpack.c.l.b16 %v2213
        %v2409 = vunpack.c.l.b16 %v2214
        %v2410 = vunpack.c.l.b16 %v2215
        %v2411 = vpack.c.b16 %v2408, %v2407
        %v2412 = vpack.c.b16 %v2410, %v2409
        %v2414 = vsel %vm1049, %v2411, 0
        %v2417 = vsel %vm1049, %v2412, 0
        %2419 = vmatprep.subr.bf16.mxu0 0
        %2420 = vmatpush1.bf16.msra.mxu0 %v2401
        %2421 = vmatprep.subr.bf16.mxu0 0
        %2422 = vmatpush1.bf16.msra.mxu0 %v2402
        %2423 = vmatprep.subr.bf16.mxu0 0
        %2424 = vmatpush1.bf16.msra.mxu0 0
        %2425 = vmatprep.subr.bf16.mxu0 0
        %2426 = vmatpush1.bf16.msra.mxu0 0
        %2427 = vmatprep.subr.bf16.mxu0 0
        %2428 = vmatpush1.bf16.msra.mxu0 0
        %2429 = vmatprep.subr.bf16.mxu0 0
        %2430 = vmatpush1.bf16.msra.mxu0 0
        %2431 = vmatprep.subr.bf16.mxu0 0
        %2432 = vmatpush1.bf16.msra.mxu0 0
        %2433 = vmatprep.subr.bf16.mxu0 0
        %2434 = vmatpush1.bf16.msra.mxu0 0
        %2435 = vmatprep.subr.bf16.mxu0 0
        %2436 = vmatpush1.bf16.msra.mxu0 0
        %2437 = vmatprep.subr.bf16.mxu0 0
        %2438 = vmatpush1.bf16.msra.mxu0 0
        %2439 = vmatprep.subr.bf16.mxu0 0
        %2440 = vmatpush1.bf16.msra.mxu0 0
        %2441 = vmatprep.subr.bf16.mxu0 0
        %2442 = vmatpush1.bf16.msra.mxu0 0
        %2443 = vmatprep.subr.bf16.mxu0 0
        %2444 = vmatpush1.bf16.msra.mxu0 0
        %2445 = vmatprep.subr.bf16.mxu0 0
        %2446 = vmatpush1.bf16.msra.mxu0 0
        %2447 = vmatprep.subr.bf16.mxu0 0
        %2448 = vmatpush1.bf16.msra.mxu0 0
        %2449 = vmatprep.subr.bf16.mxu0 0
        %2450 = vmatpush1.bf16.msra.mxu0 0
        %2451 = vmatprep.mubr.bf16.mxu0 0
        %2452 = vmatmul.mubr.bf16.gmra.mrb[0].mxu0 %v2414
        %v2453 = vpop.f32.mrb[0].mxu0
        %v2454 = vadd.f32 %v2259, %v2453
        %v2455 = vpop.f32.mrb[0].mxu0
        %v2456 = vpop.f32.mrb[0].mxu0
        %v2457 = vadd.f32 %v2264, %v2456
        %v2458 = vpop.f32.mrb[0].mxu0
        %2459 = vmatprep.mubr.bf16.mxu0 0
        %2460 = vmatmul.mubr.bf16.gmra.mrb[0].mxu0 %v2417
        %v2461 = vpop.f32.mrb[0].mxu0
        %v2462 = vadd.f32 %v2269, %v2461
        %v2463 = vpop.f32.mrb[0].mxu0
        %v2464 = vpop.f32.mrb[0].mxu0
        %v2465 = vadd.f32 %v2274, %v2464
        %v2466 = vpop.f32.mrb[0].mxu0
        %2467 = vdwg.mxu0
        %s2468 = scalar_lea.vmem %s774, 2 [#allocation3]
        %v2469 = vld [vmem:[%s2468] sm:$0x3]
        %v2471 = vand.u32 %v2469, %v919
        %2473 = vmatprep.subr.bf16.mxu0 0
        %2474 = vmatpush1.bf16.msra.mxu0 %v2471
        %2475 = vmatprep.subr.bf16.mxu0 0
        %2476 = vmatpush1.bf16.msra.mxu0 0
        %2477 = vmatprep.subr.bf16.mxu0 0
        %2478 = vmatpush1.bf16.msra.mxu0 0
        %2479 = vmatprep.subr.bf16.mxu0 0
        %2480 = vmatpush1.bf16.msra.mxu0 0
        %2481 = vmatprep.subr.bf16.mxu0 0
        %2482 = vmatpush1.bf16.msra.mxu0 0
        %2483 = vmatprep.subr.bf16.mxu0 0
        %2484 = vmatpush1.bf16.msra.mxu0 0
        %2485 = vmatprep.subr.bf16.mxu0 0
        %2486 = vmatpush1.bf16.msra.mxu0 0
        %2487 = vmatprep.subr.bf16.mxu0 0
        %2488 = vmatpush1.bf16.msra.mxu0 0
        %2489 = vmatprep.subr.bf16.mxu0 0
        %2490 = vmatpush1.bf16.msra.mxu0 0
        %2491 = vmatprep.subr.bf16.mxu0 0
        %2492 = vmatpush1.bf16.msra.mxu0 0
        %2493 = vmatprep.subr.bf16.mxu0 0
        %2494 = vmatpush1.bf16.msra.mxu0 0
        %2495 = vmatprep.subr.bf16.mxu0 0
        %2496 = vmatpush1.bf16.msra.mxu0 0
        %2497 = vmatprep.subr.bf16.mxu0 0
        %2498 = vmatpush1.bf16.msra.mxu0 0
        %2499 = vmatprep.subr.bf16.mxu0 0
        %2500 = vmatpush1.bf16.msra.mxu0 0
        %2501 = vmatprep.subr.bf16.mxu0 0
        %2502 = vmatpush1.bf16.msra.mxu0 0
        %2503 = vmatprep.subr.bf16.mxu0 0
        %2504 = vmatpush1.bf16.msra.mxu0 0
        %2505 = vmatprep.mubr.bf16.mxu0 0
        %2506 = vmatmul.mubr.bf16.gmra.mrb[0].mxu0 %v2283
        %v2507 = vpop.f32.mrb[0].mxu0
        %v2508 = vadd.f32 %v2221, %v2507
        %v2509 = vpop.f32.mrb[0].mxu0
        %v2510 = vpop.f32.mrb[0].mxu0
        %v2511 = vadd.f32 %v2226, %v2510
        %v2512 = vpop.f32.mrb[0].mxu0
        %2513 = vdwg.mxu0
        %v2514 = vmax.f32 %v2508, 0.0
        %v2515 = vmax.f32 %v2511, 0.0
        %v2516 = vpack.c.bf16 %v2515, %v2514
        %2517 = vmatprep.subr.bf16.mxu0 0
        %2518 = vmatpush1.bf16.msra.mxu0 %v2516
        %2519 = vmatprep.subr.bf16.mxu0 0
        %2520 = vmatpush1.bf16.msra.mxu0 0
        %2521 = vmatprep.subr.bf16.mxu0 0
        %2522 = vmatpush1.bf16.msra.mxu0 0
        %2523 = vmatprep.subr.bf16.mxu0 0
        %2524 = vmatpush1.bf16.msra.mxu0 0
        %2525 = vmatprep.subr.bf16.mxu0 0
        %2526 = vmatpush1.bf16.msra.mxu0 0
        %2527 = vmatprep.subr.bf16.mxu0 0
        %2528 = vmatpush1.bf16.msra.mxu0 0
        %2529 = vmatprep.subr.bf16.mxu0 0
        %2530 = vmatpush1.bf16.msra.mxu0 0
        %2531 = vmatprep.subr.bf16.mxu0 0
        %2532 = vmatpush1.bf16.msra.mxu0 0
        %2533 = vmatprep.subr.bf16.mxu0 0
        %2534 = vmatpush1.bf16.msra.mxu0 0
        %2535 = vmatprep.subr.bf16.mxu0 0
        %2536 = vmatpush1.bf16.msra.mxu0 0
        %2537 = vmatprep.subr.bf16.mxu0 0
        %2538 = vmatpush1.bf16.msra.mxu0 0
        %2539 = vmatprep.subr.bf16.mxu0 0
        %2540 = vmatpush1.bf16.msra.mxu0 0
        %2541 = vmatprep.subr.bf16.mxu0 0
        %2542 = vmatpush1.bf16.msra.mxu0 0
        %2543 = vmatprep.subr.bf16.mxu0 0
        %2544 = vmatpush1.bf16.msra.mxu0 0
        %2545 = vmatprep.subr.bf16.mxu0 0
        %2546 = vmatpush1.bf16.msra.mxu0 0
        %2547 = vmatprep.subr.bf16.mxu0 0
        %2548 = vmatpush1.bf16.msra.mxu0 0
        %2549 = vmatprep.mubr.bf16.mxu0 0
        %2550 = vmatmul.mubr.bf16.gmra.mrb[0].mxu0 %v2343
        %v2551 = vpop.f32.mrb[0].mxu0
        %v2552 = vadd.f32 %v2235, %v2551
        %v2553 = vpop.f32.mrb[0].mxu0
        %v2554 = vpop.f32.mrb[0].mxu0
        %v2555 = vadd.f32 %v2240, %v2554
        %v2556 = vpop.f32.mrb[0].mxu0
        %2557 = vmatprep.mubr.bf16.mxu0 0
        %2558 = vmatmul.mubr.bf16.gmra.mrb[0].mxu0 %v2346
        %v2559 = vpop.f32.mrb[0].mxu0
        %v2560 = vadd.f32 %v2245, %v2559
        %v2561 = vpop.f32.mrb[0].mxu0
        %v2562 = vpop.f32.mrb[0].mxu0
        %v2563 = vadd.f32 %v2250, %v2562
        %v2564 = vpop.f32.mrb[0].mxu0
        %2565 = vdwg.mxu0
        %v2566 = vmax.f32 %v2552, 0.0
        %v2567 = vmax.f32 %v2555, 0.0
        %v2568 = vmax.f32 %v2560, 0.0
        %v2569 = vmax.f32 %v2563, 0.0
        %v2570 = vpack.c.bf16 %v2567, %v2566
        %v2571 = vpack.c.bf16 %v2569, %v2568
        %2572 = vmatprep.subr.bf16.mxu0 0
        %2573 = vmatpush1.bf16.msra.mxu0 %v2570
        %2574 = vmatprep.subr.bf16.mxu0 0
        %2575 = vmatpush1.bf16.msra.mxu0 %v2571
        %2576 = vmatprep.subr.bf16.mxu0 0
        %2577 = vmatpush1.bf16.msra.mxu0 0
        %2578 = vmatprep.subr.bf16.mxu0 0
        %2579 = vmatpush1.bf16.msra.mxu0 0
        %2580 = vmatprep.subr.bf16.mxu0 0
        %2581 = vmatpush1.bf16.msra.mxu0 0
        %2582 = vmatprep.subr.bf16.mxu0 0
        %2583 = vmatpush1.bf16.msra.mxu0 0
        %2584 = vmatprep.subr.bf16.mxu0 0
        %2585 = vmatpush1.bf16.msra.mxu0 0
        %2586 = vmatprep.subr.bf16.mxu0 0
        %2587 = vmatpush1.bf16.msra.mxu0 0
        %2588 = vmatprep.subr.bf16.mxu0 0
        %2589 = vmatpush1.bf16.msra.mxu0 0
        %2590 = vmatprep.subr.bf16.mxu0 0
        %2591 = vmatpush1.bf16.msra.mxu0 0
        %2592 = vmatprep.subr.bf16.mxu0 0
        %2593 = vmatpush1.bf16.msra.mxu0 0
        %2594 = vmatprep.subr.bf16.mxu0 0
        %2595 = vmatpush1.bf16.msra.mxu0 0
        %2596 = vmatprep.subr.bf16.mxu0 0
        %2597 = vmatpush1.bf16.msra.mxu0 0
        %2598 = vmatprep.subr.bf16.mxu0 0
        %2599 = vmatpush1.bf16.msra.mxu0 0
        %2600 = vmatprep.subr.bf16.mxu0 0
        %2601 = vmatpush1.bf16.msra.mxu0 0
        %2602 = vmatprep.subr.bf16.mxu0 0
        %2603 = vmatpush1.bf16.msra.mxu0 0
        %2604 = vmatprep.mubr.bf16.mxu0 0
        %2605 = vmatmul.mubr.bf16.gmra.mrb[0].mxu0 %v2414
        %v2606 = vpop.f32.mrb[0].mxu0
        %v2607 = vadd.f32 %v2259, %v2606
        %v2608 = vpop.f32.mrb[0].mxu0
        %v2609 = vpop.f32.mrb[0].mxu0
        %v2610 = vadd.f32 %v2264, %v2609
        %v2611 = vpop.f32.mrb[0].mxu0
        %2612 = vmatprep.mubr.bf16.mxu0 0
        %2613 = vmatmul.mubr.bf16.gmra.mrb[0].mxu0 %v2417
        %v2614 = vpop.f32.mrb[0].mxu0
        %v2615 = vadd.f32 %v2269, %v2614
        %v2616 = vpop.f32.mrb[0].mxu0
        %v2617 = vpop.f32.mrb[0].mxu0
        %v2618 = vadd.f32 %v2274, %v2617
        %v2619 = vpop.f32.mrb[0].mxu0
        %2620 = vdwg.mxu0
        %v2621 = vmax.f32 %v2454, %v2607
        %v2622 = vmax.f32 %v2457, %v2610
        %v2623 = vmax.f32 %v2462, %v2615
        %v2624 = vmax.f32 %v2465, %v2618
        %s2625 = scalar_lea.vmem %s774, 4 [#allocation3]
        %v2626 = vld [vmem:[%s2625] sm:$0x3]
        %v2628 = vand.u32 %v2626, %v919
        %2630 = vmatprep.subr.bf16.mxu0 0
        %2631 = vmatpush1.bf16.msra.mxu0 %v2628
        %2632 = vmatprep.subr.bf16.mxu0 0
        %2633 = vmatpush1.bf16.msra.mxu0 0
        %2634 = vmatprep.subr.bf16.mxu0 0
        %2635 = vmatpush1.bf16.msra.mxu0 0
        %2636 = vmatprep.subr.bf16.mxu0 0
        %2637 = vmatpush1.bf16.msra.mxu0 0
        %2638 = vmatprep.subr.bf16.mxu0 0
        %2639 = vmatpush1.bf16.msra.mxu0 0
        %2640 = vmatprep.subr.bf16.mxu0 0
        %2641 = vmatpush1.bf16.msra.mxu0 0
        %2642 = vmatprep.subr.bf16.mxu0 0
        %2643 = vmatpush1.bf16.msra.mxu0 0
        %2644 = vmatprep.subr.bf16.mxu0 0
        %2645 = vmatpush1.bf16.msra.mxu0 0
        %2646 = vmatprep.subr.bf16.mxu0 0
        %2647 = vmatpush1.bf16.msra.mxu0 0
        %2648 = vmatprep.subr.bf16.mxu0 0
        %2649 = vmatpush1.bf16.msra.mxu0 0
        %2650 = vmatprep.subr.bf16.mxu0 0
        %2651 = vmatpush1.bf16.msra.mxu0 0
        %2652 = vmatprep.subr.bf16.mxu0 0
        %2653 = vmatpush1.bf16.msra.mxu0 0
        %2654 = vmatprep.subr.bf16.mxu0 0
        %2655 = vmatpush1.bf16.msra.mxu0 0
        %2656 = vmatprep.subr.bf16.mxu0 0
        %2657 = vmatpush1.bf16.msra.mxu0 0
        %2658 = vmatprep.subr.bf16.mxu0 0
        %2659 = vmatpush1.bf16.msra.mxu0 0
        %2660 = vmatprep.subr.bf16.mxu0 0
        %2661 = vmatpush1.bf16.msra.mxu0 0
        %2662 = vmatprep.mubr.bf16.mxu0 0
        %2663 = vmatmul.mubr.bf16.gmra.mrb[0].mxu0 %v2283
        %v2664 = vpop.f32.mrb[0].mxu0
        %v2665 = vadd.f32 %v2221, %v2664
        %v2666 = vpop.f32.mrb[0].mxu0
        %v2667 = vpop.f32.mrb[0].mxu0
        %v2668 = vadd.f32 %v2226, %v2667
        %v2669 = vpop.f32.mrb[0].mxu0
        %2670 = vdwg.mxu0
        %v2671 = vmax.f32 %v2665, 0.0
        %v2672 = vmax.f32 %v2668, 0.0
        %v2673 = vpack.c.bf16 %v2672, %v2671
        %2674 = vmatprep.subr.bf16.mxu0 0
        %2675 = vmatpush1.bf16.msra.mxu0 %v2673
        %2676 = vmatprep.subr.bf16.mxu0 0
        %2677 = vmatpush1.bf16.msra.mxu0 0
        %2678 = vmatprep.subr.bf16.mxu0 0
        %2679 = vmatpush1.bf16.msra.mxu0 0
        %2680 = vmatprep.subr.bf16.mxu0 0
        %2681 = vmatpush1.bf16.msra.mxu0 0
        %2682 = vmatprep.subr.bf16.mxu0 0
        %2683 = vmatpush1.bf16.msra.mxu0 0
        %2684 = vmatprep.subr.bf16.mxu0 0
        %2685 = vmatpush1.bf16.msra.mxu0 0
        %2686 = vmatprep.subr.bf16.mxu0 0
        %2687 = vmatpush1.bf16.msra.mxu0 0
        %2688 = vmatprep.subr.bf16.mxu0 0
        %2689 = vmatpush1.bf16.msra.mxu0 0
        %2690 = vmatprep.subr.bf16.mxu0 0
        %2691 = vmatpush1.bf16.msra.mxu0 0
        %2692 = vmatprep.subr.bf16.mxu0 0
        %2693 = vmatpush1.bf16.msra.mxu0 0
        %2694 = vmatprep.subr.bf16.mxu0 0
        %2695 = vmatpush1.bf16.msra.mxu0 0
        %2696 = vmatprep.subr.bf16.mxu0 0
        %2697 = vmatpush1.bf16.msra.mxu0 0
        %2698 = vmatprep.subr.bf16.mxu0 0
        %2699 = vmatpush1.bf16.msra.mxu0 0
        %2700 = vmatprep.subr.bf16.mxu0 0
        %2701 = vmatpush1.bf16.msra.mxu0 0
        %2702 = vmatprep.subr.bf16.mxu0 0
        %2703 = vmatpush1.bf16.msra.mxu0 0
        %2704 = vmatprep.subr.bf16.mxu0 0
        %2705 = vmatpush1.bf16.msra.mxu0 0
        %2706 = vmatprep.mubr.bf16.mxu0 0
        %2707 = vmatmul.mubr.bf16.gmra.mrb[0].mxu0 %v2343
        %v2708 = vpop.f32.mrb[0].mxu0
        %v2709 = vadd.f32 %v2235, %v2708
        %v2710 = vpop.f32.mrb[0].mxu0
        %v2711 = vpop.f32.mrb[0].mxu0
        %v2712 = vadd.f32 %v2240, %v2711
        %v2713 = vpop.f32.mrb[0].mxu0
        %2714 = vmatprep.mubr.bf16.mxu0 0
        %2715 = vmatmul.mubr.bf16.gmra.mrb[0].mxu0 %v2346
        %v2716 = vpop.f32.mrb[0].mxu0
        %v2717 = vadd.f32 %v2245, %v2716
        %v2718 = vpop.f32.mrb[0].mxu0
        %v2719 = vpop.f32.mrb[0].mxu0
        %v2720 = vadd.f32 %v2250, %v2719
        %v2721 = vpop.f32.mrb[0].mxu0
        %2722 = vdwg.mxu0
        %v2723 = vmax.f32 %v2709, 0.0
        %v2724 = vmax.f32 %v2712, 0.0
        %v2725 = vmax.f32 %v2717, 0.0
        %v2726 = vmax.f32 %v2720, 0.0
        %v2727 = vpack.c.bf16 %v2724, %v2723
        %v2728 = vpack.c.bf16 %v2726, %v2725
        %2729 = vmatprep.subr.bf16.mxu0 0
        %2730 = vmatpush1.bf16.msra.mxu0 %v2727
        %2731 = vmatprep.subr.bf16.mxu0 0
        %2732 = vmatpush1.bf16.msra.mxu0 %v2728
        %2733 = vmatprep.subr.bf16.mxu0 0
        %2734 = vmatpush1.bf16.msra.mxu0 0
        %2735 = vmatprep.subr.bf16.mxu0 0
        %2736 = vmatpush1.bf16.msra.mxu0 0
        %2737 = vmatprep.subr.bf16.mxu0 0
        %2738 = vmatpush1.bf16.msra.mxu0 0
        %2739 = vmatprep.subr.bf16.mxu0 0
        %2740 = vmatpush1.bf16.msra.mxu0 0
        %2741 = vmatprep.subr.bf16.mxu0 0
        %2742 = vmatpush1.bf16.msra.mxu0 0
        %2743 = vmatprep.subr.bf16.mxu0 0
        %2744 = vmatpush1.bf16.msra.mxu0 0
        %2745 = vmatprep.subr.bf16.mxu0 0
        %2746 = vmatpush1.bf16.msra.mxu0 0
        %2747 = vmatprep.subr.bf16.mxu0 0
        %2748 = vmatpush1.bf16.msra.mxu0 0
        %2749 = vmatprep.subr.bf16.mxu0 0
        %2750 = vmatpush1.bf16.msra.mxu0 0
        %2751 = vmatprep.subr.bf16.mxu0 0
        %2752 = vmatpush1.bf16.msra.mxu0 0
        %2753 = vmatprep.subr.bf16.mxu0 0
        %2754 = vmatpush1.bf16.msra.mxu0 0
        %2755 = vmatprep.subr.bf16.mxu0 0
        %2756 = vmatpush1.bf16.msra.mxu0 0
        %2757 = vmatprep.subr.bf16.mxu0 0
        %2758 = vmatpush1.bf16.msra.mxu0 0
        %2759 = vmatprep.subr.bf16.mxu0 0
        %2760 = vmatpush1.bf16.msra.mxu0 0
        %2761 = vmatprep.mubr.bf16.mxu0 0
        %2762 = vmatmul.mubr.bf16.gmra.mrb[0].mxu0 %v2414
        %v2763 = vpop.f32.mrb[0].mxu0
        %v2764 = vadd.f32 %v2259, %v2763
        %v2765 = vpop.f32.mrb[0].mxu0
        %v2766 = vpop.f32.mrb[0].mxu0
        %v2767 = vadd.f32 %v2264, %v2766
        %v2768 = vpop.f32.mrb[0].mxu0
        %2769 = vmatprep.mubr.bf16.mxu0 0
        %2770 = vmatmul.mubr.bf16.gmra.mrb[0].mxu0 %v2417
        %v2771 = vpop.f32.mrb[0].mxu0
        %v2772 = vadd.f32 %v2269, %v2771
        %v2773 = vpop.f32.mrb[0].mxu0
        %v2774 = vpop.f32.mrb[0].mxu0
        %v2775 = vadd.f32 %v2274, %v2774
        %v2776 = vpop.f32.mrb[0].mxu0
        %2777 = vdwg.mxu0
        %v2778 = vmax.f32 %v2621, %v2764
        %v2779 = vmax.f32 %v2622, %v2767
        %v2780 = vmax.f32 %v2623, %v2772
        %v2781 = vmax.f32 %v2624, %v2775
        %s2782 = scalar_lea.vmem %s774, 6 [#allocation3]
        %v2783 = vld [vmem:[%s2782] sm:$0x3]
        %v2785 = vand.u32 %v2783, %v919
        %2787 = vmatprep.subr.bf16.mxu0 0
        %2788 = vmatpush1.bf16.msra.mxu0 %v2785
        %2789 = vmatprep.subr.bf16.mxu0 0
        %2790 = vmatpush1.bf16.msra.mxu0 0
        %2791 = vmatprep.subr.bf16.mxu0 0
        %2792 = vmatpush1.bf16.msra.mxu0 0
        %2793 = vmatprep.subr.bf16.mxu0 0
        %2794 = vmatpush1.bf16.msra.mxu0 0
        %2795 = vmatprep.subr.bf16.mxu0 0
        %2796 = vmatpush1.bf16.msra.mxu0 0
        %2797 = vmatprep.subr.bf16.mxu0 0
        %2798 = vmatpush1.bf16.msra.mxu0 0
        %2799 = vmatprep.subr.bf16.mxu0 0
        %2800 = vmatpush1.bf16.msra.mxu0 0
        %2801 = vmatprep.subr.bf16.mxu0 0
        %2802 = vmatpush1.bf16.msra.mxu0 0
        %2803 = vmatprep.subr.bf16.mxu0 0
        %2804 = vmatpush1.bf16.msra.mxu0 0
        %2805 = vmatprep.subr.bf16.mxu0 0
        %2806 = vmatpush1.bf16.msra.mxu0 0
        %2807 = vmatprep.subr.bf16.mxu0 0
        %2808 = vmatpush1.bf16.msra.mxu0 0
        %2809 = vmatprep.subr.bf16.mxu0 0
        %2810 = vmatpush1.bf16.msra.mxu0 0
        %2811 = vmatprep.subr.bf16.mxu0 0
        %2812 = vmatpush1.bf16.msra.mxu0 0
        %2813 = vmatprep.subr.bf16.mxu0 0
        %2814 = vmatpush1.bf16.msra.mxu0 0
        %2815 = vmatprep.subr.bf16.mxu0 0
        %2816 = vmatpush1.bf16.msra.mxu0 0
        %2817 = vmatprep.subr.bf16.mxu0 0
        %2818 = vmatpush1.bf16.msra.mxu0 0
        %2819 = vmatprep.mubr.bf16.mxu0 0
        %2820 = vmatmul.mubr.bf16.gmra.mrb[0].mxu0 %v2283
        %v2821 = vpop.f32.mrb[0].mxu0
        %v2822 = vadd.f32 %v2221, %v2821
        %v2823 = vpop.f32.mrb[0].mxu0
        %v2824 = vpop.f32.mrb[0].mxu0
        %v2825 = vadd.f32 %v2226, %v2824
        %v2826 = vpop.f32.mrb[0].mxu0
        %2827 = vdwg.mxu0
        %v2828 = vmax.f32 %v2822, 0.0
        %v2829 = vmax.f32 %v2825, 0.0
        %v2830 = vpack.c.bf16 %v2829, %v2828
        %2831 = vmatprep.subr.bf16.mxu0 0
        %2832 = vmatpush1.bf16.msra.mxu0 %v2830
        %2833 = vmatprep.subr.bf16.mxu0 0
        %2834 = vmatpush1.bf16.msra.mxu0 0
        %2835 = vmatprep.subr.bf16.mxu0 0
        %2836 = vmatpush1.bf16.msra.mxu0 0
        %2837 = vmatprep.subr.bf16.mxu0 0
        %2838 = vmatpush1.bf16.msra.mxu0 0
        %2839 = vmatprep.subr.bf16.mxu0 0
        %2840 = vmatpush1.bf16.msra.mxu0 0
        %2841 = vmatprep.subr.bf16.mxu0 0
        %2842 = vmatpush1.bf16.msra.mxu0 0
        %2843 = vmatprep.subr.bf16.mxu0 0
        %2844 = vmatpush1.bf16.msra.mxu0 0
        %2845 = vmatprep.subr.bf16.mxu0 0
        %2846 = vmatpush1.bf16.msra.mxu0 0
        %2847 = vmatprep.subr.bf16.mxu0 0
        %2848 = vmatpush1.bf16.msra.mxu0 0
        %2849 = vmatprep.subr.bf16.mxu0 0
        %2850 = vmatpush1.bf16.msra.mxu0 0
        %2851 = vmatprep.subr.bf16.mxu0 0
        %2852 = vmatpush1.bf16.msra.mxu0 0
        %2853 = vmatprep.subr.bf16.mxu0 0
        %2854 = vmatpush1.bf16.msra.mxu0 0
        %2855 = vmatprep.subr.bf16.mxu0 0
        %2856 = vmatpush1.bf16.msra.mxu0 0
        %2857 = vmatprep.subr.bf16.mxu0 0
        %2858 = vmatpush1.bf16.msra.mxu0 0
        %2859 = vmatprep.subr.bf16.mxu0 0
        %2860 = vmatpush1.bf16.msra.mxu0 0
        %2861 = vmatprep.subr.bf16.mxu0 0
        %2862 = vmatpush1.bf16.msra.mxu0 0
        %2863 = vmatprep.mubr.bf16.mxu0 0
        %2864 = vmatmul.mubr.bf16.gmra.mrb[0].mxu0 %v2343
        %v2865 = vpop.f32.mrb[0].mxu0
        %v2866 = vadd.f32 %v2235, %v2865
        %v2867 = vpop.f32.mrb[0].mxu0
        %v2868 = vpop.f32.mrb[0].mxu0
        %v2869 = vadd.f32 %v2240, %v2868
        %v2870 = vpop.f32.mrb[0].mxu0
        %2871 = vmatprep.mubr.bf16.mxu0 0
        %2872 = vmatmul.mubr.bf16.gmra.mrb[0].mxu0 %v2346
        %v2873 = vpop.f32.mrb[0].mxu0
        %v2874 = vadd.f32 %v2245, %v2873
        %v2875 = vpop.f32.mrb[0].mxu0
        %v2876 = vpop.f32.mrb[0].mxu0
        %v2877 = vadd.f32 %v2250, %v2876
        %v2878 = vpop.f32.mrb[0].mxu0
        %2879 = vdwg.mxu0
        %v2880 = vmax.f32 %v2866, 0.0
        %v2881 = vmax.f32 %v2869, 0.0
        %v2882 = vmax.f32 %v2874, 0.0
        %v2883 = vmax.f32 %v2877, 0.0
        %v2884 = vpack.c.bf16 %v2881, %v2880
        %v2885 = vpack.c.bf16 %v2883, %v2882
        %2886 = vmatprep.subr.bf16.mxu0 0
        %2887 = vmatpush1.bf16.msra.mxu0 %v2884
        %2888 = vmatprep.subr.bf16.mxu0 0
        %2889 = vmatpush1.bf16.msra.mxu0 %v2885
        %2890 = vmatprep.subr.bf16.mxu0 0
        %2891 = vmatpush1.bf16.msra.mxu0 0
        %2892 = vmatprep.subr.bf16.mxu0 0
        %2893 = vmatpush1.bf16.msra.mxu0 0
        %2894 = vmatprep.subr.bf16.mxu0 0
        %2895 = vmatpush1.bf16.msra.mxu0 0
        %2896 = vmatprep.subr.bf16.mxu0 0
        %2897 = vmatpush1.bf16.msra.mxu0 0
        %2898 = vmatprep.subr.bf16.mxu0 0
        %2899 = vmatpush1.bf16.msra.mxu0 0
        %2900 = vmatprep.subr.bf16.mxu0 0
        %2901 = vmatpush1.bf16.msra.mxu0 0
        %2902 = vmatprep.subr.bf16.mxu0 0
        %2903 = vmatpush1.bf16.msra.mxu0 0
        %2904 = vmatprep.subr.bf16.mxu0 0
        %2905 = vmatpush1.bf16.msra.mxu0 0
        %2906 = vmatprep.subr.bf16.mxu0 0
        %2907 = vmatpush1.bf16.msra.mxu0 0
        %2908 = vmatprep.subr.bf16.mxu0 0
        %2909 = vmatpush1.bf16.msra.mxu0 0
        %2910 = vmatprep.subr.bf16.mxu0 0
        %2911 = vmatpush1.bf16.msra.mxu0 0
        %2912 = vmatprep.subr.bf16.mxu0 0
        %2913 = vmatpush1.bf16.msra.mxu0 0
        %2914 = vmatprep.subr.bf16.mxu0 0
        %2915 = vmatpush1.bf16.msra.mxu0 0
        %2916 = vmatprep.subr.bf16.mxu0 0
        %2917 = vmatpush1.bf16.msra.mxu0 0
        %2918 = vmatprep.mubr.bf16.mxu0 0
        %2919 = vmatmul.mubr.bf16.gmra.mrb[0].mxu0 %v2414
        %v2920 = vpop.f32.mrb[0].mxu0
        %v2921 = vadd.f32 %v2259, %v2920
        %v2922 = vpop.f32.mrb[0].mxu0
        %v2923 = vpop.f32.mrb[0].mxu0
        %v2924 = vadd.f32 %v2264, %v2923
        %v2925 = vpop.f32.mrb[0].mxu0
        %2926 = vmatprep.mubr.bf16.mxu0 0
        %2927 = vmatmul.mubr.bf16.gmra.mrb[0].mxu0 %v2417
        %v2928 = vpop.f32.mrb[0].mxu0
        %v2929 = vadd.f32 %v2269, %v2928
        %v2930 = vpop.f32.mrb[0].mxu0
        %v2931 = vpop.f32.mrb[0].mxu0
        %v2932 = vadd.f32 %v2274, %v2931
        %v2933 = vpop.f32.mrb[0].mxu0
        %2934 = vdwg.mxu0
        %v2935 = vmax.f32 %v2778, %v2921
        %v2936 = vmax.f32 %v2779, %v2924
        %v2937 = vmax.f32 %v2780, %v2929
        %v2938 = vmax.f32 %v2781, %v2932
        %s2939 = scalar_lea.vmem %s774, 8 [#allocation3]
        %v2940 = vld [vmem:[%s2939] sm:$0x3]
        %v2942 = vand.u32 %v2940, %v919
        %2944 = vmatprep.subr.bf16.mxu0 0
        %2945 = vmatpush1.bf16.msra.mxu0 %v2942
        %2946 = vmatprep.subr.bf16.mxu0 0
        %2947 = vmatpush1.bf16.msra.mxu0 0
        %2948 = vmatprep.subr.bf16.mxu0 0
        %2949 = vmatpush1.bf16.msra.mxu0 0
        %2950 = vmatprep.subr.bf16.mxu0 0
        %2951 = vmatpush1.bf16.msra.mxu0 0
        %2952 = vmatprep.subr.bf16.mxu0 0
        %2953 = vmatpush1.bf16.msra.mxu0 0
        %2954 = vmatprep.subr.bf16.mxu0 0
        %2955 = vmatpush1.bf16.msra.mxu0 0
        %2956 = vmatprep.subr.bf16.mxu0 0
        %2957 = vmatpush1.bf16.msra.mxu0 0
        %2958 = vmatprep.subr.bf16.mxu0 0
        %2959 = vmatpush1.bf16.msra.mxu0 0
        %2960 = vmatprep.subr.bf16.mxu0 0
        %2961 = vmatpush1.bf16.msra.mxu0 0
        %2962 = vmatprep.subr.bf16.mxu0 0
        %2963 = vmatpush1.bf16.msra.mxu0 0
        %2964 = vmatprep.subr.bf16.mxu0 0
        %2965 = vmatpush1.bf16.msra.mxu0 0
        %2966 = vmatprep.subr.bf16.mxu0 0
        %2967 = vmatpush1.bf16.msra.mxu0 0
        %2968 = vmatprep.subr.bf16.mxu0 0
        %2969 = vmatpush1.bf16.msra.mxu0 0
        %2970 = vmatprep.subr.bf16.mxu0 0
        %2971 = vmatpush1.bf16.msra.mxu0 0
        %2972 = vmatprep.subr.bf16.mxu0 0
        %2973 = vmatpush1.bf16.msra.mxu0 0
        %2974 = vmatprep.subr.bf16.mxu0 0
        %2975 = vmatpush1.bf16.msra.mxu0 0
        %2976 = vmatprep.mubr.bf16.mxu0 0
        %2977 = vmatmul.mubr.bf16.gmra.mrb[0].mxu0 %v2283
        %v2978 = vpop.f32.mrb[0].mxu0
        %v2979 = vadd.f32 %v2221, %v2978
        %v2980 = vpop.f32.mrb[0].mxu0
        %v2981 = vpop.f32.mrb[0].mxu0
        %v2982 = vadd.f32 %v2226, %v2981
        %v2983 = vpop.f32.mrb[0].mxu0
        %2984 = vdwg.mxu0
        %v2985 = vmax.f32 %v2979, 0.0
        %v2986 = vmax.f32 %v2982, 0.0
        %v2987 = vpack.c.bf16 %v2986, %v2985
        %2988 = vmatprep.subr.bf16.mxu0 0
        %2989 = vmatpush1.bf16.msra.mxu0 %v2987
        %2990 = vmatprep.subr.bf16.mxu0 0
        %2991 = vmatpush1.bf16.msra.mxu0 0
        %2992 = vmatprep.subr.bf16.mxu0 0
        %2993 = vmatpush1.bf16.msra.mxu0 0
        %2994 = vmatprep.subr.bf16.mxu0 0
        %2995 = vmatpush1.bf16.msra.mxu0 0
        %2996 = vmatprep.subr.bf16.mxu0 0
        %2997 = vmatpush1.bf16.msra.mxu0 0
        %2998 = vmatprep.subr.bf16.mxu0 0
        %2999 = vmatpush1.bf16.msra.mxu0 0
        %3000 = vmatprep.subr.bf16.mxu0 0
        %3001 = vmatpush1.bf16.msra.mxu0 0
        %3002 = vmatprep.subr.bf16.mxu0 0
        %3003 = vmatpush1.bf16.msra.mxu0 0
        %3004 = vmatprep.subr.bf16.mxu0 0
        %3005 = vmatpush1.bf16.msra.mxu0 0
        %3006 = vmatprep.subr.bf16.mxu0 0
        %3007 = vmatpush1.bf16.msra.mxu0 0
        %3008 = vmatprep.subr.bf16.mxu0 0
        %3009 = vmatpush1.bf16.msra.mxu0 0
        %3010 = vmatprep.subr.bf16.mxu0 0
        %3011 = vmatpush1.bf16.msra.mxu0 0
        %3012 = vmatprep.subr.bf16.mxu0 0
        %3013 = vmatpush1.bf16.msra.mxu0 0
        %3014 = vmatprep.subr.bf16.mxu0 0
        %3015 = vmatpush1.bf16.msra.mxu0 0
        %3016 = vmatprep.subr.bf16.mxu0 0
        %3017 = vmatpush1.bf16.msra.mxu0 0
        %3018 = vmatprep.subr.bf16.mxu0 0
        %3019 = vmatpush1.bf16.msra.mxu0 0
        %3020 = vmatprep.mubr.bf16.mxu0 0
        %3021 = vmatmul.mubr.bf16.gmra.mrb[0].mxu0 %v2343
        %v3022 = vpop.f32.mrb[0].mxu0
        %v3023 = vadd.f32 %v2235, %v3022
        %v3024 = vpop.f32.mrb[0].mxu0
        %v3025 = vpop.f32.mrb[0].mxu0
        %v3026 = vadd.f32 %v2240, %v3025
        %v3027 = vpop.f32.mrb[0].mxu0
        %3028 = vmatprep.mubr.bf16.mxu0 0
        %3029 = vmatmul.mubr.bf16.gmra.mrb[0].mxu0 %v2346
        %v3030 = vpop.f32.mrb[0].mxu0
        %v3031 = vadd.f32 %v2245, %v3030
        %v3032 = vpop.f32.mrb[0].mxu0
        %v3033 = vpop.f32.mrb[0].mxu0
        %v3034 = vadd.f32 %v2250, %v3033
        %v3035 = vpop.f32.mrb[0].mxu0
        %3036 = vdwg.mxu0
        %v3037 = vmax.f32 %v3023, 0.0
        %v3038 = vmax.f32 %v3026, 0.0
        %v3039 = vmax.f32 %v3031, 0.0
        %v3040 = vmax.f32 %v3034, 0.0
        %v3041 = vpack.c.bf16 %v3038, %v3037
        %v3042 = vpack.c.bf16 %v3040, %v3039
        %3043 = vmatprep.subr.bf16.mxu0 0
        %3044 = vmatpush1.bf16.msra.mxu0 %v3041
        %3045 = vmatprep.subr.bf16.mxu0 0
        %3046 = vmatpush1.bf16.msra.mxu0 %v3042
        %3047 = vmatprep.subr.bf16.mxu0 0
        %3048 = vmatpush1.bf16.msra.mxu0 0
        %3049 = vmatprep.subr.bf16.mxu0 0
        %3050 = vmatpush1.bf16.msra.mxu0 0
        %3051 = vmatprep.subr.bf16.mxu0 0
        %3052 = vmatpush1.bf16.msra.mxu0 0
        %3053 = vmatprep.subr.bf16.mxu0 0
        %3054 = vmatpush1.bf16.msra.mxu0 0
        %3055 = vmatprep.subr.bf16.mxu0 0
        %3056 = vmatpush1.bf16.msra.mxu0 0
        %3057 = vmatprep.subr.bf16.mxu0 0
        %3058 = vmatpush1.bf16.msra.mxu0 0
        %3059 = vmatprep.subr.bf16.mxu0 0
        %3060 = vmatpush1.bf16.msra.mxu0 0
        %3061 = vmatprep.subr.bf16.mxu0 0
        %3062 = vmatpush1.bf16.msra.mxu0 0
        %3063 = vmatprep.subr.bf16.mxu0 0
        %3064 = vmatpush1.bf16.msra.mxu0 0
        %3065 = vmatprep.subr.bf16.mxu0 0
        %3066 = vmatpush1.bf16.msra.mxu0 0
        %3067 = vmatprep.subr.bf16.mxu0 0
        %3068 = vmatpush1.bf16.msra.mxu0 0
        %3069 = vmatprep.subr.bf16.mxu0 0
        %3070 = vmatpush1.bf16.msra.mxu0 0
        %3071 = vmatprep.subr.bf16.mxu0 0
        %3072 = vmatpush1.bf16.msra.mxu0 0
        %3073 = vmatprep.subr.bf16.mxu0 0
        %3074 = vmatpush1.bf16.msra.mxu0 0
        %3075 = vmatprep.mubr.bf16.mxu0 0
        %3076 = vmatmul.mubr.bf16.gmra.mrb[0].mxu0 %v2414
        %v3077 = vpop.f32.mrb[0].mxu0
        %v3078 = vadd.f32 %v2259, %v3077
        %v3079 = vpop.f32.mrb[0].mxu0
        %v3080 = vpop.f32.mrb[0].mxu0
        %v3081 = vadd.f32 %v2264, %v3080
        %v3082 = vpop.f32.mrb[0].mxu0
        %3083 = vmatprep.mubr.bf16.mxu0 0
        %3084 = vmatmul.mubr.bf16.gmra.mrb[0].mxu0 %v2417
        %v3085 = vpop.f32.mrb[0].mxu0
        %v3086 = vadd.f32 %v2269, %v3085
        %v3087 = vpop.f32.mrb[0].mxu0
        %v3088 = vpop.f32.mrb[0].mxu0
        %v3089 = vadd.f32 %v2274, %v3088
        %v3090 = vpop.f32.mrb[0].mxu0
        %3091 = vdwg.mxu0
        %v3092 = vmax.f32 %v2935, %v3078
        %v3093 = vmax.f32 %v2936, %v3081
        %v3094 = vmax.f32 %v2937, %v3086
        %v3095 = vmax.f32 %v2938, %v3089
        %s3096 = scalar_lea.vmem %s774, 10 [#allocation3]
        %v3097 = vld [vmem:[%s3096] sm:$0x3]
        %v3099 = vand.u32 %v3097, %v919
        %3101 = vmatprep.subr.bf16.mxu0 0
        %3102 = vmatpush1.bf16.msra.mxu0 %v3099
        %3103 = vmatprep.subr.bf16.mxu0 0
        %3104 = vmatpush1.bf16.msra.mxu0 0
        %3105 = vmatprep.subr.bf16.mxu0 0
        %3106 = vmatpush1.bf16.msra.mxu0 0
        %3107 = vmatprep.subr.bf16.mxu0 0
        %3108 = vmatpush1.bf16.msra.mxu0 0
        %3109 = vmatprep.subr.bf16.mxu0 0
        %3110 = vmatpush1.bf16.msra.mxu0 0
        %3111 = vmatprep.subr.bf16.mxu0 0
        %3112 = vmatpush1.bf16.msra.mxu0 0
        %3113 = vmatprep.subr.bf16.mxu0 0
        %3114 = vmatpush1.bf16.msra.mxu0 0
        %3115 = vmatprep.subr.bf16.mxu0 0
        %3116 = vmatpush1.bf16.msra.mxu0 0
        %3117 = vmatprep.subr.bf16.mxu0 0
        %3118 = vmatpush1.bf16.msra.mxu0 0
        %3119 = vmatprep.subr.bf16.mxu0 0
        %3120 = vmatpush1.bf16.msra.mxu0 0
        %3121 = vmatprep.subr.bf16.mxu0 0
        %3122 = vmatpush1.bf16.msra.mxu0 0
        %3123 = vmatprep.subr.bf16.mxu0 0
        %3124 = vmatpush1.bf16.msra.mxu0 0
        %3125 = vmatprep.subr.bf16.mxu0 0
        %3126 = vmatpush1.bf16.msra.mxu0 0
        %3127 = vmatprep.subr.bf16.mxu0 0
        %3128 = vmatpush1.bf16.msra.mxu0 0
        %3129 = vmatprep.subr.bf16.mxu0 0
        %3130 = vmatpush1.bf16.msra.mxu0 0
        %3131 = vmatprep.subr.bf16.mxu0 0
        %3132 = vmatpush1.bf16.msra.mxu0 0
        %3133 = vmatprep.mubr.bf16.mxu0 0
        %3134 = vmatmul.mubr.bf16.gmra.mrb[0].mxu0 %v2283
        %v3135 = vpop.f32.mrb[0].mxu0
        %v3136 = vadd.f32 %v2221, %v3135
        %v3137 = vpop.f32.mrb[0].mxu0
        %v3138 = vpop.f32.mrb[0].mxu0
        %v3139 = vadd.f32 %v2226, %v3138
        %v3140 = vpop.f32.mrb[0].mxu0
        %3141 = vdwg.mxu0
        %v3142 = vmax.f32 %v3136, 0.0
        %v3143 = vmax.f32 %v3139, 0.0
        %v3144 = vpack.c.bf16 %v3143, %v3142
        %3145 = vmatprep.subr.bf16.mxu0 0
        %3146 = vmatpush1.bf16.msra.mxu0 %v3144
        %3147 = vmatprep.subr.bf16.mxu0 0
        %3148 = vmatpush1.bf16.msra.mxu0 0
        %3149 = vmatprep.subr.bf16.mxu0 0
        %3150 = vmatpush1.bf16.msra.mxu0 0
        %3151 = vmatprep.subr.bf16.mxu0 0
        %3152 = vmatpush1.bf16.msra.mxu0 0
        %3153 = vmatprep.subr.bf16.mxu0 0
        %3154 = vmatpush1.bf16.msra.mxu0 0
        %3155 = vmatprep.subr.bf16.mxu0 0
        %3156 = vmatpush1.bf16.msra.mxu0 0
        %3157 = vmatprep.subr.bf16.mxu0 0
        %3158 = vmatpush1.bf16.msra.mxu0 0
        %3159 = vmatprep.subr.bf16.mxu0 0
        %3160 = vmatpush1.bf16.msra.mxu0 0
        %3161 = vmatprep.subr.bf16.mxu0 0
        %3162 = vmatpush1.bf16.msra.mxu0 0
        %3163 = vmatprep.subr.bf16.mxu0 0
        %3164 = vmatpush1.bf16.msra.mxu0 0
        %3165 = vmatprep.subr.bf16.mxu0 0
        %3166 = vmatpush1.bf16.msra.mxu0 0
        %3167 = vmatprep.subr.bf16.mxu0 0
        %3168 = vmatpush1.bf16.msra.mxu0 0
        %3169 = vmatprep.subr.bf16.mxu0 0
        %3170 = vmatpush1.bf16.msra.mxu0 0
        %3171 = vmatprep.subr.bf16.mxu0 0
        %3172 = vmatpush1.bf16.msra.mxu0 0
        %3173 = vmatprep.subr.bf16.mxu0 0
        %3174 = vmatpush1.bf16.msra.mxu0 0
        %3175 = vmatprep.subr.bf16.mxu0 0
        %3176 = vmatpush1.bf16.msra.mxu0 0
        %3177 = vmatprep.mubr.bf16.mxu0 0
        %3178 = vmatmul.mubr.bf16.gmra.mrb[0].mxu0 %v2343
        %v3179 = vpop.f32.mrb[0].mxu0
        %v3180 = vadd.f32 %v2235, %v3179
        %v3181 = vpop.f32.mrb[0].mxu0
        %v3182 = vpop.f32.mrb[0].mxu0
        %v3183 = vadd.f32 %v2240, %v3182
        %v3184 = vpop.f32.mrb[0].mxu0
        %3185 = vmatprep.mubr.bf16.mxu0 0
        %3186 = vmatmul.mubr.bf16.gmra.mrb[0].mxu0 %v2346
        %v3187 = vpop.f32.mrb[0].mxu0
        %v3188 = vadd.f32 %v2245, %v3187
        %v3189 = vpop.f32.mrb[0].mxu0
        %v3190 = vpop.f32.mrb[0].mxu0
        %v3191 = vadd.f32 %v2250, %v3190
        %v3192 = vpop.f32.mrb[0].mxu0
        %3193 = vdwg.mxu0
        %v3194 = vmax.f32 %v3180, 0.0
        %v3195 = vmax.f32 %v3183, 0.0
        %v3196 = vmax.f32 %v3188, 0.0
        %v3197 = vmax.f32 %v3191, 0.0
        %v3198 = vpack.c.bf16 %v3195, %v3194
        %v3199 = vpack.c.bf16 %v3197, %v3196
        %3200 = vmatprep.subr.bf16.mxu0 0
        %3201 = vmatpush1.bf16.msra.mxu0 %v3198
        %3202 = vmatprep.subr.bf16.mxu0 0
        %3203 = vmatpush1.bf16.msra.mxu0 %v3199
        %3204 = vmatprep.subr.bf16.mxu0 0
        %3205 = vmatpush1.bf16.msra.mxu0 0
        %3206 = vmatprep.subr.bf16.mxu0 0
        %3207 = vmatpush1.bf16.msra.mxu0 0
        %3208 = vmatprep.subr.bf16.mxu0 0
        %3209 = vmatpush1.bf16.msra.mxu0 0
        %3210 = vmatprep.subr.bf16.mxu0 0
        %3211 = vmatpush1.bf16.msra.mxu0 0
        %3212 = vmatprep.subr.bf16.mxu0 0
        %3213 = vmatpush1.bf16.msra.mxu0 0
        %3214 = vmatprep.subr.bf16.mxu0 0
        %3215 = vmatpush1.bf16.msra.mxu0 0
        %3216 = vmatprep.subr.bf16.mxu0 0
        %3217 = vmatpush1.bf16.msra.mxu0 0
        %3218 = vmatprep.subr.bf16.mxu0 0
        %3219 = vmatpush1.bf16.msra.mxu0 0
        %3220 = vmatprep.subr.bf16.mxu0 0
        %3221 = vmatpush1.bf16.msra.mxu0 0
        %3222 = vmatprep.subr.bf16.mxu0 0
        %3223 = vmatpush1.bf16.msra.mxu0 0
        %3224 = vmatprep.subr.bf16.mxu0 0
        %3225 = vmatpush1.bf16.msra.mxu0 0
        %3226 = vmatprep.subr.bf16.mxu0 0
        %3227 = vmatpush1.bf16.msra.mxu0 0
        %3228 = vmatprep.subr.bf16.mxu0 0
        %3229 = vmatpush1.bf16.msra.mxu0 0
        %3230 = vmatprep.subr.bf16.mxu0 0
        %3231 = vmatpush1.bf16.msra.mxu0 0
        %3232 = vmatprep.mubr.bf16.mxu0 0
        %3233 = vmatmul.mubr.bf16.gmra.mrb[0].mxu0 %v2414
        %v3234 = vpop.f32.mrb[0].mxu0
        %v3235 = vadd.f32 %v2259, %v3234
        %v3236 = vpop.f32.mrb[0].mxu0
        %v3237 = vpop.f32.mrb[0].mxu0
        %v3238 = vadd.f32 %v2264, %v3237
        %v3239 = vpop.f32.mrb[0].mxu0
        %3240 = vmatprep.mubr.bf16.mxu0 0
        %3241 = vmatmul.mubr.bf16.gmra.mrb[0].mxu0 %v2417
        %v3242 = vpop.f32.mrb[0].mxu0
        %v3243 = vadd.f32 %v2269, %v3242
        %v3244 = vpop.f32.mrb[0].mxu0
        %v3245 = vpop.f32.mrb[0].mxu0
        %v3246 = vadd.f32 %v2274, %v3245
        %v3247 = vpop.f32.mrb[0].mxu0
        %3248 = vdwg.mxu0
        %v3249 = vmax.f32 %v3092, %v3235
        %v3250 = vmax.f32 %v3093, %v3238
        %v3251 = vmax.f32 %v3094, %v3243
        %v3252 = vmax.f32 %v3095, %v3246
        %s3253 = scalar_lea.vmem %s774, 12 [#allocation3]
        %v3254 = vld [vmem:[%s3253] sm:$0x3]
        %v3256 = vand.u32 %v3254, %v919
        %3258 = vmatprep.subr.bf16.mxu0 0
        %3259 = vmatpush1.bf16.msra.mxu0 %v3256
        %3260 = vmatprep.subr.bf16.mxu0 0
        %3261 = vmatpush1.bf16.msra.mxu0 0
        %3262 = vmatprep.subr.bf16.mxu0 0
        %3263 = vmatpush1.bf16.msra.mxu0 0
        %3264 = vmatprep.subr.bf16.mxu0 0
        %3265 = vmatpush1.bf16.msra.mxu0 0
        %3266 = vmatprep.subr.bf16.mxu0 0
        %3267 = vmatpush1.bf16.msra.mxu0 0
        %3268 = vmatprep.subr.bf16.mxu0 0
        %3269 = vmatpush1.bf16.msra.mxu0 0
        %3270 = vmatprep.subr.bf16.mxu0 0
        %3271 = vmatpush1.bf16.msra.mxu0 0
        %3272 = vmatprep.subr.bf16.mxu0 0
        %3273 = vmatpush1.bf16.msra.mxu0 0
        %3274 = vmatprep.subr.bf16.mxu0 0
        %3275 = vmatpush1.bf16.msra.mxu0 0
        %3276 = vmatprep.subr.bf16.mxu0 0
        %3277 = vmatpush1.bf16.msra.mxu0 0
        %3278 = vmatprep.subr.bf16.mxu0 0
        %3279 = vmatpush1.bf16.msra.mxu0 0
        %3280 = vmatprep.subr.bf16.mxu0 0
        %3281 = vmatpush1.bf16.msra.mxu0 0
        %3282 = vmatprep.subr.bf16.mxu0 0
        %3283 = vmatpush1.bf16.msra.mxu0 0
        %3284 = vmatprep.subr.bf16.mxu0 0
        %3285 = vmatpush1.bf16.msra.mxu0 0
        %3286 = vmatprep.subr.bf16.mxu0 0
        %3287 = vmatpush1.bf16.msra.mxu0 0
        %3288 = vmatprep.subr.bf16.mxu0 0
        %3289 = vmatpush1.bf16.msra.mxu0 0
        %3290 = vmatprep.mubr.bf16.mxu0 0
        %3291 = vmatmul.mubr.bf16.gmra.mrb[0].mxu0 %v2283
        %v3292 = vpop.f32.mrb[0].mxu0
        %v3293 = vadd.f32 %v2221, %v3292
        %v3294 = vpop.f32.mrb[0].mxu0
        %v3295 = vpop.f32.mrb[0].mxu0
        %v3296 = vadd.f32 %v2226, %v3295
        %v3297 = vpop.f32.mrb[0].mxu0
        %3298 = vdwg.mxu0
        %v3299 = vmax.f32 %v3293, 0.0
        %v3300 = vmax.f32 %v3296, 0.0
        %v3301 = vpack.c.bf16 %v3300, %v3299
        %3302 = vmatprep.subr.bf16.mxu0 0
        %3303 = vmatpush1.bf16.msra.mxu0 %v3301
        %3304 = vmatprep.subr.bf16.mxu0 0
        %3305 = vmatpush1.bf16.msra.mxu0 0
        %3306 = vmatprep.subr.bf16.mxu0 0
        %3307 = vmatpush1.bf16.msra.mxu0 0
        %3308 = vmatprep.subr.bf16.mxu0 0
        %3309 = vmatpush1.bf16.msra.mxu0 0
        %3310 = vmatprep.subr.bf16.mxu0 0
        %3311 = vmatpush1.bf16.msra.mxu0 0
        %3312 = vmatprep.subr.bf16.mxu0 0
        %3313 = vmatpush1.bf16.msra.mxu0 0
        %3314 = vmatprep.subr.bf16.mxu0 0
        %3315 = vmatpush1.bf16.msra.mxu0 0
        %3316 = vmatprep.subr.bf16.mxu0 0
        %3317 = vmatpush1.bf16.msra.mxu0 0
        %3318 = vmatprep.subr.bf16.mxu0 0
        %3319 = vmatpush1.bf16.msra.mxu0 0
        %3320 = vmatprep.subr.bf16.mxu0 0
        %3321 = vmatpush1.bf16.msra.mxu0 0
        %3322 = vmatprep.subr.bf16.mxu0 0
        %3323 = vmatpush1.bf16.msra.mxu0 0
        %3324 = vmatprep.subr.bf16.mxu0 0
        %3325 = vmatpush1.bf16.msra.mxu0 0
        %3326 = vmatprep.subr.bf16.mxu0 0
        %3327 = vmatpush1.bf16.msra.mxu0 0
        %3328 = vmatprep.subr.bf16.mxu0 0
        %3329 = vmatpush1.bf16.msra.mxu0 0
        %3330 = vmatprep.subr.bf16.mxu0 0
        %3331 = vmatpush1.bf16.msra.mxu0 0
        %3332 = vmatprep.subr.bf16.mxu0 0
        %3333 = vmatpush1.bf16.msra.mxu0 0
        %3334 = vmatprep.mubr.bf16.mxu0 0
        %3335 = vmatmul.mubr.bf16.gmra.mrb[0].mxu0 %v2343
        %v3336 = vpop.f32.mrb[0].mxu0
        %v3337 = vadd.f32 %v2235, %v3336
        %v3338 = vpop.f32.mrb[0].mxu0
        %v3339 = vpop.f32.mrb[0].mxu0
        %v3340 = vadd.f32 %v2240, %v3339
        %v3341 = vpop.f32.mrb[0].mxu0
        %3342 = vmatprep.mubr.bf16.mxu0 0
        %3343 = vmatmul.mubr.bf16.gmra.mrb[0].mxu0 %v2346
        %v3344 = vpop.f32.mrb[0].mxu0
        %v3345 = vadd.f32 %v2245, %v3344
        %v3346 = vpop.f32.mrb[0].mxu0
        %v3347 = vpop.f32.mrb[0].mxu0
        %v3348 = vadd.f32 %v2250, %v3347
        %v3349 = vpop.f32.mrb[0].mxu0
        %3350 = vdwg.mxu0
        %v3351 = vmax.f32 %v3337, 0.0
        %v3352 = vmax.f32 %v3340, 0.0
        %v3353 = vmax.f32 %v3345, 0.0
        %v3354 = vmax.f32 %v3348, 0.0
        %v3355 = vpack.c.bf16 %v3352, %v3351
        %v3356 = vpack.c.bf16 %v3354, %v3353
        %3357 = vmatprep.subr.bf16.mxu0 0
        %3358 = vmatpush1.bf16.msra.mxu0 %v3355
        %3359 = vmatprep.subr.bf16.mxu0 0
        %3360 = vmatpush1.bf16.msra.mxu0 %v3356
        %3361 = vmatprep.subr.bf16.mxu0 0
        %3362 = vmatpush1.bf16.msra.mxu0 0
        %3363 = vmatprep.subr.bf16.mxu0 0
        %3364 = vmatpush1.bf16.msra.mxu0 0
        %3365 = vmatprep.subr.bf16.mxu0 0
        %3366 = vmatpush1.bf16.msra.mxu0 0
        %3367 = vmatprep.subr.bf16.mxu0 0
        %3368 = vmatpush1.bf16.msra.mxu0 0
        %3369 = vmatprep.subr.bf16.mxu0 0
        %3370 = vmatpush1.bf16.msra.mxu0 0
        %3371 = vmatprep.subr.bf16.mxu0 0
        %3372 = vmatpush1.bf16.msra.mxu0 0
        %3373 = vmatprep.subr.bf16.mxu0 0
        %3374 = vmatpush1.bf16.msra.mxu0 0
        %3375 = vmatprep.subr.bf16.mxu0 0
        %3376 = vmatpush1.bf16.msra.mxu0 0
        %3377 = vmatprep.subr.bf16.mxu0 0
        %3378 = vmatpush1.bf16.msra.mxu0 0
        %3379 = vmatprep.subr.bf16.mxu0 0
        %3380 = vmatpush1.bf16.msra.mxu0 0
        %3381 = vmatprep.subr.bf16.mxu0 0
        %3382 = vmatpush1.bf16.msra.mxu0 0
        %3383 = vmatprep.subr.bf16.mxu0 0
        %3384 = vmatpush1.bf16.msra.mxu0 0
        %3385 = vmatprep.subr.bf16.mxu0 0
        %3386 = vmatpush1.bf16.msra.mxu0 0
        %3387 = vmatprep.subr.bf16.mxu0 0
        %3388 = vmatpush1.bf16.msra.mxu0 0
        %3389 = vmatprep.mubr.bf16.mxu0 0
        %3390 = vmatmul.mubr.bf16.gmra.mrb[0].mxu0 %v2414
        %v3391 = vpop.f32.mrb[0].mxu0
        %v3392 = vadd.f32 %v2259, %v3391
        %v3393 = vpop.f32.mrb[0].mxu0
        %v3394 = vpop.f32.mrb[0].mxu0
        %v3395 = vadd.f32 %v2264, %v3394
        %v3396 = vpop.f32.mrb[0].mxu0
        %3397 = vmatprep.mubr.bf16.mxu0 0
        %3398 = vmatmul.mubr.bf16.gmra.mrb[0].mxu0 %v2417
        %v3399 = vpop.f32.mrb[0].mxu0
        %v3400 = vadd.f32 %v2269, %v3399
        %v3401 = vpop.f32.mrb[0].mxu0
        %v3402 = vpop.f32.mrb[0].mxu0
        %v3403 = vadd.f32 %v2274, %v3402
        %v3404 = vpop.f32.mrb[0].mxu0
        %3405 = vdwg.mxu0
        %v3406 = vmax.f32 %v3249, %v3392
        %v3407 = vmax.f32 %v3250, %v3395
        %v3408 = vmax.f32 %v3251, %v3400
        %v3409 = vmax.f32 %v3252, %v3403
        %s3410 = scalar_lea.vmem %s774, 14 [#allocation3]
        %v3411 = vld [vmem:[%s3410] sm:$0x3]
        %v3413 = vand.u32 %v3411, %v919
        %3415 = vmatprep.subr.bf16.mxu0 0
        %3416 = vmatpush1.bf16.msra.mxu0 %v3413
        %3417 = vmatprep.subr.bf16.mxu0 0
        %3418 = vmatpush1.bf16.msra.mxu0 0
        %3419 = vmatprep.subr.bf16.mxu0 0
        %3420 = vmatpush1.bf16.msra.mxu0 0
        %3421 = vmatprep.subr.bf16.mxu0 0
        %3422 = vmatpush1.bf16.msra.mxu0 0
        %3423 = vmatprep.subr.bf16.mxu0 0
        %3424 = vmatpush1.bf16.msra.mxu0 0
        %3425 = vmatprep.subr.bf16.mxu0 0
        %3426 = vmatpush1.bf16.msra.mxu0 0
        %3427 = vmatprep.subr.bf16.mxu0 0
        %3428 = vmatpush1.bf16.msra.mxu0 0
        %3429 = vmatprep.subr.bf16.mxu0 0
        %3430 = vmatpush1.bf16.msra.mxu0 0
        %3431 = vmatprep.subr.bf16.mxu0 0
        %3432 = vmatpush1.bf16.msra.mxu0 0
        %3433 = vmatprep.subr.bf16.mxu0 0
        %3434 = vmatpush1.bf16.msra.mxu0 0
        %3435 = vmatprep.subr.bf16.mxu0 0
        %3436 = vmatpush1.bf16.msra.mxu0 0
        %3437 = vmatprep.subr.bf16.mxu0 0
        %3438 = vmatpush1.bf16.msra.mxu0 0
        %3439 = vmatprep.subr.bf16.mxu0 0
        %3440 = vmatpush1.bf16.msra.mxu0 0
        %3441 = vmatprep.subr.bf16.mxu0 0
        %3442 = vmatpush1.bf16.msra.mxu0 0
        %3443 = vmatprep.subr.bf16.mxu0 0
        %3444 = vmatpush1.bf16.msra.mxu0 0
        %3445 = vmatprep.subr.bf16.mxu0 0
        %3446 = vmatpush1.bf16.msra.mxu0 0
        %3447 = vmatprep.mubr.bf16.mxu0 0
        %3448 = vmatmul.mubr.bf16.gmra.mrb[0].mxu0 %v2283
        %v3449 = vpop.f32.mrb[0].mxu0
        %v3450 = vadd.f32 %v2221, %v3449
        %v3451 = vpop.f32.mrb[0].mxu0
        %v3452 = vpop.f32.mrb[0].mxu0
        %v3453 = vadd.f32 %v2226, %v3452
        %v3454 = vpop.f32.mrb[0].mxu0
        %3455 = vdwg.mxu0
        %v3456 = vmax.f32 %v3450, 0.0
        %v3457 = vmax.f32 %v3453, 0.0
        %v3458 = vpack.c.bf16 %v3457, %v3456
        %3459 = vmatprep.subr.bf16.mxu0 0
        %3460 = vmatpush1.bf16.msra.mxu0 %v3458
        %3461 = vmatprep.subr.bf16.mxu0 0
        %3462 = vmatpush1.bf16.msra.mxu0 0
        %3463 = vmatprep.subr.bf16.mxu0 0
        %3464 = vmatpush1.bf16.msra.mxu0 0
        %3465 = vmatprep.subr.bf16.mxu0 0
        %3466 = vmatpush1.bf16.msra.mxu0 0
        %3467 = vmatprep.subr.bf16.mxu0 0
        %3468 = vmatpush1.bf16.msra.mxu0 0
        %3469 = vmatprep.subr.bf16.mxu0 0
        %3470 = vmatpush1.bf16.msra.mxu0 0
        %3471 = vmatprep.subr.bf16.mxu0 0
        %3472 = vmatpush1.bf16.msra.mxu0 0
        %3473 = vmatprep.subr.bf16.mxu0 0
        %3474 = vmatpush1.bf16.msra.mxu0 0
        %3475 = vmatprep.subr.bf16.mxu0 0
        %3476 = vmatpush1.bf16.msra.mxu0 0
        %3477 = vmatprep.subr.bf16.mxu0 0
        %3478 = vmatpush1.bf16.msra.mxu0 0
        %3479 = vmatprep.subr.bf16.mxu0 0
        %3480 = vmatpush1.bf16.msra.mxu0 0
        %3481 = vmatprep.subr.bf16.mxu0 0
        %3482 = vmatpush1.bf16.msra.mxu0 0
        %3483 = vmatprep.subr.bf16.mxu0 0
        %3484 = vmatpush1.bf16.msra.mxu0 0
        %3485 = vmatprep.subr.bf16.mxu0 0
        %3486 = vmatpush1.bf16.msra.mxu0 0
        %3487 = vmatprep.subr.bf16.mxu0 0
        %3488 = vmatpush1.bf16.msra.mxu0 0
        %3489 = vmatprep.subr.bf16.mxu0 0
        %3490 = vmatpush1.bf16.msra.mxu0 0
        %3491 = vmatprep.mubr.bf16.mxu0 0
        %3492 = vmatmul.mubr.bf16.gmra.mrb[0].mxu0 %v2343
        %v3493 = vpop.f32.mrb[0].mxu0
        %v3494 = vadd.f32 %v2235, %v3493
        %v3495 = vpop.f32.mrb[0].mxu0
        %v3496 = vpop.f32.mrb[0].mxu0
        %v3497 = vadd.f32 %v2240, %v3496
        %v3498 = vpop.f32.mrb[0].mxu0
        %3499 = vmatprep.mubr.bf16.mxu0 0
        %3500 = vmatmul.mubr.bf16.gmra.mrb[0].mxu0 %v2346
        %v3501 = vpop.f32.mrb[0].mxu0
        %v3502 = vadd.f32 %v2245, %v3501
        %v3503 = vpop.f32.mrb[0].mxu0
        %v3504 = vpop.f32.mrb[0].mxu0
        %v3505 = vadd.f32 %v2250, %v3504
        %v3506 = vpop.f32.mrb[0].mxu0
        %3507 = vdwg.mxu0
        %v3508 = vmax.f32 %v3494, 0.0
        %v3509 = vmax.f32 %v3497, 0.0
        %v3510 = vmax.f32 %v3502, 0.0
        %v3511 = vmax.f32 %v3505, 0.0
        %v3512 = vpack.c.bf16 %v3509, %v3508
        %v3513 = vpack.c.bf16 %v3511, %v3510
        %3514 = vmatprep.subr.bf16.mxu0 0
        %3515 = vmatpush1.bf16.msra.mxu0 %v3512
        %3516 = vmatprep.subr.bf16.mxu0 0
        %3517 = vmatpush1.bf16.msra.mxu0 %v3513
        %3518 = vmatprep.subr.bf16.mxu0 0
        %3519 = vmatpush1.bf16.msra.mxu0 0
        %3520 = vmatprep.subr.bf16.mxu0 0
        %3521 = vmatpush1.bf16.msra.mxu0 0
        %3522 = vmatprep.subr.bf16.mxu0 0
        %3523 = vmatpush1.bf16.msra.mxu0 0
        %3524 = vmatprep.subr.bf16.mxu0 0
        %3525 = vmatpush1.bf16.msra.mxu0 0
        %3526 = vmatprep.subr.bf16.mxu0 0
        %3527 = vmatpush1.bf16.msra.mxu0 0
        %3528 = vmatprep.subr.bf16.mxu0 0
        %3529 = vmatpush1.bf16.msra.mxu0 0
        %3530 = vmatprep.subr.bf16.mxu0 0
        %3531 = vmatpush1.bf16.msra.mxu0 0
        %3532 = vmatprep.subr.bf16.mxu0 0
        %3533 = vmatpush1.bf16.msra.mxu0 0
        %3534 = vmatprep.subr.bf16.mxu0 0
        %3535 = vmatpush1.bf16.msra.mxu0 0
        %3536 = vmatprep.subr.bf16.mxu0 0
        %3537 = vmatpush1.bf16.msra.mxu0 0
        %3538 = vmatprep.subr.bf16.mxu0 0
        %3539 = vmatpush1.bf16.msra.mxu0 0
        %3540 = vmatprep.subr.bf16.mxu0 0
        %3541 = vmatpush1.bf16.msra.mxu0 0
        %3542 = vmatprep.subr.bf16.mxu0 0
        %3543 = vmatpush1.bf16.msra.mxu0 0
        %3544 = vmatprep.subr.bf16.mxu0 0
        %3545 = vmatpush1.bf16.msra.mxu0 0
        %3546 = vmatprep.mubr.bf16.mxu0 0
        %3547 = vmatmul.mubr.bf16.gmra.mrb[0].mxu0 %v2414
        %v3548 = vpop.f32.mrb[0].mxu0
        %v3549 = vadd.f32 %v2259, %v3548
        %v3550 = vpop.f32.mrb[0].mxu0
        %v3551 = vpop.f32.mrb[0].mxu0
        %v3552 = vadd.f32 %v2264, %v3551
        %v3553 = vpop.f32.mrb[0].mxu0
        %3554 = vmatprep.mubr.bf16.mxu0 0
        %3555 = vmatmul.mubr.bf16.gmra.mrb[0].mxu0 %v2417
        %v3556 = vpop.f32.mrb[0].mxu0
        %v3557 = vadd.f32 %v2269, %v3556
        %v3558 = vpop.f32.mrb[0].mxu0
        %v3559 = vpop.f32.mrb[0].mxu0
        %v3560 = vadd.f32 %v2274, %v3559
        %v3561 = vpop.f32.mrb[0].mxu0
        %3562 = vdwg.mxu0
        %v3563 = vmax.f32 %v3406, %v3549
        %v3564 = vmax.f32 %v3407, %v3552
        %v3565 = vmax.f32 %v3408, %v3557
        %v3566 = vmax.f32 %v3409, %v3560
        %v3567 = vpack.c.bf16 %v3564, %v3563
        %v3568 = vpack.c.bf16 %v3566, %v3565
        %v3569 = vld [vmem:[%s14] sm:$0xf]
        %v3570 = vld [vmem:[%s14 + $0x4] sm:$0xf]
        %v3571 = vld [vmem:[%s14 + $0x8] sm:$0xf]
        %v3572 = vld [vmem:[%s14 + $0xc] sm:$0xf]
        %v3573 = vld [vmem:[%s14 + $0x10] sm:$0xf]
        %v3574 = vld [vmem:[%s14 + $0x14] sm:$0xf]
        %v3575 = vld [vmem:[%s14 + $0x18] sm:$0xf]
        %v3576 = vld [vmem:[%s14 + $0x1c] sm:$0xf]
        %v3577 = vld [vmem:[%s15] sm:$0xf]
        %v3578 = vld [vmem:[%s15 + $0x4] sm:$0xf]
        %v3579 = vld [vmem:[%s15 + $0x8] sm:$0xf]
        %v3580 = vld [vmem:[%s15 + $0xc] sm:$0xf]
        %v3581 = vld [vmem:[%s15 + $0x10] sm:$0xf]
        %v3582 = vld [vmem:[%s15 + $0x14] sm:$0xf]
        %v3583 = vld [vmem:[%s15 + $0x18] sm:$0xf]
        %v3584 = vld [vmem:[%s15 + $0x1c] sm:$0xf]
        %v3593 = vunpack.c.l.b16 %v3577
        %v3594 = vunpack.c.l.b16 %v3578
        %v3595 = vunpack.c.l.b16 %v3579
        %v3596 = vunpack.c.l.b16 %v3580
        %v3597 = vunpack.c.l.b16 %v3581
        %v3598 = vunpack.c.l.b16 %v3582
        %v3599 = vunpack.c.l.b16 %v3583
        %v3600 = vunpack.c.l.b16 %v3584
        %v3601 = vpack.c.b16 %v3594, %v3593
        %v3602 = vpack.c.b16 %v3596, %v3595
        %v3603 = vpack.c.b16 %v3598, %v3597
        %v3604 = vpack.c.b16 %v3600, %v3599
        %v3606 = vsel %vm1049, %v3601, 0
        %v3609 = vsel %vm1049, %v3602, 0
        %v3612 = vsel %vm1049, %v3603, 0
        %v3615 = vsel %vm1049, %v3604, 0
        %3617 = vmatprep.subr.bf16.mxu0 0
        %3618 = vmatpush1.bf16.msra.mxu0 %v3567
        %3619 = vmatprep.subr.bf16.mxu0 0
        %3620 = vmatpush1.bf16.msra.mxu0 %v3568
        %3621 = vmatprep.subr.bf16.mxu0 0
        %3622 = vmatpush1.bf16.msra.mxu0 0
        %3623 = vmatprep.subr.bf16.mxu0 0
        %3624 = vmatpush1.bf16.msra.mxu0 0
        %3625 = vmatprep.subr.bf16.mxu0 0
        %3626 = vmatpush1.bf16.msra.mxu0 0
        %3627 = vmatprep.subr.bf16.mxu0 0
        %3628 = vmatpush1.bf16.msra.mxu0 0
        %3629 = vmatprep.subr.bf16.mxu0 0
        %3630 = vmatpush1.bf16.msra.mxu0 0
        %3631 = vmatprep.subr.bf16.mxu0 0
        %3632 = vmatpush1.bf16.msra.mxu0 0
        %3633 = vmatprep.subr.bf16.mxu0 0
        %3634 = vmatpush1.bf16.msra.mxu0 0
        %3635 = vmatprep.subr.bf16.mxu0 0
        %3636 = vmatpush1.bf16.msra.mxu0 0
        %3637 = vmatprep.subr.bf16.mxu0 0
        %3638 = vmatpush1.bf16.msra.mxu0 0
        %3639 = vmatprep.subr.bf16.mxu0 0
        %3640 = vmatpush1.bf16.msra.mxu0 0
        %3641 = vmatprep.subr.bf16.mxu0 0
        %3642 = vmatpush1.bf16.msra.mxu0 0
        %3643 = vmatprep.subr.bf16.mxu0 0
        %3644 = vmatpush1.bf16.msra.mxu0 0
        %3645 = vmatprep.subr.bf16.mxu0 0
        %3646 = vmatpush1.bf16.msra.mxu0 0
        %3647 = vmatprep.subr.bf16.mxu0 0
        %3648 = vmatpush1.bf16.msra.mxu0 0
        %3649 = vmatprep.mubr.bf16.mxu0 0
        %3650 = vmatmul.mubr.bf16.gmra.mrb[0].mxu0 %v3606
        %v3651 = vpop.f32.mrb[0].mxu0
        %v3652 = vadd.f32 0.0, %v3651
        %v3653 = vpop.f32.mrb[0].mxu0
        %v3654 = vpop.f32.mrb[0].mxu0
        %v3655 = vadd.f32 0.0, %v3654
        %v3656 = vpop.f32.mrb[0].mxu0
        %3657 = vmatprep.mubr.bf16.mxu0 0
        %3658 = vmatmul.mubr.bf16.gmra.mrb[0].mxu0 %v3609
        %v3659 = vpop.f32.mrb[0].mxu0
        %v3660 = vadd.f32 0.0, %v3659
        %v3661 = vpop.f32.mrb[0].mxu0
        %v3662 = vpop.f32.mrb[0].mxu0
        %v3663 = vadd.f32 0.0, %v3662
        %v3664 = vpop.f32.mrb[0].mxu0
        %3665 = vmatprep.mubr.bf16.mxu0 0
        %3666 = vmatmul.mubr.bf16.gmra.mrb[0].mxu0 %v3612
        %v3667 = vpop.f32.mrb[0].mxu0
        %v3668 = vadd.f32 0.0, %v3667
        %v3669 = vpop.f32.mrb[0].mxu0
        %v3670 = vpop.f32.mrb[0].mxu0
        %v3671 = vadd.f32 0.0, %v3670
        %v3672 = vpop.f32.mrb[0].mxu0
        %3673 = vmatprep.mubr.bf16.mxu0 0
        %3674 = vmatmul.mubr.bf16.gmra.mrb[0].mxu0 %v3615
        %v3675 = vpop.f32.mrb[0].mxu0
        %v3676 = vadd.f32 0.0, %v3675
        %v3677 = vpop.f32.mrb[0].mxu0
        %v3678 = vpop.f32.mrb[0].mxu0
        %v3679 = vadd.f32 0.0, %v3678
        %v3680 = vpop.f32.mrb[0].mxu0
        %3681 = vdwg.mxu0
        %v3690 = vunpack.c.l.b16 %v3569
        %v3691 = vunpack.c.l.b16 %v3570
        %v3692 = vunpack.c.l.b16 %v3571
        %v3693 = vunpack.c.l.b16 %v3572
        %v3694 = vunpack.c.l.b16 %v3573
        %v3695 = vunpack.c.l.b16 %v3574
        %v3696 = vunpack.c.l.b16 %v3575
        %v3697 = vunpack.c.l.b16 %v3576
        %v3698 = vpack.c.b16 %v3691, %v3690
        %v3699 = vpack.c.b16 %v3693, %v3692
        %v3700 = vpack.c.b16 %v3695, %v3694
        %v3701 = vpack.c.b16 %v3697, %v3696
        %v3703 = vsel %vm1049, %v3698, 0
        %v3706 = vsel %vm1049, %v3699, 0
        %v3709 = vsel %vm1049, %v3700, 0
        %v3712 = vsel %vm1049, %v3701, 0
        %3714 = vmatprep.subr.bf16.mxu0 0
        %3715 = vmatpush1.bf16.msra.mxu0 %v2204
        %3716 = vmatprep.subr.bf16.mxu0 0
        %3717 = vmatpush1.bf16.msra.mxu0 %v2205
        %3718 = vmatprep.subr.bf16.mxu0 0
        %3719 = vmatpush1.bf16.msra.mxu0 0
        %3720 = vmatprep.subr.bf16.mxu0 0
        %3721 = vmatpush1.bf16.msra.mxu0 0
        %3722 = vmatprep.subr.bf16.mxu0 0
        %3723 = vmatpush1.bf16.msra.mxu0 0
        %3724 = vmatprep.subr.bf16.mxu0 0
        %3725 = vmatpush1.bf16.msra.mxu0 0
        %3726 = vmatprep.subr.bf16.mxu0 0
        %3727 = vmatpush1.bf16.msra.mxu0 0
        %3728 = vmatprep.subr.bf16.mxu0 0
        %3729 = vmatpush1.bf16.msra.mxu0 0
        %3730 = vmatprep.subr.bf16.mxu0 0
        %3731 = vmatpush1.bf16.msra.mxu0 0
        %3732 = vmatprep.subr.bf16.mxu0 0
        %3733 = vmatpush1.bf16.msra.mxu0 0
        %3734 = vmatprep.subr.bf16.mxu0 0
        %3735 = vmatpush1.bf16.msra.mxu0 0
        %3736 = vmatprep.subr.bf16.mxu0 0
        %3737 = vmatpush1.bf16.msra.mxu0 0
        %3738 = vmatprep.subr.bf16.mxu0 0
        %3739 = vmatpush1.bf16.msra.mxu0 0
        %3740 = vmatprep.subr.bf16.mxu0 0
        %3741 = vmatpush1.bf16.msra.mxu0 0
        %3742 = vmatprep.subr.bf16.mxu0 0
        %3743 = vmatpush1.bf16.msra.mxu0 0
        %3744 = vmatprep.subr.bf16.mxu0 0
        %3745 = vmatpush1.bf16.msra.mxu0 0
        %3746 = vmatprep.mubr.bf16.mxu0 0
        %3747 = vmatmul.mubr.bf16.gmra.mrb[0].mxu0 %v3703
        %v3748 = vpop.f32.mrb[0].mxu0
        %v3749 = vadd.f32 %v3652, %v3748
        %v3750 = vpop.f32.mrb[0].mxu0
        %v3751 = vpop.f32.mrb[0].mxu0
        %v3752 = vadd.f32 %v3655, %v3751
        %v3753 = vpop.f32.mrb[0].mxu0
        %3754 = vmatprep.mubr.bf16.mxu0 0
        %3755 = vmatmul.mubr.bf16.gmra.mrb[0].mxu0 %v3706
        %v3756 = vpop.f32.mrb[0].mxu0
        %v3757 = vadd.f32 %v3660, %v3756
        %v3758 = vpop.f32.mrb[0].mxu0
        %v3759 = vpop.f32.mrb[0].mxu0
        %v3760 = vadd.f32 %v3663, %v3759
        %v3761 = vpop.f32.mrb[0].mxu0
        %3762 = vmatprep.mubr.bf16.mxu0 0
        %3763 = vmatmul.mubr.bf16.gmra.mrb[0].mxu0 %v3709
        %v3764 = vpop.f32.mrb[0].mxu0
        %v3765 = vadd.f32 %v3668, %v3764
        %v3766 = vpop.f32.mrb[0].mxu0
        %v3767 = vpop.f32.mrb[0].mxu0
        %v3768 = vadd.f32 %v3671, %v3767
        %v3769 = vpop.f32.mrb[0].mxu0
        %3770 = vmatprep.mubr.bf16.mxu0 0
        %3771 = vmatmul.mubr.bf16.gmra.mrb[0].mxu0 %v3712
        %v3772 = vpop.f32.mrb[0].mxu0
        %v3773 = vadd.f32 %v3676, %v3772
        %v3774 = vpop.f32.mrb[0].mxu0
        %v3775 = vpop.f32.mrb[0].mxu0
        %v3776 = vadd.f32 %v3679, %v3775
        %v3777 = vpop.f32.mrb[0].mxu0
        %3778 = vdwg.mxu0
        %v3779 = vld [vmem:[%s16] sm:$0xff]
        %v3780 = vld [vmem:[%s16 + $0x8] sm:$0xff]
        %v3781 = vld [vmem:[%s16 + $0x10] sm:$0xff]
        %v3782 = vld [vmem:[%s16 + $0x18] sm:$0xff]
        %v3783 = vld [vmem:[%s16 + $0x20] sm:$0xff]
        %v3784 = vld [vmem:[%s16 + $0x28] sm:$0xff]
        %v3785 = vld [vmem:[%s16 + $0x30] sm:$0xff]
        %v3786 = vld [vmem:[%s16 + $0x38] sm:$0xff]
        %3788 = vset.pattern.permute.xlu0 0
        %3789 = vperm.xlu0 %3788, %v3779
        %v3790 = vpop.permute.xlu0 %3789
        %3793 = vset.pattern.permute.xlu0 0
        %3794 = vperm.xlu0 %3793, %v3780
        %v3795 = vpop.permute.xlu0 %3794
        %3798 = vset.pattern.permute.xlu0 0
        %3799 = vperm.xlu0 %3798, %v3781
        %v3800 = vpop.permute.xlu0 %3799
        %3803 = vset.pattern.permute.xlu0 0
        %3804 = vperm.xlu0 %3803, %v3782
        %v3805 = vpop.permute.xlu0 %3804
        %3808 = vset.pattern.permute.xlu0 0
        %3809 = vperm.xlu0 %3808, %v3783
        %v3810 = vpop.permute.xlu0 %3809
        %3813 = vset.pattern.permute.xlu0 0
        %3814 = vperm.xlu0 %3813, %v3784
        %v3815 = vpop.permute.xlu0 %3814
        %3818 = vset.pattern.permute.xlu0 0
        %3819 = vperm.xlu0 %3818, %v3785
        %v3820 = vpop.permute.xlu0 %3819
        %3823 = vset.pattern.permute.xlu0 0
        %3824 = vperm.xlu0 %3823, %v3786
        %v3825 = vpop.permute.xlu0 %3824
        %v3827 = vadd.f32 %v3749, %v3790
        %v3828 = vadd.f32 %v3752, %v3795
        %v3829 = vadd.f32 %v3757, %v3800
        %v3830 = vadd.f32 %v3760, %v3805
        %v3831 = vadd.f32 %v3765, %v3810
        %v3832 = vadd.f32 %v3768, %v3815
        %v3833 = vadd.f32 %v3773, %v3820
        %v3834 = vadd.f32 %v3776, %v3825
        %v3835 = vmax.f32 %v3827, 0.0
        %v3836 = vmax.f32 %v3828, 0.0
        %v3837 = vmax.f32 %v3829, 0.0
        %v3838 = vmax.f32 %v3830, 0.0
        %v3839 = vmax.f32 %v3831, 0.0
        %v3840 = vmax.f32 %v3832, 0.0
        %v3841 = vmax.f32 %v3833, 0.0
        %v3842 = vmax.f32 %v3834, 0.0
        %v3843 = vpack.c.bf16 %v3836, %v3835
        %v3844 = vpack.c.bf16 %v3838, %v3837
        %v3845 = vpack.c.bf16 %v3840, %v3839
        %v3846 = vpack.c.bf16 %v3842, %v3841
        %v3847 = vld [vmem:[%s17] sm:$0xf]
        %v3848 = vld [vmem:[%s17 + $0x4] sm:$0xf]
        %v3849 = vld [vmem:[%s17 + $0x8] sm:$0xf]
        %v3850 = vld [vmem:[%s17 + $0xc] sm:$0xf]
        %v3851 = vld [vmem:[%s17 + $0x10] sm:$0xf]
        %v3852 = vld [vmem:[%s17 + $0x14] sm:$0xf]
        %v3853 = vld [vmem:[%s17 + $0x18] sm:$0xf]
        %v3854 = vld [vmem:[%s17 + $0x1c] sm:$0xf]
        %v3855 = vld [vmem:[%s17 + $0x20] sm:$0xf]
        %v3856 = vld [vmem:[%s17 + $0x24] sm:$0xf]
        %v3857 = vld [vmem:[%s17 + $0x28] sm:$0xf]
        %v3858 = vld [vmem:[%s17 + $0x2c] sm:$0xf]
        %v3859 = vld [vmem:[%s17 + $0x30] sm:$0xf]
        %v3860 = vld [vmem:[%s17 + $0x34] sm:$0xf]
        %v3861 = vld [vmem:[%s17 + $0x38] sm:$0xf]
        %v3862 = vld [vmem:[%s17 + $0x3c] sm:$0xf]
        %v3863 = vld [vmem:[%s18] sm:$0xff]
        %v3864 = vld [vmem:[%s18 + $0x8] sm:$0xff]
        %v3865 = vld [vmem:[%s18 + $0x10] sm:$0xff]
        %v3866 = vld [vmem:[%s18 + $0x18] sm:$0xff]
        %v3867 = vld [vmem:[%s18 + $0x20] sm:$0xff]
        %v3868 = vld [vmem:[%s18 + $0x28] sm:$0xff]
        %v3869 = vld [vmem:[%s18 + $0x30] sm:$0xff]
        %v3870 = vld [vmem:[%s18 + $0x38] sm:$0xff]
        %v3871 = vld [vmem:[%s18 + $0x40] sm:$0xff]
        %v3872 = vld [vmem:[%s18 + $0x48] sm:$0xff]
        %v3873 = vld [vmem:[%s18 + $0x50] sm:$0xff]
        %v3874 = vld [vmem:[%s18 + $0x58] sm:$0xff]
        %v3875 = vld [vmem:[%s18 + $0x60] sm:$0xff]
        %v3876 = vld [vmem:[%s18 + $0x68] sm:$0xff]
        %v3877 = vld [vmem:[%s18 + $0x70] sm:$0xff]
        %v3878 = vld [vmem:[%s18 + $0x78] sm:$0xff]
        %3880 = vset.pattern.permute.xlu0 0
        %3881 = vperm.xlu0 %3880, %v3863
        %v3882 = vpop.permute.xlu0 %3881
        %3885 = vset.pattern.permute.xlu0 0
        %3886 = vperm.xlu0 %3885, %v3864
        %v3887 = vpop.permute.xlu0 %3886
        %3890 = vset.pattern.permute.xlu0 0
        %3891 = vperm.xlu0 %3890, %v3865
        %v3892 = vpop.permute.xlu0 %3891
        %3895 = vset.pattern.permute.xlu0 0
        %3896 = vperm.xlu0 %3895, %v3866
        %v3897 = vpop.permute.xlu0 %3896
        %3900 = vset.pattern.permute.xlu0 0
        %3901 = vperm.xlu0 %3900, %v3867
        %v3902 = vpop.permute.xlu0 %3901
        %3905 = vset.pattern.permute.xlu0 0
        %3906 = vperm.xlu0 %3905, %v3868
        %v3907 = vpop.permute.xlu0 %3906
        %3910 = vset.pattern.permute.xlu0 0
        %3911 = vperm.xlu0 %3910, %v3869
        %v3912 = vpop.permute.xlu0 %3911
        %3915 = vset.pattern.permute.xlu0 0
        %3916 = vperm.xlu0 %3915, %v3870
        %v3917 = vpop.permute.xlu0 %3916
        %3920 = vset.pattern.permute.xlu0 0
        %3921 = vperm.xlu0 %3920, %v3871
        %v3922 = vpop.permute.xlu0 %3921
        %3925 = vset.pattern.permute.xlu0 0
        %3926 = vperm.xlu0 %3925, %v3872
        %v3927 = vpop.permute.xlu0 %3926
        %3930 = vset.pattern.permute.xlu0 0
        %3931 = vperm.xlu0 %3930, %v3873
        %v3932 = vpop.permute.xlu0 %3931
        %3935 = vset.pattern.permute.xlu0 0
        %3936 = vperm.xlu0 %3935, %v3874
        %v3937 = vpop.permute.xlu0 %3936
        %3940 = vset.pattern.permute.xlu0 0
        %3941 = vperm.xlu0 %3940, %v3875
        %v3942 = vpop.permute.xlu0 %3941
        %3945 = vset.pattern.permute.xlu0 0
        %3946 = vperm.xlu0 %3945, %v3876
        %v3947 = vpop.permute.xlu0 %3946
        %3950 = vset.pattern.permute.xlu0 0
        %3951 = vperm.xlu0 %3950, %v3877
        %v3952 = vpop.permute.xlu0 %3951
        %3955 = vset.pattern.permute.xlu0 0
        %3956 = vperm.xlu0 %3955, %v3878
        %v3957 = vpop.permute.xlu0 %3956
        %v3975 = vunpack.c.l.b16 %v3847
        %v3976 = vunpack.c.l.b16 %v3848
        %v3977 = vunpack.c.l.b16 %v3849
        %v3978 = vunpack.c.l.b16 %v3850
        %v3979 = vunpack.c.l.b16 %v3851
        %v3980 = vunpack.c.l.b16 %v3852
        %v3981 = vunpack.c.l.b16 %v3853
        %v3982 = vunpack.c.l.b16 %v3854
        %v3983 = vunpack.c.l.b16 %v3855
        %v3984 = vunpack.c.l.b16 %v3856
        %v3985 = vunpack.c.l.b16 %v3857
        %v3986 = vunpack.c.l.b16 %v3858
        %v3987 = vunpack.c.l.b16 %v3859
        %v3988 = vunpack.c.l.b16 %v3860
        %v3989 = vunpack.c.l.b16 %v3861
        %v3990 = vunpack.c.l.b16 %v3862
        %v3991 = vpack.c.b16 %v3976, %v3975
        %v3992 = vpack.c.b16 %v3978, %v3977
        %v3993 = vpack.c.b16 %v3980, %v3979
        %v3994 = vpack.c.b16 %v3982, %v3981
        %v3995 = vpack.c.b16 %v3984, %v3983
        %v3996 = vpack.c.b16 %v3986, %v3985
        %v3997 = vpack.c.b16 %v3988, %v3987
        %v3998 = vpack.c.b16 %v3990, %v3989
        %vm3999 = vcmask 523264
        %v4001 = vsel %vm3999, %v3991, 0
        %v4004 = vsel %vm3999, %v3992, 0
        %v4007 = vsel %vm3999, %v3993, 0
        %v4010 = vsel %vm3999, %v3994, 0
        %v4013 = vsel %vm3999, %v3995, 0
        %v4016 = vsel %vm3999, %v3996, 0
        %v4019 = vsel %vm3999, %v3997, 0
        %v4022 = vsel %vm3999, %v3998, 0
        %4024 = vmatprep.subr.bf16.mxu0 0
        %4025 = vmatpush1.bf16.msra.mxu0 %v3843
        %4026 = vmatprep.subr.bf16.mxu0 0
        %4027 = vmatpush1.bf16.msra.mxu0 %v3844
        %4028 = vmatprep.subr.bf16.mxu0 0
        %4029 = vmatpush1.bf16.msra.mxu0 %v3845
        %4030 = vmatprep.subr.bf16.mxu0 0
        %4031 = vmatpush1.bf16.msra.mxu0 %v3846
        %4032 = vmatprep.subr.bf16.mxu0 0
        %4033 = vmatpush1.bf16.msra.mxu0 0
        %4034 = vmatprep.subr.bf16.mxu0 0
        %4035 = vmatpush1.bf16.msra.mxu0 0
        %4036 = vmatprep.subr.bf16.mxu0 0
        %4037 = vmatpush1.bf16.msra.mxu0 0
        %4038 = vmatprep.subr.bf16.mxu0 0
        %4039 = vmatpush1.bf16.msra.mxu0 0
        %4040 = vmatprep.subr.bf16.mxu0 0
        %4041 = vmatpush1.bf16.msra.mxu0 0
        %4042 = vmatprep.subr.bf16.mxu0 0
        %4043 = vmatpush1.bf16.msra.mxu0 0
        %4044 = vmatprep.subr.bf16.mxu0 0
        %4045 = vmatpush1.bf16.msra.mxu0 0
        %4046 = vmatprep.subr.bf16.mxu0 0
        %4047 = vmatpush1.bf16.msra.mxu0 0
        %4048 = vmatprep.subr.bf16.mxu0 0
        %4049 = vmatpush1.bf16.msra.mxu0 0
        %4050 = vmatprep.subr.bf16.mxu0 0
        %4051 = vmatpush1.bf16.msra.mxu0 0
        %4052 = vmatprep.subr.bf16.mxu0 0
        %4053 = vmatpush1.bf16.msra.mxu0 0
        %4054 = vmatprep.subr.bf16.mxu0 0
        %4055 = vmatpush1.bf16.msra.mxu0 0
        %4056 = vmatprep.mubr.bf16.mxu0 0
        %4057 = vmatmul.mubr.bf16.gmra.mrb[0].mxu0 %v4001
        %v4058 = vpop.f32.mrb[0].mxu0
        %v4059 = vadd.f32 %v3882, %v4058
        %v4060 = vpop.f32.mrb[0].mxu0
        %v4061 = vpop.f32.mrb[0].mxu0
        %v4062 = vadd.f32 %v3887, %v4061
        %v4063 = vpop.f32.mrb[0].mxu0
        %4064 = vmatprep.mubr.bf16.mxu0 0
        %4065 = vmatmul.mubr.bf16.gmra.mrb[0].mxu0 %v4004
        %v4066 = vpop.f32.mrb[0].mxu0
        %v4067 = vadd.f32 %v3892, %v4066
        %v4068 = vpop.f32.mrb[0].mxu0
        %v4069 = vpop.f32.mrb[0].mxu0
        %v4070 = vadd.f32 %v3897, %v4069
        %v4071 = vpop.f32.mrb[0].mxu0
        %4072 = vmatprep.mubr.bf16.mxu0 0
        %4073 = vmatmul.mubr.bf16.gmra.mrb[0].mxu0 %v4007
        %v4074 = vpop.f32.mrb[0].mxu0
        %v4075 = vadd.f32 %v3902, %v4074
        %v4076 = vpop.f32.mrb[0].mxu0
        %v4077 = vpop.f32.mrb[0].mxu0
        %v4078 = vadd.f32 %v3907, %v4077
        %v4079 = vpop.f32.mrb[0].mxu0
        %4080 = vmatprep.mubr.bf16.mxu0 0
        %4081 = vmatmul.mubr.bf16.gmra.mrb[0].mxu0 %v4010
        %v4082 = vpop.f32.mrb[0].mxu0
        %v4083 = vadd.f32 %v3912, %v4082
        %v4084 = vpop.f32.mrb[0].mxu0
        %v4085 = vpop.f32.mrb[0].mxu0
        %v4086 = vadd.f32 %v3917, %v4085
        %v4087 = vpop.f32.mrb[0].mxu0
        %4088 = vmatprep.mubr.bf16.mxu0 0
        %4089 = vmatmul.mubr.bf16.gmra.mrb[0].mxu0 %v4013
        %v4090 = vpop.f32.mrb[0].mxu0
        %v4091 = vadd.f32 %v3922, %v4090
        %v4092 = vpop.f32.mrb[0].mxu0
        %v4093 = vpop.f32.mrb[0].mxu0
        %v4094 = vadd.f32 %v3927, %v4093
        %v4095 = vpop.f32.mrb[0].mxu0
        %4096 = vmatprep.mubr.bf16.mxu0 0
        %4097 = vmatmul.mubr.bf16.gmra.mrb[0].mxu0 %v4016
        %v4098 = vpop.f32.mrb[0].mxu0
        %v4099 = vadd.f32 %v3932, %v4098
        %v4100 = vpop.f32.mrb[0].mxu0
        %v4101 = vpop.f32.mrb[0].mxu0
        %v4102 = vadd.f32 %v3937, %v4101
        %v4103 = vpop.f32.mrb[0].mxu0
        %4104 = vmatprep.mubr.bf16.mxu0 0
        %4105 = vmatmul.mubr.bf16.gmra.mrb[0].mxu0 %v4019
        %v4106 = vpop.f32.mrb[0].mxu0
        %v4107 = vadd.f32 %v3942, %v4106
        %v4108 = vpop.f32.mrb[0].mxu0
        %v4109 = vpop.f32.mrb[0].mxu0
        %v4110 = vadd.f32 %v3947, %v4109
        %v4111 = vpop.f32.mrb[0].mxu0
        %4112 = vmatprep.mubr.bf16.mxu0 0
        %4113 = vmatmul.mubr.bf16.gmra.mrb[0].mxu0 %v4022
        %v4114 = vpop.f32.mrb[0].mxu0
        %v4115 = vadd.f32 %v3952, %v4114
        %v4116 = vpop.f32.mrb[0].mxu0
        %v4117 = vpop.f32.mrb[0].mxu0
        %v4118 = vadd.f32 %v3957, %v4117
        %v4119 = vpop.f32.mrb[0].mxu0
        %4120 = vdwg.mxu0
        %v4121 = vmax.f32 %v4059, 0.0
        %v4122 = vmax.f32 %v4062, 0.0
        %v4123 = vmax.f32 %v4067, 0.0
        %v4124 = vmax.f32 %v4070, 0.0
        %v4125 = vmax.f32 %v4075, 0.0
        %v4126 = vmax.f32 %v4078, 0.0
        %v4127 = vmax.f32 %v4083, 0.0
        %v4128 = vmax.f32 %v4086, 0.0
        %v4129 = vmax.f32 %v4091, 0.0
        %v4130 = vmax.f32 %v4094, 0.0
        %v4131 = vmax.f32 %v4099, 0.0
        %v4132 = vmax.f32 %v4102, 0.0
        %v4133 = vmax.f32 %v4107, 0.0
        %v4134 = vmax.f32 %v4110, 0.0
        %v4135 = vmax.f32 %v4115, 0.0
        %v4136 = vmax.f32 %v4118, 0.0
        %v4137 = vpack.c.bf16 %v4122, %v4121
        %v4138 = vpack.c.bf16 %v4124, %v4123
        %v4139 = vpack.c.bf16 %v4126, %v4125
        %v4140 = vpack.c.bf16 %v4128, %v4127
        %v4141 = vpack.c.bf16 %v4130, %v4129
        %v4142 = vpack.c.bf16 %v4132, %v4131
        %v4143 = vpack.c.bf16 %v4134, %v4133
        %v4144 = vpack.c.bf16 %v4136, %v4135
        %v4145 = vld [vmem:[%s19] sm:$0xf]
        %v4146 = vld [vmem:[%s19 + $0x4] sm:$0xf]
        %v4147 = vld [vmem:[%s19 + $0x8] sm:$0xf]
        %v4148 = vld [vmem:[%s19 + $0xc] sm:$0xf]
        %v4149 = vld [vmem:[%s19 + $0x10] sm:$0xf]
        %v4150 = vld [vmem:[%s19 + $0x14] sm:$0xf]
        %v4151 = vld [vmem:[%s19 + $0x18] sm:$0xf]
        %v4152 = vld [vmem:[%s19 + $0x1c] sm:$0xf]
        %v4153 = vld [vmem:[%s19 + $0x20] sm:$0xf]
        %v4154 = vld [vmem:[%s19 + $0x24] sm:$0xf]
        %v4155 = vld [vmem:[%s19 + $0x28] sm:$0xf]
        %v4156 = vld [vmem:[%s19 + $0x2c] sm:$0xf]
        %v4157 = vld [vmem:[%s19 + $0x30] sm:$0xf]
        %v4158 = vld [vmem:[%s19 + $0x34] sm:$0xf]
        %v4159 = vld [vmem:[%s19 + $0x38] sm:$0xf]
        %v4160 = vld [vmem:[%s19 + $0x3c] sm:$0xf]
        %v4161 = vld [vmem:[%s20] sm:$0xff]
        %v4162 = vld [vmem:[%s20 + $0x8] sm:$0xff]
        %v4163 = vld [vmem:[%s20 + $0x10] sm:$0xff]
        %v4164 = vld [vmem:[%s20 + $0x18] sm:$0xff]
        %v4165 = vld [vmem:[%s20 + $0x20] sm:$0xff]
        %v4166 = vld [vmem:[%s20 + $0x28] sm:$0xff]
        %v4167 = vld [vmem:[%s20 + $0x30] sm:$0xff]
        %v4168 = vld [vmem:[%s20 + $0x38] sm:$0xff]
        %v4169 = vld [vmem:[%s20 + $0x40] sm:$0xff]
        %v4170 = vld [vmem:[%s20 + $0x48] sm:$0xff]
        %v4171 = vld [vmem:[%s20 + $0x50] sm:$0xff]
        %v4172 = vld [vmem:[%s20 + $0x58] sm:$0xff]
        %v4173 = vld [vmem:[%s20 + $0x60] sm:$0xff]
        %v4174 = vld [vmem:[%s20 + $0x68] sm:$0xff]
        %v4175 = vld [vmem:[%s20 + $0x70] sm:$0xff]
        %v4176 = vld [vmem:[%s20 + $0x78] sm:$0xff]
        %4178 = vset.pattern.permute.xlu0 0
        %4179 = vperm.xlu0 %4178, %v4161
        %v4180 = vpop.permute.xlu0 %4179
        %4183 = vset.pattern.permute.xlu0 0
        %4184 = vperm.xlu0 %4183, %v4162
        %v4185 = vpop.permute.xlu0 %4184
        %4188 = vset.pattern.permute.xlu0 0
        %4189 = vperm.xlu0 %4188, %v4163
        %v4190 = vpop.permute.xlu0 %4189
        %4193 = vset.pattern.permute.xlu0 0
        %4194 = vperm.xlu0 %4193, %v4164
        %v4195 = vpop.permute.xlu0 %4194
        %4198 = vset.pattern.permute.xlu0 0
        %4199 = vperm.xlu0 %4198, %v4165
        %v4200 = vpop.permute.xlu0 %4199
        %4203 = vset.pattern.permute.xlu0 0
        %4204 = vperm.xlu0 %4203, %v4166
        %v4205 = vpop.permute.xlu0 %4204
        %4208 = vset.pattern.permute.xlu0 0
        %4209 = vperm.xlu0 %4208, %v4167
        %v4210 = vpop.permute.xlu0 %4209
        %4213 = vset.pattern.permute.xlu0 0
        %4214 = vperm.xlu0 %4213, %v4168
        %v4215 = vpop.permute.xlu0 %4214
        %4218 = vset.pattern.permute.xlu0 0
        %4219 = vperm.xlu0 %4218, %v4169
        %v4220 = vpop.permute.xlu0 %4219
        %4223 = vset.pattern.permute.xlu0 0
        %4224 = vperm.xlu0 %4223, %v4170
        %v4225 = vpop.permute.xlu0 %4224
        %4228 = vset.pattern.permute.xlu0 0
        %4229 = vperm.xlu0 %4228, %v4171
        %v4230 = vpop.permute.xlu0 %4229
        %4233 = vset.pattern.permute.xlu0 0
        %4234 = vperm.xlu0 %4233, %v4172
        %v4235 = vpop.permute.xlu0 %4234
        %4238 = vset.pattern.permute.xlu0 0
        %4239 = vperm.xlu0 %4238, %v4173
        %v4240 = vpop.permute.xlu0 %4239
        %4243 = vset.pattern.permute.xlu0 0
        %4244 = vperm.xlu0 %4243, %v4174
        %v4245 = vpop.permute.xlu0 %4244
        %4248 = vset.pattern.permute.xlu0 0
        %4249 = vperm.xlu0 %4248, %v4175
        %v4250 = vpop.permute.xlu0 %4249
        %4253 = vset.pattern.permute.xlu0 0
        %4254 = vperm.xlu0 %4253, %v4176
        %v4255 = vpop.permute.xlu0 %4254
        %v4273 = vunpack.c.l.b16 %v4145
        %v4274 = vunpack.c.l.b16 %v4146
        %v4275 = vunpack.c.l.b16 %v4147
        %v4276 = vunpack.c.l.b16 %v4148
        %v4277 = vunpack.c.l.b16 %v4149
        %v4278 = vunpack.c.l.b16 %v4150
        %v4279 = vunpack.c.l.b16 %v4151
        %v4280 = vunpack.c.l.b16 %v4152
        %v4281 = vunpack.c.l.b16 %v4153
        %v4282 = vunpack.c.l.b16 %v4154
        %v4283 = vunpack.c.l.b16 %v4155
        %v4284 = vunpack.c.l.b16 %v4156
        %v4285 = vunpack.c.l.b16 %v4157
        %v4286 = vunpack.c.l.b16 %v4158
        %v4287 = vunpack.c.l.b16 %v4159
        %v4288 = vunpack.c.l.b16 %v4160
        %v4289 = vpack.c.b16 %v4274, %v4273
        %v4290 = vpack.c.b16 %v4276, %v4275
        %v4291 = vpack.c.b16 %v4278, %v4277
        %v4292 = vpack.c.b16 %v4280, %v4279
        %v4293 = vpack.c.b16 %v4282, %v4281
        %v4294 = vpack.c.b16 %v4284, %v4283
        %v4295 = vpack.c.b16 %v4286, %v4285
        %v4296 = vpack.c.b16 %v4288, %v4287
        %4305 = vmatprep.subr.bf16.mxu0 0
        %4306 = vmatpush1.bf16.msra.mxu0 %v4137
        %4307 = vmatprep.subr.bf16.mxu0 0
        %4308 = vmatpush1.bf16.msra.mxu0 %v4138
        %4309 = vmatprep.subr.bf16.mxu0 0
        %4310 = vmatpush1.bf16.msra.mxu0 %v4139
        %4311 = vmatprep.subr.bf16.mxu0 0
        %4312 = vmatpush1.bf16.msra.mxu0 %v4140
        %4313 = vmatprep.subr.bf16.mxu0 0
        %4314 = vmatpush1.bf16.msra.mxu0 %v4141
        %4315 = vmatprep.subr.bf16.mxu0 0
        %4316 = vmatpush1.bf16.msra.mxu0 %v4142
        %4317 = vmatprep.subr.bf16.mxu0 0
        %4318 = vmatpush1.bf16.msra.mxu0 %v4143
        %4319 = vmatprep.subr.bf16.mxu0 0
        %4320 = vmatpush1.bf16.msra.mxu0 %v4144
        %4321 = vmatprep.subr.bf16.mxu0 0
        %4322 = vmatpush1.bf16.msra.mxu0 0
        %4323 = vmatprep.subr.bf16.mxu0 0
        %4324 = vmatpush1.bf16.msra.mxu0 0
        %4325 = vmatprep.subr.bf16.mxu0 0
        %4326 = vmatpush1.bf16.msra.mxu0 0
        %4327 = vmatprep.subr.bf16.mxu0 0
        %4328 = vmatpush1.bf16.msra.mxu0 0
        %4329 = vmatprep.subr.bf16.mxu0 0
        %4330 = vmatpush1.bf16.msra.mxu0 0
        %4331 = vmatprep.subr.bf16.mxu0 0
        %4332 = vmatpush1.bf16.msra.mxu0 0
        %4333 = vmatprep.subr.bf16.mxu0 0
        %4334 = vmatpush1.bf16.msra.mxu0 0
        %4335 = vmatprep.subr.bf16.mxu0 0
        %4336 = vmatpush1.bf16.msra.mxu0 0
        %4337 = vmatprep.mubr.bf16.mxu0 0
        %4338 = vmatmul.mubr.bf16.gmra.mrb[0].mxu0 %v4289
        %v4339 = vpop.f32.mrb[0].mxu0
        %v4340 = vadd.f32 %v4180, %v4339
        %v4341 = vpop.f32.mrb[0].mxu0
        %v4342 = vpop.f32.mrb[0].mxu0
        %v4343 = vadd.f32 %v4185, %v4342
        %v4344 = vpop.f32.mrb[0].mxu0
        %4345 = vmatprep.mubr.bf16.mxu0 0
        %4346 = vmatmul.mubr.bf16.gmra.mrb[0].mxu0 %v4290
        %v4347 = vpop.f32.mrb[0].mxu0
        %v4348 = vadd.f32 %v4190, %v4347
        %v4349 = vpop.f32.mrb[0].mxu0
        %v4350 = vpop.f32.mrb[0].mxu0
        %v4351 = vadd.f32 %v4195, %v4350
        %v4352 = vpop.f32.mrb[0].mxu0
        %4353 = vmatprep.mubr.bf16.mxu0 0
        %4354 = vmatmul.mubr.bf16.gmra.mrb[0].mxu0 %v4291
        %v4355 = vpop.f32.mrb[0].mxu0
        %v4356 = vadd.f32 %v4200, %v4355
        %v4357 = vpop.f32.mrb[0].mxu0
        %v4358 = vpop.f32.mrb[0].mxu0
        %v4359 = vadd.f32 %v4205, %v4358
        %v4360 = vpop.f32.mrb[0].mxu0
        %4361 = vmatprep.mubr.bf16.mxu0 0
        %4362 = vmatmul.mubr.bf16.gmra.mrb[0].mxu0 %v4292
        %v4363 = vpop.f32.mrb[0].mxu0
        %v4364 = vadd.f32 %v4210, %v4363
        %v4365 = vpop.f32.mrb[0].mxu0
        %v4366 = vpop.f32.mrb[0].mxu0
        %v4367 = vadd.f32 %v4215, %v4366
        %v4368 = vpop.f32.mrb[0].mxu0
        %4369 = vmatprep.mubr.bf16.mxu0 0
        %4370 = vmatmul.mubr.bf16.gmra.mrb[0].mxu0 %v4293
        %v4371 = vpop.f32.mrb[0].mxu0
        %v4372 = vadd.f32 %v4220, %v4371
        %v4373 = vpop.f32.mrb[0].mxu0
        %v4374 = vpop.f32.mrb[0].mxu0
        %v4375 = vadd.f32 %v4225, %v4374
        %v4376 = vpop.f32.mrb[0].mxu0
        %4377 = vmatprep.mubr.bf16.mxu0 0
        %4378 = vmatmul.mubr.bf16.gmra.mrb[0].mxu0 %v4294
        %v4379 = vpop.f32.mrb[0].mxu0
        %v4380 = vadd.f32 %v4230, %v4379
        %v4381 = vpop.f32.mrb[0].mxu0
        %v4382 = vpop.f32.mrb[0].mxu0
        %v4383 = vadd.f32 %v4235, %v4382
        %v4384 = vpop.f32.mrb[0].mxu0
        %4385 = vmatprep.mubr.bf16.mxu0 0
        %4386 = vmatmul.mubr.bf16.gmra.mrb[0].mxu0 %v4295
        %v4387 = vpop.f32.mrb[0].mxu0
        %v4388 = vadd.f32 %v4240, %v4387
        %v4389 = vpop.f32.mrb[0].mxu0
        %v4390 = vpop.f32.mrb[0].mxu0
        %v4391 = vadd.f32 %v4245, %v4390
        %v4392 = vpop.f32.mrb[0].mxu0
        %4393 = vmatprep.mubr.bf16.mxu0 0
        %4394 = vmatmul.mubr.bf16.gmra.mrb[0].mxu0 %v4296
        %v4395 = vpop.f32.mrb[0].mxu0
        %v4396 = vadd.f32 %v4250, %v4395
        %v4397 = vpop.f32.mrb[0].mxu0
        %v4398 = vpop.f32.mrb[0].mxu0
        %v4399 = vadd.f32 %v4255, %v4398
        %v4400 = vpop.f32.mrb[0].mxu0
        %4401 = vdwg.mxu0
        %4402 = vst [vmem:[%s834] sm:$0xff] %v4340
        %4403 = vst [vmem:[%s834 + $0x8] sm:$0xff] %v4343
        %4404 = vst [vmem:[%s834 + $0x10] sm:$0xff] %v4348
        %4405 = vst [vmem:[%s834 + $0x18] sm:$0xff] %v4351
        %4406 = vst [vmem:[%s834 + $0x20] sm:$0xff] %v4356
        %4407 = vst [vmem:[%s834 + $0x28] sm:$0xff] %v4359
        %4408 = vst [vmem:[%s834 + $0x30] sm:$0xff] %v4364
        %4409 = vst [vmem:[%s834 + $0x38] sm:$0xff] %v4367
        %4410 = vst [vmem:[%s834 + $0x40] sm:$0xff] %v4372
        %4411 = vst [vmem:[%s834 + $0x48] sm:$0xff] %v4375
        %4412 = vst [vmem:[%s834 + $0x50] sm:$0xff] %v4380
        %4413 = vst [vmem:[%s834 + $0x58] sm:$0xff] %v4383
        %4414 = vst [vmem:[%s834 + $0x60] sm:$0xff] %v4388
        %4415 = vst [vmem:[%s834 + $0x68] sm:$0xff] %v4391
        %4416 = vst [vmem:[%s834 + $0x70] sm:$0xff] %v4396
        %4417 = vst [vmem:[%s834 + $0x78] sm:$0xff] %v4399
        %s4418 = sand.u32 %s512, 1
        %s4419 = scalar_lea.sflag [#allocation5], %s4418
        %s4420 = sand.u32 %s512, 1
        %s4421 = smul.addr %s4420, 128
        %s4422 = scalar_lea.vmem [#allocation4], %s4421
        // Predicated region
        $region187: #{ri_decoder_forward.1} parent=177 // pred_check
          %p4423 = pneg %p522
        $region188: #{ri_decoder_forward.1} parent=177 // pred_check_branch
          %4425 = sbr.rel (%p4423) target = $region190
        $region189: #{ri_decoder_forward.1} parent=177 // pred_region
          %s4427 = ssub.s32 2048, 2048
          %4428 = vsyncadd %s4419, %s4427
          %s4429 = smul.addr %s39, 32
          %s4430 = sadd.s32 %s40, %s4429
          %s4431 = smul.addr %s4430, 128
          %s4432 = scalar_lea.hbm %s21, %s4431
          %s4433 = sshll.u32 %s4422, 4
          %s4434 = int_to_ptr.vmem [resolvable:$true] %s4433
          %4439 = dma.vmem_to_hbm [thread:$0]  %s4434, 2048, %s4432, %s4419, 128, 256, 8
        $region190: #{ri_decoder_forward.1} parent=177 // pred_fallthru
          _
      $region178: #{ri_decoder_forward.1} parent=5 // pred_fallthru
        _
      %p4440 = scmp.le.s32.totalorder 2, %s30
      // Predicated region
      $region191: #{ri_decoder_forward.1} parent=5 // pred_check
        %p4441 = pneg %p4440
      $region192: #{ri_decoder_forward.1} parent=5 // pred_check_branch
        %4443 = sbr.rel (%p4441) target = $region194
      $region193: #{ri_decoder_forward.1} parent=5 // pred_region
        %s4444 = ssub.s32 %s30, 2
        // Predicated region
        $region195: #{ri_decoder_forward.1} parent=193 // pred_check
          %p4445 = pneg %p528
        $region196: #{ri_decoder_forward.1} parent=193 // pred_check_branch
          %4447 = sbr.rel (%p4445) target = $region198
        $region197: #{ri_decoder_forward.1} parent=193 // pred_region
          %s4448 = sand.u32 %s513, 1
          %s4449 = scalar_lea.sflag [#allocation5], %s4448
          %s4450 = sand.u32 %s513, 1
          %s4451 = smul.addr %s4450, 128
          %s4452 = scalar_lea.vmem [#allocation4], %s4451
          %4453 = dma.done %s4449, 2048
        $region198: #{ri_decoder_forward.1} parent=193 // pred_fallthru
          _
      $region194: #{ri_decoder_forward.1} parent=5 // pred_fallthru
        _
    $region6: #{ri_decoder_forward.1} parent=1 // loop_footer
      %s34 = sadd.s32 1, %s30
    $region7: #{ri_decoder_forward.1} parent=1 // loop_footer_branch
      %29 = sbr.rel target = $region3
    $region8: #{ri_decoder_forward.1} parent=1 // loop_exit
      _
    %4454 = vsyncpa [#allocation5], 1
    %s4455 = scalar_lea.sflag [#allocation5], 1
    %4456 = vsyncpa %s4455, 1

</llo_original>
